<compile_context>
chip_gen: v7x
topology: tpu7x:2x2x1
jax: 0.10.0
libtpu: 0.0.40
codegen_flags: <defaults>
</compile_context>

<pallas_src>
import functools
import numpy as np
import jax
import jax.numpy as jnp
from jax.experimental import pallas as pl
from jax.experimental.pallas import tpu as pltpu  # noqa: F401  (kept for clarity)

# ----------------------------- configuration -------------------------------
B = 2           # batch
N_AGENT = 8     # number of agents
T_IN = 8        # in_channel == in_node_nf (past length)
T_OUT = 8       # out_channel (future length)
D = 3           # spatial dim
HID_NF = 32     # hidden_nf
HID_CH = 16     # hid_channel
C2 = 2 * HID_CH
CAT_NUM = 2     # category_num
N_LAYERS = 4
TAO = 1.0
EPS = 1e-6

BN = B * N_AGENT
DB = D * B
BNN = B * N_AGENT * N_AGENT

# ---------------- packed-weight row offsets (shared packer <-> kernel) ------
# wp32: lane width 32
W32_EMB_W, W32_EMB_B = 0, 16        # blockdiag(w_emb, w_emb2) / [b_emb|b_emb2]
W32_CV_W, W32_CV_B = 24, 40         # blockdiag(w_coord, w_vel) / x_mean corr
W32_C1_W, W32_C1_B = 48, 80         # coord_mlp layer 1
W32_C2_W, W32_C2_B = 88, 120        # coord_mlp layer 2
W32_E2_W, W32_E2_B = 128, 160       # edge_mlp layer 2
W32_N1B_W = 168                     # node_mlp layer-1 weight for agg input
W32_N2_W, W32_N2_B = 200, 232       # node_mlp layer 2
W32_K2T_W, W32_K2T_B = 240, 248     # category_mlp layer 2 (transposed) / bias
WP32_ROWS = 256

# wp64: lane width 64
W64_CDSH = 0                        # [we1_dist | wk1_dist]
W64_NSH_W, W64_NSH_B = 32, 64       # [wk1_i | wk1_j] / [bk1 | 0]
W64_DCT = 72                        # dct_m.T (8,8)
W64_PI = 80                         # w_pred @ idct_m.T (16,8)
W64_TVEC = 96                       # colsum(idct^T) - colsum(w_pi)  (1,8)
W64_DCTCS = 104                     # colsum(dct^T)                  (1,8)
WP64_ROWS = 112

# wp128: lane width 128
W128_HSH_W, W128_HSH_B = 0, 32      # [we1_i | we1_j | wn1_h] / [be1 | 0 | bn1]
W128_AGG = 40                       # constant (BN, BNN) masked-sum matrix
WP128_ROWS = 56


def _mm(a, b):
    return jnp.dot(a, b, preferred_element_type=jnp.float32)


def _mean_nl(a):
    # mean over (agents, time/channel) per leading row -> (rows, 1, 1)
    return jnp.mean(jnp.mean(a, axis=2, keepdims=True), axis=1, keepdims=True)


# ------------------------------ fused kernel --------------------------------
def _eqmotion_kernel(hang_ref, geo_ref, wp32_ref, wp64_ref, wp128_ref,
                     xout_ref, cat_ref):
    f32 = jnp.float32
    H = HID_NF

    # ------------- node-feature embedding: h_node (BN, H) -------------------
    # [h | vel_angle] @ blockdiag(w_emb, w_emb2) + [b_emb | b_emb2]
    h_node = (_mm(hang_ref[...], wp32_ref[W32_EMB_W:W32_EMB_W + 2 * T_IN, :])
              + wp32_ref[W32_EMB_B:W32_EMB_B + 1, :])               # (16, 32)

    # ------------- geometry: rows (d,b) for x then v; time on lanes ---------
    geo = geo_ref[...]                                              # (12, 8, 8)
    x_center = _mean_nl(geo[:DB])                                   # (6, 1, 1)

    # single stacked DCT matmul for x and v
    dctT = wp64_ref[W64_DCT:W64_DCT + T_IN, 0:T_IN]                 # (8, 8)
    geo_dct = _mm(geo.reshape(2 * DB * N_AGENT, T_IN), dctT)
    geo_dct = geo_dct.reshape(2 * DB, N_AGENT, T_IN)                # (12, 8, 8)

    # centering folded into a rank-1 post-correction:
    #   dct(x - c) = dct(x) - c * colsum(dct^T)
    dct_cs = wp64_ref[W64_DCTCS:W64_DCTCS + 1, 0:T_IN]              # (1, 8)
    x_dct = geo_dct[:DB] - x_center * dct_cs                        # (6, 8, 8)
    v_dct = geo_dct[DB:]                                            # (6, 8, 8)
    x_mean = _mean_nl(x_dct)                                        # (6, 1, 1)

    # coord/vel transform: block-diagonal matmul + rank-1 x_mean correction
    xv = jnp.concatenate([x_dct, v_dct], axis=-1)                   # (6, 8, 16)
    coord = _mm(xv.reshape(DB * N_AGENT, 2 * T_IN),
                wp32_ref[W32_CV_W:W32_CV_W + 2 * T_IN, :])
    coord = coord.reshape(DB, N_AGENT, C2)
    coord = coord + x_mean * wp32_ref[W32_CV_B:W32_CV_B + 1, :]     # (6, 8, 32)

    # ------- pairwise per-channel distances (D unrolled, C2=32 on lanes) ----
    blk = coord[0:B]                                                # (2, 8, 32)
    dif = blk[:, :, None, :] - blk[:, None, :, :]
    dist2 = dif * dif
    for d in range(1, D):
        blk = coord[d * B:(d + 1) * B]
        dif = blk[:, :, None, :] - blk[:, None, :, :]
        dist2 = dist2 + dif * dif
    dist = jnp.sqrt(dist2).reshape(BNN, C2)                         # (128, 32)

    # coord_mlp (2 layers, silu)
    cd = jax.nn.silu(_mm(dist, wp32_ref[W32_C1_W:W32_C1_W + C2, :])
                     + wp32_ref[W32_C1_B:W32_C1_B + 1, :])
    cd = jax.nn.silu(_mm(cd, wp32_ref[W32_C2_W:W32_C2_W + H, :])
                     + wp32_ref[W32_C2_B:W32_C2_B + 1, :])          # (128, 32)

    # ---------------- shared matmuls (fused, biases pre-folded) -------------
    hsh = (_mm(h_node, wp128_ref[W128_HSH_W:W128_HSH_W + H, 0:3 * H])
           + wp128_ref[W128_HSH_B:W128_HSH_B + 1, 0:3 * H])         # (16, 96)
    ea = hsh[:, 0:H].reshape(B, N_AGENT, H)          # h_i term (+ be1 folded)
    eb = hsh[:, H:2 * H].reshape(B, N_AGENT, H)      # h_j term
    na = hsh[:, 2 * H:3 * H]                         # node path (+ bn1 folded)

    cdsh = _mm(cd, wp64_ref[W64_CDSH:W64_CDSH + H, :])              # (128, 64)
    ec = cdsh[:, 0:H].reshape(B, N_AGENT, N_AGENT, H)
    pc = cdsh[:, H:2 * H].reshape(B, N_AGENT, N_AGENT, H)

    # ------------------------------ edge MLP --------------------------------
    e_hid = jax.nn.silu(ea[:, :, None, :] + eb[:, None, :, :] + ec)
    e_feat = jax.nn.silu(_mm(e_hid.reshape(BNN, H),
                             wp32_ref[W32_E2_W:W32_E2_W + H, :])
                         + wp32_ref[W32_E2_B:W32_E2_B + 1, :])      # (128, 32)

    # masked neighbour aggregation as a constant matmul on the MXU
    agg = _mm(wp128_ref[W128_AGG:W128_AGG + BN, :], e_feat)         # (16, 32)

    # ------------------------------ node MLP --------------------------------
    n_hid = jax.nn.silu(na + _mm(agg, wp32_ref[W32_N1B_W:W32_N1B_W + H, :]))
    node_new = jax.nn.silu(_mm(n_hid, wp32_ref[W32_N2_W:W32_N2_W + H, :])
                           + wp32_ref[W32_N2_B:W32_N2_B + 1, :])    # (16, 32)

    # ------------------------ category MLP + softmax ------------------------
    nsh = (_mm(node_new, wp64_ref[W64_NSH_W:W64_NSH_W + H, :])
           + wp64_ref[W64_NSH_B:W64_NSH_B + 1, :])                  # (16, 64)
    pa = nsh[:, 0:H].reshape(B, N_AGENT, H)          # node_i (+ bk1 folded)
    pb = nsh[:, H:2 * H].reshape(B, N_AGENT, H)      # node_j
    k_hid = jax.nn.silu(pa[:, :, None, :] + pb[:, None, :, :] + pc)
    k_hid = k_hid.reshape(BNN, H)                                   # (128, 32)

    # lane-dense logits: (CAT_NUM, BNN) via trans-B matmul (q @ k^T pattern)
    wk2t = wp32_ref[W32_K2T_W:W32_K2T_W + CAT_NUM, :]               # (2, 32)
    bk2t = wp32_ref[W32_K2T_B:W32_K2T_B + CAT_NUM, 0:1]             # (2, 1)
    logits = jax.lax.dot_general(wk2t, k_hid, (((1,), (1,)), ((), ())),
                                 preferred_element_type=f32)        # (2, 128)
    logits = jax.nn.silu(logits + bk2t) * (1.0 / TAO)
    m = jnp.max(logits, axis=0, keepdims=True)
    e = jnp.exp(logits - m)
    denom = jnp.sum(e, axis=0, keepdims=True)
    cat_ref[...] = e * pl.reciprocal(denom, approx=True)            # (2, 128)

    # ---------------- prediction head + inverse DCT (fused) -----------------
    # TODO(synk): Feature_learning_layer (gcl_%d submodules) source is not in
    # the reference; the n_layers GCL refinements of (h, x) are identity here.
    x_ct = coord[:, :, 0:HID_CH]                                    # (6, 8, 16)
    p_mean = _mean_nl(x_ct)                                         # (6, 1, 1)
    out = _mm(x_ct.reshape(DB * N_AGENT, HID_CH),
              wp64_ref[W64_PI:W64_PI + HID_CH, 0:T_OUT])            # (48, 8)
    out = out.reshape(DB, N_AGENT, T_OUT)
    out = out + p_mean * wp64_ref[W64_TVEC:W64_TVEC + 1, 0:T_OUT] + x_center
    xout_ref[...] = out                                             # (6, 8, 8)


# ------------------------------ parameters ----------------------------------
def get_dct_matrix(nn_):
    dct_m = np.eye(nn_)
    for k in range(nn_):
        for i in range(nn_):
            w = np.sqrt(2.0 / nn_)
            if k == 0:
                w = np.sqrt(1.0 / nn_)
            dct_m[k, i] = w * np.cos(np.pi * (i + 0.5) * k / nn_)
    idct_m = np.linalg.inv(dct_m)
    return dct_m.astype(np.float32), idct_m.astype(np.float32)


def _linear(key, fan_in, fan_out):
    kw, kb = jax.random.split(key)
    s = 1.0 / np.sqrt(fan_in)
    w = jax.random.uniform(kw, (fan_in, fan_out), jnp.float32, -s, s)
    b = jax.random.uniform(kb, (1, fan_out), jnp.float32, -s, s)
    return w, b


def init_params(key):
    H, H2 = HID_NF, HID_NF // 2
    ks = jax.random.split(key, 16)
    p = {}
    p['w_emb'], p['b_emb'] = _linear(ks[0], T_IN, H2)
    p['w_emb2'], p['b_emb2'] = _linear(ks[1], T_IN, H2)
    s = 1.0 / np.sqrt(T_IN)
    p['w_coord'] = jax.random.uniform(ks[2], (T_IN, HID_CH), jnp.float32, -s, s)
    p['w_vel'] = jax.random.uniform(ks[3], (T_IN, HID_CH), jnp.float32, -s, s)
    sp = 1.0 / np.sqrt(HID_CH)
    p['w_pred'] = jax.random.uniform(ks[4], (HID_CH, T_OUT), jnp.float32, -sp, sp)
    p['wc1'], p['bc1'] = _linear(ks[5], C2, H)
    p['wc2'], p['bc2'] = _linear(ks[6], H, C2)
    p['we1'], p['be1'] = _linear(ks[7], 2 * H + C2, H)
    p['we2'], p['be2'] = _linear(ks[8], H, H)
    p['wn1'], p['bn1'] = _linear(ks[9], 2 * H, H)
    p['wn2'], p['bn2'] = _linear(ks[10], H, H)
    p['wk1'], p['bk1'] = _linear(ks[11], 2 * H + C2, H)
    p['wk2'], p['bk2'] = _linear(ks[12], H, CAT_NUM)
    return p


def _agg_matrix():
    # agg[b*N+i, :] = sum over j != i of e_feat[b, i, j, :]  (mask = 1 - eye)
    m = np.zeros((BN, BNN), np.float32)
    for b in range(B):
        for i in range(N_AGENT):
            for j in range(N_AGENT):
                if j != i:
                    m[b * N_AGENT + i, (b * N_AGENT + i) * N_AGENT + j] = 1.0
    return m


def pack_params(p):
    """Pack all weights/biases into 3 lane-width-grouped f32 buffers."""
    f = lambda a: np.asarray(a, np.float32)
    H, H2 = HID_NF, HID_NF // 2
    dct_m, _ = get_dct_matrix(T_IN)
    _, idct_m = get_dct_matrix(T_OUT)
    dctT, idctT = dct_m.T, idct_m.T

    wp32 = np.zeros((WP32_ROWS, 32), np.float32)
    wp32[W32_EMB_W:W32_EMB_W + T_IN, 0:H2] = f(p['w_emb'])
    wp32[W32_EMB_W + T_IN:W32_EMB_W + 2 * T_IN, H2:2 * H2] = f(p['w_emb2'])
    wp32[W32_EMB_B, 0:H2] = f(p['b_emb'])[0]
    wp32[W32_EMB_B, H2:2 * H2] = f(p['b_emb2'])[0]
    wp32[W32_CV_W:W32_CV_W + T_IN, 0:HID_CH] = f(p['w_coord'])
    wp32[W32_CV_W + T_IN:W32_CV_W + 2 * T_IN, HID_CH:2 * HID_CH] = f(p['w_vel'])
    wp32[W32_CV_B, 0:HID_CH] = 1.0 - f(p['w_coord']).sum(axis=0)   # x_mean corr
    wp32[W32_C1_W:W32_C1_W + C2, :] = f(p['wc1'])
    wp32[W32_C1_B, :] = f(p['bc1'])[0]
    wp32[W32_C2_W:W32_C2_W + H, :] = f(p['wc2'])
    wp32[W32_C2_B, :] = f(p['bc2'])[0]
    wp32[W32_E2_W:W32_E2_W + H, :] = f(p['we2'])
    wp32[W32_E2_B, :] = f(p['be2'])[0]
    wp32[W32_N1B_W:W32_N1B_W + H, :] = f(p['wn1'])[H:]
    wp32[W32_N2_W:W32_N2_W + H, :] = f(p['wn2'])
    wp32[W32_N2_B, :] = f(p['bn2'])[0]
    wp32[W32_K2T_W:W32_K2T_W + CAT_NUM, :] = f(p['wk2']).T
    wp32[W32_K2T_B:W32_K2T_B + CAT_NUM, 0] = f(p['bk2'])[0]

    wp64 = np.zeros((WP64_ROWS, 64), np.float32)
    we1, wk1 = f(p['we1']), f(p['wk1'])
    wp64[W64_CDSH:W64_CDSH + H, 0:H] = we1[2 * H:]          # we1 (dist part)
    wp64[W64_CDSH:W64_CDSH + H, H:2 * H] = wk1[2 * H:]      # wk1 (dist part)
    wp64[W64_NSH_W:W64_NSH_W + H, 0:H] = wk1[:H]            # wk1 (node_i)
    wp64[W64_NSH_W:W64_NSH_W + H, H:2 * H] = wk1[H:2 * H]   # wk1 (node_j)
    wp64[W64_NSH_B, 0:H] = f(p['bk1'])[0]
    wp64[W64_DCT:W64_DCT + T_IN, 0:T_IN] = dctT
    w_pi = f(p['w_pred']) @ idctT                            # fused head+iDCT
    wp64[W64_PI:W64_PI + HID_CH, 0:T_OUT] = w_pi
    wp64[W64_TVEC, 0:T_OUT] = idctT.sum(axis=0) - w_pi.sum(axis=0)
    wp64[W64_DCTCS, 0:T_IN] = dctT.sum(axis=0)

    wp128 = np.zeros((WP128_ROWS, 128), np.float32)
    wn1 = f(p['wn1'])
    wp128[W128_HSH_W:W128_HSH_W + H, 0:H] = we1[:H]          # we1 (h_i)
    wp128[W128_HSH_W:W128_HSH_W + H, H:2 * H] = we1[H:2 * H] # we1 (h_j)
    wp128[W128_HSH_W:W128_HSH_W + H, 2 * H:3 * H] = wn1[:H]  # wn1 (h)
    wp128[W128_HSH_B, 0:H] = f(p['be1'])[0]
    wp128[W128_HSH_B, 2 * H:3 * H] = f(p['bn1'])[0]
    wp128[W128_AGG:W128_AGG + BN, :] = _agg_matrix()

    return jnp.asarray(wp32), jnp.asarray(wp64), jnp.asarray(wp128)


# ------------------------------- forward ------------------------------------
def eqmotion_forward(wp32, wp64, wp128, h, x, vel):
    b, n, t, d = x.shape

    # velocity-angle features (arccos has no Mosaic lowering -> tiny JAX prep)
    vel_pre = jnp.concatenate([vel[:, :, :1], vel[:, :, :-1]], axis=2)
    cos = jnp.sum(vel_pre * vel, axis=-1) / (
        (jnp.linalg.norm(vel_pre, axis=-1) + EPS)
        * (jnp.linalg.norm(vel, axis=-1) + EPS))
    vel_angle = jnp.arccos(jnp.clip(cos, -1.0, 1.0))

    # Two packed input operands:
    #   h_ang : (B*N, 2*T)     = [h | vel_angle]
    #   geo   : (2*D*B, N, T)  = x rows (d,b-major) then v rows
    h_ang = jnp.concatenate([h.reshape(b * n, t), vel_angle.reshape(b * n, t)],
                            axis=-1)
    x_p = jnp.transpose(x, (3, 0, 1, 2)).reshape(d * b, n, t)
    v_p = jnp.transpose(vel, (3, 0, 1, 2)).reshape(d * b, n, t)
    geo = jnp.concatenate([x_p, v_p], axis=0)

    out_shape = (
        jax.ShapeDtypeStruct((d * b, n, T_OUT), jnp.float32),     # prediction
        jax.ShapeDtypeStruct((CAT_NUM, b * n * n), jnp.float32),  # categories
    )
    xout, cat_t = pl.pallas_call(
        _eqmotion_kernel,
        out_shape=out_shape,
        cost_estimate=pl.CostEstimate(flops=1_800_000,
                                      transcendentals=22_000,
                                      bytes_accessed=100_000),
    )(h_ang, geo, wp32, wp64, wp128)

    x_out = jnp.transpose(xout.reshape(d, b, n, T_OUT), (1, 2, 3, 0))
    category = jnp.transpose(cat_t).reshape(b, n, n, CAT_NUM)
    # TODO(synk): gcl_%d (Feature_learning_layer) not provided -> per-layer
    # category list repeats the single computed category (identity GCLs).
    category_per_layer = [category for _ in range(N_LAYERS)]
    return x_out, category_per_layer


# --------------------------------- main --------------------------------------
if __name__ == "__main__":
    key = jax.random.PRNGKey(0)
    kh, kx, kv, kp = jax.random.split(key, 4)
    h = jax.random.normal(kh, (B, N_AGENT, T_IN), jnp.float32)
    x = jax.random.normal(kx, (B, N_AGENT, T_IN, D), jnp.float32)
    vel = jax.random.normal(kv, (B, N_AGENT, T_IN, D), jnp.float32)
    params = init_params(kp)
    wp32, wp64, wp128 = pack_params(params)

    fwd = jax.jit(functools.partial(eqmotion_forward, wp32, wp64, wp128))
    x_out, cats = fwd(h, x, vel)
    jax.block_until_ready((x_out, cats))

    assert x_out.shape == (B, N_AGENT, T_OUT, D)
    assert len(cats) == N_LAYERS and cats[0].shape == (B, N_AGENT, N_AGENT, CAT_NUM)
    print("KERNEL_OK")
</pallas_src>

<mosaic_0001>
module attributes {stable_mosaic.version = 11 : i64} {
  func.func @_eqmotion_kernel(%arg0: memref<16x16xf32, #tpu.memory_space<vmem>>, %arg1: memref<12x8x8xf32, #tpu.memory_space<vmem>>, %arg2: memref<256x32xf32, #tpu.memory_space<vmem>>, %arg3: memref<112x64xf32, #tpu.memory_space<vmem>>, %arg4: memref<56x128xf32, #tpu.memory_space<vmem>>, %arg5: memref<6x8x8xf32, #tpu.memory_space<vmem>>, %arg6: memref<2x128xf32, #tpu.memory_space<vmem>>) attributes {dimension_semantics = [], scalar_prefetch = 0 : i64, scratch_operands = 0 : i64, tpu.core_type = #tpu.core_type<tc>} {
    %c0 = arith.constant 0 : index
    %c0_0 = arith.constant 0 : index
    %0 = vector.load %arg0[%c0, %c0_0] : memref<16x16xf32, #tpu.memory_space<vmem>>, vector<16x16xf32>
    %c0_1 = arith.constant 0 : index
    %c0_2 = arith.constant 0 : index
    %1 = vector.load %arg2[%c0_1, %c0_2] : memref<256x32xf32, #tpu.memory_space<vmem>>, vector<16x32xf32>
    %cst = arith.constant dense<0.000000e+00> : vector<16x32xf32>
    %2 = tpu.matmul %0, %1, %cst {dimension_numbers = #tpu.dot_dimension_numbers<[1], [0], [0], [1], [0, 0, 1, 1], [], []>} : vector<16x16xf32>, vector<16x32xf32>, vector<16x32xf32> -> vector<16x32xf32>
    %c16 = arith.constant 16 : index
    %c0_3 = arith.constant 0 : index
    %3 = vector.load %arg2[%c16, %c0_3] : memref<256x32xf32, #tpu.memory_space<vmem>>, vector<1x32xf32>
    %4 = vector.broadcast %3 : vector<1x32xf32> to vector<16x32xf32>
    %5 = arith.addf %2, %4 : vector<16x32xf32>
    %c0_4 = arith.constant 0 : index
    %c0_5 = arith.constant 0 : index
    %c0_6 = arith.constant 0 : index
    %6 = vector.load %arg1[%c0_4, %c0_5, %c0_6] : memref<12x8x8xf32, #tpu.memory_space<vmem>>, vector<12x8x8xf32>
    %7 = vector.extract_strided_slice %6 {offsets = [0, 0, 0], sizes = [6, 8, 8], strides = [1, 1, 1]} : vector<12x8x8xf32> to vector<6x8x8xf32>
    %cst_7 = arith.constant dense<0.000000e+00> : vector<6x8xf32>
    %8 = vector.multi_reduction <add>, %7, %cst_7 [2] : vector<6x8x8xf32> to vector<6x8xf32>
    %9 = vector.shape_cast %8 : vector<6x8xf32> to vector<6x8x1xf32>
    %cst_8 = arith.constant 8.000000e+00 : f32
    %10 = vector.broadcast %cst_8 : f32 to vector<6x8x1xf32>
    %11 = arith.divf %9, %10 : vector<6x8x1xf32>
    %cst_9 = arith.constant dense<0.000000e+00> : vector<6x1xf32>
    %12 = vector.multi_reduction <add>, %11, %cst_9 [1] : vector<6x8x1xf32> to vector<6x1xf32>
    %13 = vector.shape_cast %12 : vector<6x1xf32> to vector<6x1x1xf32>
    %cst_10 = arith.constant 8.000000e+00 : f32
    %14 = vector.broadcast %cst_10 : f32 to vector<6x1x1xf32>
    %15 = arith.divf %13, %14 : vector<6x1x1xf32>
    %c72 = arith.constant 72 : index
    %c0_11 = arith.constant 0 : index
    %16 = vector.load %arg3[%c72, %c0_11] : memref<112x64xf32, #tpu.memory_space<vmem>>, vector<8x8xf32>
    %17 = vector.shape_cast %6 : vector<12x8x8xf32> to vector<96x8xf32>
    %cst_12 = arith.constant dense<0.000000e+00> : vector<96x8xf32>
    %18 = tpu.matmul %17, %16, %cst_12 {dimension_numbers = #tpu.dot_dimension_numbers<[1], [0], [0], [1], [0, 0, 1, 1], [], []>} : vector<96x8xf32>, vector<8x8xf32>, vector<96x8xf32> -> vector<96x8xf32>
    %19 = vector.shape_cast %18 : vector<96x8xf32> to vector<12x8x8xf32>
    %c104 = arith.constant 104 : index
    %c0_13 = arith.constant 0 : index
    %20 = vector.load %arg3[%c104, %c0_13] : memref<112x64xf32, #tpu.memory_space<vmem>>, vector<1x8xf32>
    %21 = vector.extract_strided_slice %19 {offsets = [0, 0, 0], sizes = [6, 8, 8], strides = [1, 1, 1]} : vector<12x8x8xf32> to vector<6x8x8xf32>
    %22 = vector.shape_cast %20 : vector<1x8xf32> to vector<1x1x8xf32>
    %23 = vector.broadcast %15 : vector<6x1x1xf32> to vector<6x1x8xf32>
    %24 = vector.broadcast %22 : vector<1x1x8xf32> to vector<6x1x8xf32>
    %25 = arith.mulf %23, %24 : vector<6x1x8xf32>
    %26 = vector.broadcast %25 : vector<6x1x8xf32> to vector<6x8x8xf32>
    %27 = arith.subf %21, %26 : vector<6x8x8xf32>
    %28 = vector.extract_strided_slice %19 {offsets = [6, 0, 0], sizes = [6, 8, 8], strides = [1, 1, 1]} : vector<12x8x8xf32> to vector<6x8x8xf32>
    %cst_14 = arith.constant dense<0.000000e+00> : vector<6x8xf32>
    %29 = vector.multi_reduction <add>, %27, %cst_14 [2] : vector<6x8x8xf32> to vector<6x8xf32>
    %30 = vector.shape_cast %29 : vector<6x8xf32> to vector<6x8x1xf32>
    %cst_15 = arith.constant 8.000000e+00 : f32
    %31 = vector.broadcast %cst_15 : f32 to vector<6x8x1xf32>
    %32 = arith.divf %30, %31 : vector<6x8x1xf32>
    %cst_16 = arith.constant dense<0.000000e+00> : vector<6x1xf32>
    %33 = vector.multi_reduction <add>, %32, %cst_16 [1] : vector<6x8x1xf32> to vector<6x1xf32>
    %34 = vector.shape_cast %33 : vector<6x1xf32> to vector<6x1x1xf32>
    %cst_17 = arith.constant 8.000000e+00 : f32
    %35 = vector.broadcast %cst_17 : f32 to vector<6x1x1xf32>
    %36 = arith.divf %34, %35 : vector<6x1x1xf32>
    %37 = tpu.concatenate %27, %28 in 2 : vector<6x8x8xf32>, vector<6x8x8xf32> -> vector<6x8x16xf32>
    %38 = vector.shape_cast %37 : vector<6x8x16xf32> to vector<48x16xf32>
    %c24 = arith.constant 24 : index
    %c0_18 = arith.constant 0 : index
    %39 = vector.load %arg2[%c24, %c0_18] : memref<256x32xf32, #tpu.memory_space<vmem>>, vector<16x32xf32>
    %cst_19 = arith.constant dense<0.000000e+00> : vector<48x32xf32>
    %40 = tpu.matmul %38, %39, %cst_19 {dimension_numbers = #tpu.dot_dimension_numbers<[1], [0], [0], [1], [0, 0, 1, 1], [], []>} : vector<48x16xf32>, vector<16x32xf32>, vector<48x32xf32> -> vector<48x32xf32>
    %41 = vector.shape_cast %40 : vector<48x32xf32> to vector<6x8x32xf32>
    %c40 = arith.constant 40 : index
    %c0_20 = arith.constant 0 : index
    %42 = vector.load %arg2[%c40, %c0_20] : memref<256x32xf32, #tpu.memory_space<vmem>>, vector<1x32xf32>
    %43 = vector.shape_cast %42 : vector<1x32xf32> to vector<1x1x32xf32>
    %44 = vector.broadcast %36 : vector<6x1x1xf32> to vector<6x1x32xf32>
    %45 = vector.broadcast %43 : vector<1x1x32xf32> to vector<6x1x32xf32>
    %46 = arith.mulf %44, %45 : vector<6x1x32xf32>
    %47 = vector.broadcast %46 : vector<6x1x32xf32> to vector<6x8x32xf32>
    %48 = arith.addf %41, %47 : vector<6x8x32xf32>
    %49 = vector.extract_strided_slice %48 {offsets = [0, 0, 0], sizes = [2, 8, 32], strides = [1, 1, 1]} : vector<6x8x32xf32> to vector<2x8x32xf32>
    %50 = vector.shape_cast %49 : vector<2x8x32xf32> to vector<2x8x1x32xf32>
    %51 = vector.shape_cast %49 : vector<2x8x32xf32> to vector<2x1x8x32xf32>
    %52 = vector.broadcast %50 : vector<2x8x1x32xf32> to vector<2x8x8x32xf32>
    %53 = vector.broadcast %51 : vector<2x1x8x32xf32> to vector<2x8x8x32xf32>
    %54 = arith.subf %52, %53 : vector<2x8x8x32xf32>
    %55 = arith.mulf %54, %54 : vector<2x8x8x32xf32>
    %56 = vector.extract_strided_slice %48 {offsets = [2, 0, 0], sizes = [2, 8, 32], strides = [1, 1, 1]} : vector<6x8x32xf32> to vector<2x8x32xf32>
    %57 = vector.shape_cast %56 : vector<2x8x32xf32> to vector<2x8x1x32xf32>
    %58 = vector.shape_cast %56 : vector<2x8x32xf32> to vector<2x1x8x32xf32>
    %59 = vector.broadcast %57 : vector<2x8x1x32xf32> to vector<2x8x8x32xf32>
    %60 = vector.broadcast %58 : vector<2x1x8x32xf32> to vector<2x8x8x32xf32>
    %61 = arith.subf %59, %60 : vector<2x8x8x32xf32>
    %62 = arith.mulf %61, %61 : vector<2x8x8x32xf32>
    %63 = arith.addf %55, %62 : vector<2x8x8x32xf32>
    %64 = vector.extract_strided_slice %48 {offsets = [4, 0, 0], sizes = [2, 8, 32], strides = [1, 1, 1]} : vector<6x8x32xf32> to vector<2x8x32xf32>
    %65 = vector.shape_cast %64 : vector<2x8x32xf32> to vector<2x8x1x32xf32>
    %66 = vector.shape_cast %64 : vector<2x8x32xf32> to vector<2x1x8x32xf32>
    %67 = vector.broadcast %65 : vector<2x8x1x32xf32> to vector<2x8x8x32xf32>
    %68 = vector.broadcast %66 : vector<2x1x8x32xf32> to vector<2x8x8x32xf32>
    %69 = arith.subf %67, %68 : vector<2x8x8x32xf32>
    %70 = arith.mulf %69, %69 : vector<2x8x8x32xf32>
    %71 = arith.addf %63, %70 : vector<2x8x8x32xf32>
    %72 = math.sqrt %71 : vector<2x8x8x32xf32>
    %73 = vector.shape_cast %72 : vector<2x8x8x32xf32> to vector<128x32xf32>
    %c48 = arith.constant 48 : index
    %c0_21 = arith.constant 0 : index
    %74 = vector.load %arg2[%c48, %c0_21] : memref<256x32xf32, #tpu.memory_space<vmem>>, vector<32x32xf32>
    %cst_22 = arith.constant dense<0.000000e+00> : vector<128x32xf32>
    %75 = tpu.matmul %73, %74, %cst_22 {dimension_numbers = #tpu.dot_dimension_numbers<[1], [0], [0], [1], [0, 0, 1, 1], [], []>} : vector<128x32xf32>, vector<32x32xf32>, vector<128x32xf32> -> vector<128x32xf32>
    %c80 = arith.constant 80 : index
    %c0_23 = arith.constant 0 : index
    %76 = vector.load %arg2[%c80, %c0_23] : memref<256x32xf32, #tpu.memory_space<vmem>>, vector<1x32xf32>
    %77 = vector.broadcast %76 : vector<1x32xf32> to vector<128x32xf32>
    %78 = arith.addf %75, %77 : vector<128x32xf32>
    %79 = arith.negf %78 : vector<128x32xf32>
    %80 = math.exp %79 : vector<128x32xf32>
    %cst_24 = arith.constant 1.000000e+00 : f32
    %81 = vector.broadcast %cst_24 : f32 to vector<128x32xf32>
    %82 = arith.addf %81, %80 : vector<128x32xf32>
    %83 = arith.divf %81, %82 : vector<128x32xf32>
    %84 = arith.mulf %78, %83 : vector<128x32xf32>
    %c88 = arith.constant 88 : index
    %c0_25 = arith.constant 0 : index
    %85 = vector.load %arg2[%c88, %c0_25] : memref<256x32xf32, #tpu.memory_space<vmem>>, vector<32x32xf32>
    %cst_26 = arith.constant dense<0.000000e+00> : vector<128x32xf32>
    %86 = tpu.matmul %84, %85, %cst_26 {dimension_numbers = #tpu.dot_dimension_numbers<[1], [0], [0], [1], [0, 0, 1, 1], [], []>} : vector<128x32xf32>, vector<32x32xf32>, vector<128x32xf32> -> vector<128x32xf32>
    %c120 = arith.constant 120 : index
    %c0_27 = arith.constant 0 : index
    %87 = vector.load %arg2[%c120, %c0_27] : memref<256x32xf32, #tpu.memory_space<vmem>>, vector<1x32xf32>
    %88 = vector.broadcast %87 : vector<1x32xf32> to vector<128x32xf32>
    %89 = arith.addf %86, %88 : vector<128x32xf32>
    %90 = arith.negf %89 : vector<128x32xf32>
    %91 = math.exp %90 : vector<128x32xf32>
    %cst_28 = arith.constant 1.000000e+00 : f32
    %92 = vector.broadcast %cst_28 : f32 to vector<128x32xf32>
    %93 = arith.addf %92, %91 : vector<128x32xf32>
    %94 = arith.divf %92, %93 : vector<128x32xf32>
    %95 = arith.mulf %89, %94 : vector<128x32xf32>
    %c0_29 = arith.constant 0 : index
    %c0_30 = arith.constant 0 : index
    %96 = vector.load %arg4[%c0_29, %c0_30] : memref<56x128xf32, #tpu.memory_space<vmem>>, vector<32x96xf32>
    %cst_31 = arith.constant dense<0.000000e+00> : vector<16x96xf32>
    %97 = tpu.matmul %5, %96, %cst_31 {dimension_numbers = #tpu.dot_dimension_numbers<[1], [0], [0], [1], [0, 0, 1, 1], [], []>} : vector<16x32xf32>, vector<32x96xf32>, vector<16x96xf32> -> vector<16x96xf32>
    %c32 = arith.constant 32 : index
    %c0_32 = arith.constant 0 : index
    %98 = vector.load %arg4[%c32, %c0_32] : memref<56x128xf32, #tpu.memory_space<vmem>>, vector<1x96xf32>
    %99 = vector.broadcast %98 : vector<1x96xf32> to vector<16x96xf32>
    %100 = arith.addf %97, %99 : vector<16x96xf32>
    %101 = vector.extract_strided_slice %100 {offsets = [0, 0], sizes = [16, 32], strides = [1, 1]} : vector<16x96xf32> to vector<16x32xf32>
    %102 = vector.shape_cast %101 : vector<16x32xf32> to vector<2x8x32xf32>
    %103 = vector.extract_strided_slice %100 {offsets = [0, 32], sizes = [16, 32], strides = [1, 1]} : vector<16x96xf32> to vector<16x32xf32>
    %104 = vector.shape_cast %103 : vector<16x32xf32> to vector<2x8x32xf32>
    %105 = vector.extract_strided_slice %100 {offsets = [0, 64], sizes = [16, 32], strides = [1, 1]} : vector<16x96xf32> to vector<16x32xf32>
    %c0_33 = arith.constant 0 : index
    %c0_34 = arith.constant 0 : index
    %106 = vector.load %arg3[%c0_33, %c0_34] : memref<112x64xf32, #tpu.memory_space<vmem>>, vector<32x64xf32>
    %cst_35 = arith.constant dense<0.000000e+00> : vector<128x64xf32>
    %107 = tpu.matmul %95, %106, %cst_35 {dimension_numbers = #tpu.dot_dimension_numbers<[1], [0], [0], [1], [0, 0, 1, 1], [], []>} : vector<128x32xf32>, vector<32x64xf32>, vector<128x64xf32> -> vector<128x64xf32>
    %108 = vector.extract_strided_slice %107 {offsets = [0, 0], sizes = [128, 32], strides = [1, 1]} : vector<128x64xf32> to vector<128x32xf32>
    %109 = vector.shape_cast %108 : vector<128x32xf32> to vector<2x8x8x32xf32>
    %110 = vector.extract_strided_slice %107 {offsets = [0, 32], sizes = [128, 32], strides = [1, 1]} : vector<128x64xf32> to vector<128x32xf32>
    %111 = vector.shape_cast %110 : vector<128x32xf32> to vector<2x8x8x32xf32>
    %112 = vector.shape_cast %102 : vector<2x8x32xf32> to vector<2x8x1x32xf32>
    %113 = vector.shape_cast %104 : vector<2x8x32xf32> to vector<2x1x8x32xf32>
    %114 = vector.broadcast %112 : vector<2x8x1x32xf32> to vector<2x8x8x32xf32>
    %115 = vector.broadcast %113 : vector<2x1x8x32xf32> to vector<2x8x8x32xf32>
    %116 = arith.addf %114, %115 : vector<2x8x8x32xf32>
    %117 = arith.addf %116, %109 : vector<2x8x8x32xf32>
    %118 = arith.negf %117 : vector<2x8x8x32xf32>
    %119 = math.exp %118 : vector<2x8x8x32xf32>
    %cst_36 = arith.constant 1.000000e+00 : f32
    %120 = vector.broadcast %cst_36 : f32 to vector<2x8x8x32xf32>
    %121 = arith.addf %120, %119 : vector<2x8x8x32xf32>
    %122 = arith.divf %120, %121 : vector<2x8x8x32xf32>
    %123 = arith.mulf %117, %122 : vector<2x8x8x32xf32>
    %124 = vector.shape_cast %123 : vector<2x8x8x32xf32> to vector<128x32xf32>
    %c128 = arith.constant 128 : index
    %c0_37 = arith.constant 0 : index
    %125 = vector.load %arg2[%c128, %c0_37] : memref<256x32xf32, #tpu.memory_space<vmem>>, vector<32x32xf32>
    %cst_38 = arith.constant dense<0.000000e+00> : vector<128x32xf32>
    %126 = tpu.matmul %124, %125, %cst_38 {dimension_numbers = #tpu.dot_dimension_numbers<[1], [0], [0], [1], [0, 0, 1, 1], [], []>} : vector<128x32xf32>, vector<32x32xf32>, vector<128x32xf32> -> vector<128x32xf32>
    %c160 = arith.constant 160 : index
    %c0_39 = arith.constant 0 : index
    %127 = vector.load %arg2[%c160, %c0_39] : memref<256x32xf32, #tpu.memory_space<vmem>>, vector<1x32xf32>
    %128 = vector.broadcast %127 : vector<1x32xf32> to vector<128x32xf32>
    %129 = arith.addf %126, %128 : vector<128x32xf32>
    %130 = arith.negf %129 : vector<128x32xf32>
    %131 = math.exp %130 : vector<128x32xf32>
    %cst_40 = arith.constant 1.000000e+00 : f32
    %132 = vector.broadcast %cst_40 : f32 to vector<128x32xf32>
    %133 = arith.addf %132, %131 : vector<128x32xf32>
    %134 = arith.divf %132, %133 : vector<128x32xf32>
    %135 = arith.mulf %129, %134 : vector<128x32xf32>
    %c40_41 = arith.constant 40 : index
    %c0_42 = arith.constant 0 : index
    %136 = vector.load %arg4[%c40_41, %c0_42] : memref<56x128xf32, #tpu.memory_space<vmem>>, vector<16x128xf32>
    %cst_43 = arith.constant dense<0.000000e+00> : vector<16x32xf32>
    %137 = tpu.matmul %136, %135, %cst_43 {dimension_numbers = #tpu.dot_dimension_numbers<[1], [0], [0], [1], [0, 0, 1, 1], [], []>} : vector<16x128xf32>, vector<128x32xf32>, vector<16x32xf32> -> vector<16x32xf32>
    %c168 = arith.constant 168 : index
    %c0_44 = arith.constant 0 : index
    %138 = vector.load %arg2[%c168, %c0_44] : memref<256x32xf32, #tpu.memory_space<vmem>>, vector<32x32xf32>
    %cst_45 = arith.constant dense<0.000000e+00> : vector<16x32xf32>
    %139 = tpu.matmul %137, %138, %cst_45 {dimension_numbers = #tpu.dot_dimension_numbers<[1], [0], [0], [1], [0, 0, 1, 1], [], []>} : vector<16x32xf32>, vector<32x32xf32>, vector<16x32xf32> -> vector<16x32xf32>
    %140 = arith.addf %105, %139 : vector<16x32xf32>
    %141 = arith.negf %140 : vector<16x32xf32>
    %142 = math.exp %141 : vector<16x32xf32>
    %cst_46 = arith.constant 1.000000e+00 : f32
    %143 = vector.broadcast %cst_46 : f32 to vector<16x32xf32>
    %144 = arith.addf %143, %142 : vector<16x32xf32>
    %145 = arith.divf %143, %144 : vector<16x32xf32>
    %146 = arith.mulf %140, %145 : vector<16x32xf32>
    %c200 = arith.constant 200 : index
    %c0_47 = arith.constant 0 : index
    %147 = vector.load %arg2[%c200, %c0_47] : memref<256x32xf32, #tpu.memory_space<vmem>>, vector<32x32xf32>
    %cst_48 = arith.constant dense<0.000000e+00> : vector<16x32xf32>
    %148 = tpu.matmul %146, %147, %cst_48 {dimension_numbers = #tpu.dot_dimension_numbers<[1], [0], [0], [1], [0, 0, 1, 1], [], []>} : vector<16x32xf32>, vector<32x32xf32>, vector<16x32xf32> -> vector<16x32xf32>
    %c232 = arith.constant 232 : index
    %c0_49 = arith.constant 0 : index
    %149 = vector.load %arg2[%c232, %c0_49] : memref<256x32xf32, #tpu.memory_space<vmem>>, vector<1x32xf32>
    %150 = vector.broadcast %149 : vector<1x32xf32> to vector<16x32xf32>
    %151 = arith.addf %148, %150 : vector<16x32xf32>
    %152 = arith.negf %151 : vector<16x32xf32>
    %153 = math.exp %152 : vector<16x32xf32>
    %cst_50 = arith.constant 1.000000e+00 : f32
    %154 = vector.broadcast %cst_50 : f32 to vector<16x32xf32>
    %155 = arith.addf %154, %153 : vector<16x32xf32>
    %156 = arith.divf %154, %155 : vector<16x32xf32>
    %157 = arith.mulf %151, %156 : vector<16x32xf32>
    %c32_51 = arith.constant 32 : index
    %c0_52 = arith.constant 0 : index
    %158 = vector.load %arg3[%c32_51, %c0_52] : memref<112x64xf32, #tpu.memory_space<vmem>>, vector<32x64xf32>
    %cst_53 = arith.constant dense<0.000000e+00> : vector<16x64xf32>
    %159 = tpu.matmul %157, %158, %cst_53 {dimension_numbers = #tpu.dot_dimension_numbers<[1], [0], [0], [1], [0, 0, 1, 1], [], []>} : vector<16x32xf32>, vector<32x64xf32>, vector<16x64xf32> -> vector<16x64xf32>
    %c64 = arith.constant 64 : index
    %c0_54 = arith.constant 0 : index
    %160 = vector.load %arg3[%c64, %c0_54] : memref<112x64xf32, #tpu.memory_space<vmem>>, vector<1x64xf32>
    %161 = vector.broadcast %160 : vector<1x64xf32> to vector<16x64xf32>
    %162 = arith.addf %159, %161 : vector<16x64xf32>
    %163 = vector.extract_strided_slice %162 {offsets = [0, 0], sizes = [16, 32], strides = [1, 1]} : vector<16x64xf32> to vector<16x32xf32>
    %164 = vector.shape_cast %163 : vector<16x32xf32> to vector<2x8x32xf32>
    %165 = vector.extract_strided_slice %162 {offsets = [0, 32], sizes = [16, 32], strides = [1, 1]} : vector<16x64xf32> to vector<16x32xf32>
    %166 = vector.shape_cast %165 : vector<16x32xf32> to vector<2x8x32xf32>
    %167 = vector.shape_cast %164 : vector<2x8x32xf32> to vector<2x8x1x32xf32>
    %168 = vector.shape_cast %166 : vector<2x8x32xf32> to vector<2x1x8x32xf32>
    %169 = vector.broadcast %167 : vector<2x8x1x32xf32> to vector<2x8x8x32xf32>
    %170 = vector.broadcast %168 : vector<2x1x8x32xf32> to vector<2x8x8x32xf32>
    %171 = arith.addf %169, %170 : vector<2x8x8x32xf32>
    %172 = arith.addf %171, %111 : vector<2x8x8x32xf32>
    %173 = arith.negf %172 : vector<2x8x8x32xf32>
    %174 = math.exp %173 : vector<2x8x8x32xf32>
    %cst_55 = arith.constant 1.000000e+00 : f32
    %175 = vector.broadcast %cst_55 : f32 to vector<2x8x8x32xf32>
    %176 = arith.addf %175, %174 : vector<2x8x8x32xf32>
    %177 = arith.divf %175, %176 : vector<2x8x8x32xf32>
    %178 = arith.mulf %172, %177 : vector<2x8x8x32xf32>
    %179 = vector.shape_cast %178 : vector<2x8x8x32xf32> to vector<128x32xf32>
    %c240 = arith.constant 240 : index
    %c0_56 = arith.constant 0 : index
    %180 = vector.load %arg2[%c240, %c0_56] : memref<256x32xf32, #tpu.memory_space<vmem>>, vector<2x32xf32>
    %c248 = arith.constant 248 : index
    %c0_57 = arith.constant 0 : index
    %181 = vector.load %arg2[%c248, %c0_57] : memref<256x32xf32, #tpu.memory_space<vmem>>, vector<2x1xf32>
    %cst_58 = arith.constant dense<0.000000e+00> : vector<2x128xf32>
    %182 = tpu.matmul %180, %179, %cst_58 {dimension_numbers = #tpu.dot_dimension_numbers<[1], [1], [0], [0], [0, 0, 1, 0], [], []>} : vector<2x32xf32>, vector<128x32xf32>, vector<2x128xf32> -> vector<2x128xf32>
    %183 = vector.broadcast %181 : vector<2x1xf32> to vector<2x128xf32>
    %184 = arith.addf %182, %183 : vector<2x128xf32>
    %185 = arith.negf %184 : vector<2x128xf32>
    %186 = math.exp %185 : vector<2x128xf32>
    %cst_59 = arith.constant 1.000000e+00 : f32
    %187 = vector.broadcast %cst_59 : f32 to vector<2x128xf32>
    %188 = arith.addf %187, %186 : vector<2x128xf32>
    %189 = arith.divf %187, %188 : vector<2x128xf32>
    %190 = arith.mulf %184, %189 : vector<2x128xf32>
    %cst_60 = arith.constant 1.000000e+00 : f32
    %191 = vector.broadcast %cst_60 : f32 to vector<2x128xf32>
    %192 = arith.mulf %190, %191 : vector<2x128xf32>
    %cst_61 = arith.constant dense<0xFF800000> : vector<128xf32>
    %193 = vector.multi_reduction <maximumf>, %192, %cst_61 [0] : vector<2x128xf32> to vector<128xf32>
    %194 = vector.shape_cast %193 : vector<128xf32> to vector<1x128xf32>
    %195 = vector.broadcast %194 : vector<1x128xf32> to vector<2x128xf32>
    %196 = arith.subf %192, %195 : vector<2x128xf32>
    %197 = math.exp %196 : vector<2x128xf32>
    %cst_62 = arith.constant dense<0.000000e+00> : vector<128xf32>
    %198 = vector.multi_reduction <add>, %197, %cst_62 [0] : vector<2x128xf32> to vector<128xf32>
    %199 = vector.shape_cast %198 : vector<128xf32> to vector<1x128xf32>
    %200 = tpu.reciprocal %199 {approx = true} : vector<1x128xf32> -> vector<1x128xf32>
    %201 = vector.broadcast %200 : vector<1x128xf32> to vector<2x128xf32>
    %202 = arith.mulf %197, %201 : vector<2x128xf32>
    %c0_63 = arith.constant 0 : index
    %c0_64 = arith.constant 0 : index
    %203 = vector.load %arg6[%c0_63, %c0_64] : memref<2x128xf32, #tpu.memory_space<vmem>>, vector<2x128xf32>
    tpu.vector_store %arg6[%c0_63, %c0_64], %202 {strides = array<i32>} : memref<2x128xf32, #tpu.memory_space<vmem>>, vector<2x128xf32>,
    %204 = vector.extract_strided_slice %48 {offsets = [0, 0, 0], sizes = [6, 8, 16], strides = [1, 1, 1]} : vector<6x8x32xf32> to vector<6x8x16xf32>
    %cst_65 = arith.constant dense<0.000000e+00> : vector<6x8xf32>
    %205 = vector.multi_reduction <add>, %204, %cst_65 [2] : vector<6x8x16xf32> to vector<6x8xf32>
    %206 = vector.shape_cast %205 : vector<6x8xf32> to vector<6x8x1xf32>
    %cst_66 = arith.constant 1.600000e+01 : f32
    %207 = vector.broadcast %cst_66 : f32 to vector<6x8x1xf32>
    %208 = arith.divf %206, %207 : vector<6x8x1xf32>
    %cst_67 = arith.constant dense<0.000000e+00> : vector<6x1xf32>
    %209 = vector.multi_reduction <add>, %208, %cst_67 [1] : vector<6x8x1xf32> to vector<6x1xf32>
    %210 = vector.shape_cast %209 : vector<6x1xf32> to vector<6x1x1xf32>
    %cst_68 = arith.constant 8.000000e+00 : f32
    %211 = vector.broadcast %cst_68 : f32 to vector<6x1x1xf32>
    %212 = arith.divf %210, %211 : vector<6x1x1xf32>
    %213 = vector.shape_cast %204 : vector<6x8x16xf32> to vector<48x16xf32>
    %c80_69 = arith.constant 80 : index
    %c0_70 = arith.constant 0 : index
    %214 = vector.load %arg3[%c80_69, %c0_70] : memref<112x64xf32, #tpu.memory_space<vmem>>, vector<16x8xf32>
    %cst_71 = arith.constant dense<0.000000e+00> : vector<48x8xf32>
    %215 = tpu.matmul %213, %214, %cst_71 {dimension_numbers = #tpu.dot_dimension_numbers<[1], [0], [0], [1], [0, 0, 1, 1], [], []>} : vector<48x16xf32>, vector<16x8xf32>, vector<48x8xf32> -> vector<48x8xf32>
    %216 = vector.shape_cast %215 : vector<48x8xf32> to vector<6x8x8xf32>
    %c96 = arith.constant 96 : index
    %c0_72 = arith.constant 0 : index
    %217 = vector.load %arg3[%c96, %c0_72] : memref<112x64xf32, #tpu.memory_space<vmem>>, vector<1x8xf32>
    %218 = vector.shape_cast %217 : vector<1x8xf32> to vector<1x1x8xf32>
    %219 = vector.broadcast %212 : vector<6x1x1xf32> to vector<6x1x8xf32>
    %220 = vector.broadcast %218 : vector<1x1x8xf32> to vector<6x1x8xf32>
    %221 = arith.mulf %219, %220 : vector<6x1x8xf32>
    %222 = vector.broadcast %221 : vector<6x1x8xf32> to vector<6x8x8xf32>
    %223 = arith.addf %216, %222 : vector<6x8x8xf32>
    %224 = vector.broadcast %15 : vector<6x1x1xf32> to vector<6x8x8xf32>
    %225 = arith.addf %223, %224 : vector<6x8x8xf32>
    %c0_73 = arith.constant 0 : index
    %c0_74 = arith.constant 0 : index
    %c0_75 = arith.constant 0 : index
    %226 = vector.load %arg5[%c0_73, %c0_74, %c0_75] : memref<6x8x8xf32, #tpu.memory_space<vmem>>, vector<6x8x8xf32>
    tpu.vector_store %arg5[%c0_73, %c0_74, %c0_75], %225 {strides = array<i32>} : memref<6x8x8xf32, #tpu.memory_space<vmem>>, vector<6x8x8xf32>,
    return
  }
}

</mosaic_0001>

<llo_original>
// kernel: eqmotion_forward.1
$region0: #{eqmotion_forward.1}
  #allocation0 [shape = 'u32[]', space=smem, size = 0x4, offset = 0x4, fixed_abs, tag = 'smem constant byte address 0x4 - core index']
  #allocation1 [shape = 'u32[144,128]{1,0:T(1,128)}', space=vmem, size = 0x12000, scoped, tag = 'internal scratch']
  %s0 = inlined_call_operand.vmem [shape: f32[16,16], index: 0, kind: input, shape index: {}]
  %s1 = inlined_call_operand.vmem [shape: f32[12,8,8], index: 1, kind: input, shape index: {}]
  %s2 = inlined_call_operand.vmem [shape: f32[256,32], index: 2, kind: input, shape index: {}]
  %s3 = inlined_call_operand.vmem [shape: f32[112,64], index: 3, kind: input, shape index: {}]
  %s4 = inlined_call_operand.vmem [shape: f32[56,128], index: 4, kind: input, shape index: {}]
  %s5 = inlined_call_operand.vmem [shape: f32[6,8,8], index: 5, kind: output, shape index: {0}]
  %s6 = inlined_call_operand.vmem [shape: f32[2,128], index: 6, kind: output, shape index: {1}]
  %7 = xla_tuple %s5, %s6
  %s8 = sld [smem:[#allocation0]]
  $region38: #{eqmotion_forward.1} parent=0
    _
  %s10 = ssub.s32 1, %s8
  %s11 = scalar_select 0, %s10, %s8
  // Predicated region
  $region2: #{eqmotion_forward.1} parent=0 // pred_check
    _
  $region3: #{eqmotion_forward.1} parent=0 // pred_check_branch
    %13 = sbr.rel (0) target = $region5
  $region4: #{eqmotion_forward.1} parent=0 // pred_region
    _
  $region5: #{eqmotion_forward.1} parent=0 // pred_fallthru
    _
  // Predicated region
  $region6: #{eqmotion_forward.1} parent=0 // pred_check
    _
  $region7: #{eqmotion_forward.1} parent=0 // pred_check_branch
    %15 = sbr.rel (0) target = $region9
  $region8: #{eqmotion_forward.1} parent=0 // pred_region
    _
  $region9: #{eqmotion_forward.1} parent=0 // pred_fallthru
    _
  // Predicated region
  $region10: #{eqmotion_forward.1} parent=0 // pred_check
    _
  $region11: #{eqmotion_forward.1} parent=0 // pred_check_branch
    %17 = sbr.rel (0) target = $region13
  $region12: #{eqmotion_forward.1} parent=0 // pred_region
    _
  $region13: #{eqmotion_forward.1} parent=0 // pred_fallthru
    _
  // Predicated region
  $region14: #{eqmotion_forward.1} parent=0 // pred_check
    _
  $region15: #{eqmotion_forward.1} parent=0 // pred_check_branch
    %19 = sbr.rel (0) target = $region17
  $region16: #{eqmotion_forward.1} parent=0 // pred_region
    _
  $region17: #{eqmotion_forward.1} parent=0 // pred_fallthru
    _
  // Predicated region
  $region18: #{eqmotion_forward.1} parent=0 // pred_check
    _
  $region19: #{eqmotion_forward.1} parent=0 // pred_check_branch
    %21 = sbr.rel (0) target = $region21
  $region20: #{eqmotion_forward.1} parent=0 // pred_region
    _
  $region21: #{eqmotion_forward.1} parent=0 // pred_fallthru
    _
  %v22 = vld [vmem:[%s0] sm:$0xff]
  %v23 = vld [vmem:[%s0 + $0x8] sm:$0xff]
  %v24 = vld [vmem:[%s2] sm:$0xff]
  %v25 = vld [vmem:[%s2 + $0x8] sm:$0xff]
  %v26 = vld [vmem:[%s2 + $0x10] sm:$0x1]
  %v27 = vlaneseq
  %v28 = vshrl.u32 %v27, 7
  %v29 = vsub.s32 0, %v28
  %v30 = vrot.slane %v26, %v29
  %vm31 = vcmask 130048
  %v33 = vsel %vm31, %v22, 0
  %v36 = vsel %vm31, %v23, 0
  %38 = vmatprep.subr.mxu0 0.0
  %39 = vmatpush1.msra.mxu0 %v24
  %40 = vmatprep.subr.mxu0 0.0
  %41 = vmatpush1.msra.mxu0 %v25
  %42 = vmatprep.subr.mxu0 0.0
  %43 = vmatpush1.msra.mxu0 0.0
  %44 = vmatprep.subr.mxu0 0.0
  %45 = vmatpush1.msra.mxu0 0.0
  %46 = vmatprep.subr.mxu0 0.0
  %47 = vmatpush1.msra.mxu0 0.0
  %48 = vmatprep.subr.mxu0 0.0
  %49 = vmatpush1.msra.mxu0 0.0
  %50 = vmatprep.subr.mxu0 0.0
  %51 = vmatpush1.msra.mxu0 0.0
  %52 = vmatprep.subr.mxu0 0.0
  %53 = vmatpush1.msra.mxu0 0.0
  %54 = vmatprep.subr.mxu0 0.0
  %55 = vmatpush1.msra.mxu0 0.0
  %56 = vmatprep.subr.mxu0 0.0
  %57 = vmatpush1.msra.mxu0 0.0
  %58 = vmatprep.subr.mxu0 0.0
  %59 = vmatpush1.msra.mxu0 0.0
  %60 = vmatprep.subr.mxu0 0.0
  %61 = vmatpush1.msra.mxu0 0.0
  %62 = vmatprep.subr.mxu0 0.0
  %63 = vmatpush1.msra.mxu0 0.0
  %64 = vmatprep.subr.mxu0 0.0
  %65 = vmatpush1.msra.mxu0 0.0
  %66 = vmatprep.subr.mxu0 0.0
  %67 = vmatpush1.msra.mxu0 0.0
  %68 = vmatprep.subr.mxu0 0.0
  %69 = vmatpush1.msra.mxu0 0.0
  %70 = vmatprep.subr.mxu0 0.0
  %71 = vmatpush1.msra.mxu0 0.0
  %72 = vmatprep.subr.mxu0 0.0
  %73 = vmatpush1.msra.mxu0 0.0
  %74 = vmatprep.subr.mxu0 0.0
  %75 = vmatpush1.msra.mxu0 0.0
  %76 = vmatprep.subr.mxu0 0.0
  %77 = vmatpush1.msra.mxu0 0.0
  %78 = vmatprep.subr.mxu0 0.0
  %79 = vmatpush1.msra.mxu0 0.0
  %80 = vmatprep.subr.mxu0 0.0
  %81 = vmatpush1.msra.mxu0 0.0
  %82 = vmatprep.subr.mxu0 0.0
  %83 = vmatpush1.msra.mxu0 0.0
  %84 = vmatprep.subr.mxu0 0.0
  %85 = vmatpush1.msra.mxu0 0.0
  %86 = vmatprep.subr.mxu0 0.0
  %87 = vmatpush1.msra.mxu0 0.0
  %88 = vmatprep.subr.mxu0 0.0
  %89 = vmatpush1.msra.mxu0 0.0
  %90 = vmatprep.subr.mxu0 0.0
  %91 = vmatpush1.msra.mxu0 0.0
  %92 = vmatprep.subr.mxu0 0.0
  %93 = vmatpush1.msra.mxu0 0.0
  %94 = vmatprep.subr.mxu0 0.0
  %95 = vmatpush1.msra.mxu0 0.0
  %96 = vmatprep.subr.mxu0 0.0
  %97 = vmatpush1.msra.mxu0 0.0
  %98 = vmatprep.subr.mxu0 0.0
  %99 = vmatpush1.msra.mxu0 0.0
  %100 = vmatprep.subr.mxu0 0.0
  %101 = vmatpush1.msra.mxu0 0.0
  %102 = vmatprep.mubr.f32.mxu0 0.0
  %103 = vmatmul.mubr.f32.gmra.mrb[0].mxu0 %v33
  %v104 = vpop.f32.mrb[0].mxu0
  %v105 = vadd.f32 %v30, %v104
  %v106 = vpop.f32.mrb[0].mxu0
  %107 = vmatprep.mubr.f32.mxu0 0.0
  %108 = vmatmul.mubr.f32.gmra.mrb[0].mxu0 %v36
  %v109 = vpop.f32.mrb[0].mxu0
  %v110 = vadd.f32 %v30, %v109
  %v111 = vpop.f32.mrb[0].mxu0
  %112 = vdwg.mxu0
  %v113 = vld [vmem:[%s1] sm:$0xff]
  %v114 = vld [vmem:[%s1 + $0x8] sm:$0xff]
  %v115 = vld [vmem:[%s1 + $0x10] sm:$0xff]
  %v116 = vld [vmem:[%s1 + $0x18] sm:$0xff]
  %v117 = vld [vmem:[%s1 + $0x20] sm:$0xff]
  %v118 = vld [vmem:[%s1 + $0x28] sm:$0xff]
  %v119 = vld [vmem:[%s1 + $0x30] sm:$0xff]
  %v120 = vld [vmem:[%s1 + $0x38] sm:$0xff]
  %v121 = vld [vmem:[%s1 + $0x40] sm:$0xff]
  %v122 = vld [vmem:[%s1 + $0x48] sm:$0xff]
  %v123 = vld [vmem:[%s1 + $0x50] sm:$0xff]
  %v124 = vld [vmem:[%s1 + $0x58] sm:$0xff]
  %vm125 = vcmask 64512
  %v126 = vsel %vm125, %v113, 0.0
  %127 = vadd.xlane.f32.xlu0 %v126
  %v128 = vpop.xlane.xlu0 %127
  %v129 = vsel %vm125, %v114, 0.0
  %130 = vadd.xlane.f32.xlu0 %v129
  %v131 = vpop.xlane.xlu0 %130
  %v132 = vsel %vm125, %v115, 0.0
  %133 = vadd.xlane.f32.xlu0 %v132
  %v134 = vpop.xlane.xlu0 %133
  %v135 = vsel %vm125, %v116, 0.0
  %136 = vadd.xlane.f32.xlu0 %v135
  %v137 = vpop.xlane.xlu0 %136
  %v138 = vsel %vm125, %v117, 0.0
  %139 = vadd.xlane.f32.xlu0 %v138
  %v140 = vpop.xlane.xlu0 %139
  %v141 = vsel %vm125, %v118, 0.0
  %142 = vadd.xlane.f32.xlu0 %v141
  %v143 = vpop.xlane.xlu0 %142
  %v144 = vrcp.pop 8.0
  %v145 = vmul.f32 %v128, %v144
  %v146 = vmul.f32 %v131, %v144
  %v147 = vmul.f32 %v134, %v144
  %v148 = vmul.f32 %v137, %v144
  %v149 = vmul.f32 %v140, %v144
  %v150 = vmul.f32 %v143, %v144
  %v151 = vrot.slane %v145, 4
  %v152 = vadd.f32 %v145, %v151
  %v153 = vrot.slane %v152, 2
  %v154 = vadd.f32 %v152, %v153
  %v155 = vrot.slane %v154, 1
  %v156 = vadd.f32 %v154, %v155
  %v157 = vrot.slane %v146, 4
  %v158 = vadd.f32 %v146, %v157
  %v159 = vrot.slane %v158, 2
  %v160 = vadd.f32 %v158, %v159
  %v161 = vrot.slane %v160, 1
  %v162 = vadd.f32 %v160, %v161
  %v163 = vrot.slane %v147, 4
  %v164 = vadd.f32 %v147, %v163
  %v165 = vrot.slane %v164, 2
  %v166 = vadd.f32 %v164, %v165
  %v167 = vrot.slane %v166, 1
  %v168 = vadd.f32 %v166, %v167
  %v169 = vrot.slane %v148, 4
  %v170 = vadd.f32 %v148, %v169
  %v171 = vrot.slane %v170, 2
  %v172 = vadd.f32 %v170, %v171
  %v173 = vrot.slane %v172, 1
  %v174 = vadd.f32 %v172, %v173
  %v175 = vrot.slane %v149, 4
  %v176 = vadd.f32 %v149, %v175
  %v177 = vrot.slane %v176, 2
  %v178 = vadd.f32 %v176, %v177
  %v179 = vrot.slane %v178, 1
  %v180 = vadd.f32 %v178, %v179
  %v181 = vrot.slane %v150, 4
  %v182 = vadd.f32 %v150, %v181
  %v183 = vrot.slane %v182, 2
  %v184 = vadd.f32 %v182, %v183
  %v185 = vrot.slane %v184, 1
  %v186 = vadd.f32 %v184, %v185
  %v187 = vmul.f32 %v156, %v144
  %v188 = vmul.f32 %v162, %v144
  %v189 = vmul.f32 %v168, %v144
  %v190 = vmul.f32 %v174, %v144
  %v191 = vmul.f32 %v180, %v144
  %v192 = vmul.f32 %v186, %v144
  %v193 = vld [vmem:[%s3 + $0x48] sm:$0xff]
  %v195 = vsel %vm125, %v113, 0
  %v198 = vsel %vm125, %v114, 0
  %v201 = vsel %vm125, %v115, 0
  %v204 = vsel %vm125, %v116, 0
  %v207 = vsel %vm125, %v117, 0
  %v210 = vsel %vm125, %v118, 0
  %v213 = vsel %vm125, %v119, 0
  %v216 = vsel %vm125, %v120, 0
  %v219 = vsel %vm125, %v121, 0
  %v222 = vsel %vm125, %v122, 0
  %v225 = vsel %vm125, %v123, 0
  %v228 = vsel %vm125, %v124, 0
  %230 = vmatprep.subr.mxu0 0.0
  %231 = vmatpush1.msra.mxu0 %v193
  %232 = vmatprep.subr.mxu0 0.0
  %233 = vmatpush1.msra.mxu0 0.0
  %234 = vmatprep.subr.mxu0 0.0
  %235 = vmatpush1.msra.mxu0 0.0
  %236 = vmatprep.subr.mxu0 0.0
  %237 = vmatpush1.msra.mxu0 0.0
  %238 = vmatprep.subr.mxu0 0.0
  %239 = vmatpush1.msra.mxu0 0.0
  %240 = vmatprep.subr.mxu0 0.0
  %241 = vmatpush1.msra.mxu0 0.0
  %242 = vmatprep.subr.mxu0 0.0
  %243 = vmatpush1.msra.mxu0 0.0
  %244 = vmatprep.subr.mxu0 0.0
  %245 = vmatpush1.msra.mxu0 0.0
  %246 = vmatprep.subr.mxu0 0.0
  %247 = vmatpush1.msra.mxu0 0.0
  %248 = vmatprep.subr.mxu0 0.0
  %249 = vmatpush1.msra.mxu0 0.0
  %250 = vmatprep.subr.mxu0 0.0
  %251 = vmatpush1.msra.mxu0 0.0
  %252 = vmatprep.subr.mxu0 0.0
  %253 = vmatpush1.msra.mxu0 0.0
  %254 = vmatprep.subr.mxu0 0.0
  %255 = vmatpush1.msra.mxu0 0.0
  %256 = vmatprep.subr.mxu0 0.0
  %257 = vmatpush1.msra.mxu0 0.0
  %258 = vmatprep.subr.mxu0 0.0
  %259 = vmatpush1.msra.mxu0 0.0
  %260 = vmatprep.subr.mxu0 0.0
  %261 = vmatpush1.msra.mxu0 0.0
  %262 = vmatprep.subr.mxu0 0.0
  %263 = vmatpush1.msra.mxu0 0.0
  %264 = vmatprep.subr.mxu0 0.0
  %265 = vmatpush1.msra.mxu0 0.0
  %266 = vmatprep.subr.mxu0 0.0
  %267 = vmatpush1.msra.mxu0 0.0
  %268 = vmatprep.subr.mxu0 0.0
  %269 = vmatpush1.msra.mxu0 0.0
  %270 = vmatprep.subr.mxu0 0.0
  %271 = vmatpush1.msra.mxu0 0.0
  %272 = vmatprep.subr.mxu0 0.0
  %273 = vmatpush1.msra.mxu0 0.0
  %274 = vmatprep.subr.mxu0 0.0
  %275 = vmatpush1.msra.mxu0 0.0
  %276 = vmatprep.subr.mxu0 0.0
  %277 = vmatpush1.msra.mxu0 0.0
  %278 = vmatprep.subr.mxu0 0.0
  %279 = vmatpush1.msra.mxu0 0.0
  %280 = vmatprep.subr.mxu0 0.0
  %281 = vmatpush1.msra.mxu0 0.0
  %282 = vmatprep.subr.mxu0 0.0
  %283 = vmatpush1.msra.mxu0 0.0
  %284 = vmatprep.subr.mxu0 0.0
  %285 = vmatpush1.msra.mxu0 0.0
  %286 = vmatprep.subr.mxu0 0.0
  %287 = vmatpush1.msra.mxu0 0.0
  %288 = vmatprep.subr.mxu0 0.0
  %289 = vmatpush1.msra.mxu0 0.0
  %290 = vmatprep.subr.mxu0 0.0
  %291 = vmatpush1.msra.mxu0 0.0
  %292 = vmatprep.subr.mxu0 0.0
  %293 = vmatpush1.msra.mxu0 0.0
  %294 = vmatprep.mubr.f32.mxu0 0.0
  %295 = vmatmul.mubr.f32.gmra.mrb[0].mxu0 %v195
  %v296 = vpop.f32.mrb[0].mxu0
  %v297 = vadd.f32 0.0, %v296
  %v298 = vpop.f32.mrb[0].mxu0
  %299 = vmatprep.mubr.f32.mxu0 0.0
  %300 = vmatmul.mubr.f32.gmra.mrb[0].mxu0 %v198
  %v301 = vpop.f32.mrb[0].mxu0
  %v302 = vadd.f32 0.0, %v301
  %v303 = vpop.f32.mrb[0].mxu0
  %304 = vmatprep.mubr.f32.mxu0 0.0
  %305 = vmatmul.mubr.f32.gmra.mrb[0].mxu0 %v201
  %v306 = vpop.f32.mrb[0].mxu0
  %v307 = vadd.f32 0.0, %v306
  %v308 = vpop.f32.mrb[0].mxu0
  %309 = vmatprep.mubr.f32.mxu0 0.0
  %310 = vmatmul.mubr.f32.gmra.mrb[0].mxu0 %v204
  %v311 = vpop.f32.mrb[0].mxu0
  %v312 = vadd.f32 0.0, %v311
  %v313 = vpop.f32.mrb[0].mxu0
  %314 = vmatprep.mubr.f32.mxu0 0.0
  %315 = vmatmul.mubr.f32.gmra.mrb[0].mxu0 %v207
  %v316 = vpop.f32.mrb[0].mxu0
  %v317 = vadd.f32 0.0, %v316
  %v318 = vpop.f32.mrb[0].mxu0
  %319 = vmatprep.mubr.f32.mxu0 0.0
  %320 = vmatmul.mubr.f32.gmra.mrb[0].mxu0 %v210
  %v321 = vpop.f32.mrb[0].mxu0
  %v322 = vadd.f32 0.0, %v321
  %v323 = vpop.f32.mrb[0].mxu0
  %324 = vmatprep.mubr.f32.mxu0 0.0
  %325 = vmatmul.mubr.f32.gmra.mrb[0].mxu0 %v213
  %v326 = vpop.f32.mrb[0].mxu0
  %v327 = vadd.f32 0.0, %v326
  %v328 = vpop.f32.mrb[0].mxu0
  %329 = vmatprep.mubr.f32.mxu0 0.0
  %330 = vmatmul.mubr.f32.gmra.mrb[0].mxu0 %v216
  %v331 = vpop.f32.mrb[0].mxu0
  %v332 = vadd.f32 0.0, %v331
  %v333 = vpop.f32.mrb[0].mxu0
  %334 = vmatprep.mubr.f32.mxu0 0.0
  %335 = vmatmul.mubr.f32.gmra.mrb[0].mxu0 %v219
  %v336 = vpop.f32.mrb[0].mxu0
  %v337 = vadd.f32 0.0, %v336
  %v338 = vpop.f32.mrb[0].mxu0
  %339 = vmatprep.mubr.f32.mxu0 0.0
  %340 = vmatmul.mubr.f32.gmra.mrb[0].mxu0 %v222
  %v341 = vpop.f32.mrb[0].mxu0
  %v342 = vadd.f32 0.0, %v341
  %v343 = vpop.f32.mrb[0].mxu0
  %344 = vmatprep.mubr.f32.mxu0 0.0
  %345 = vmatmul.mubr.f32.gmra.mrb[0].mxu0 %v225
  %v346 = vpop.f32.mrb[0].mxu0
  %v347 = vadd.f32 0.0, %v346
  %v348 = vpop.f32.mrb[0].mxu0
  %349 = vmatprep.mubr.f32.mxu0 0.0
  %350 = vmatmul.mubr.f32.gmra.mrb[0].mxu0 %v228
  %v351 = vpop.f32.mrb[0].mxu0
  %v352 = vadd.f32 0.0, %v351
  %v353 = vpop.f32.mrb[0].mxu0
  %354 = vdwg.mxu0
  %v355 = vld [vmem:[%s3 + $0x68] sm:$0x1]
  %v356 = vmul.f32 %v187, %v355
  %v357 = vmul.f32 %v188, %v355
  %v358 = vmul.f32 %v189, %v355
  %v359 = vmul.f32 %v190, %v355
  %v360 = vmul.f32 %v191, %v355
  %v361 = vmul.f32 %v192, %v355
  %v362 = vlaneseq
  %v363 = vshrl.u32 %v362, 7
  %v364 = vsub.s32 0, %v363
  %v365 = vrot.slane %v356, %v364
  %v366 = vlaneseq
  %v367 = vshrl.u32 %v366, 7
  %v368 = vsub.s32 0, %v367
  %v369 = vrot.slane %v357, %v368
  %v370 = vlaneseq
  %v371 = vshrl.u32 %v370, 7
  %v372 = vsub.s32 0, %v371
  %v373 = vrot.slane %v358, %v372
  %v374 = vlaneseq
  %v375 = vshrl.u32 %v374, 7
  %v376 = vsub.s32 0, %v375
  %v377 = vrot.slane %v359, %v376
  %v378 = vlaneseq
  %v379 = vshrl.u32 %v378, 7
  %v380 = vsub.s32 0, %v379
  %v381 = vrot.slane %v360, %v380
  %v382 = vlaneseq
  %v383 = vshrl.u32 %v382, 7
  %v384 = vsub.s32 0, %v383
  %v385 = vrot.slane %v361, %v384
  %v386 = vsub.f32 %v297, %v365
  %v387 = vsub.f32 %v302, %v369
  %v388 = vsub.f32 %v307, %v373
  %v389 = vsub.f32 %v312, %v377
  %v390 = vsub.f32 %v317, %v381
  %v391 = vsub.f32 %v322, %v385
  %v392 = vsel %vm125, %v386, 0.0
  %393 = vadd.xlane.f32.xlu0 %v392
  %v394 = vpop.xlane.xlu0 %393
  %v395 = vsel %vm125, %v387, 0.0
  %396 = vadd.xlane.f32.xlu0 %v395
  %v397 = vpop.xlane.xlu0 %396
  %v398 = vsel %vm125, %v388, 0.0
  %399 = vadd.xlane.f32.xlu0 %v398
  %v400 = vpop.xlane.xlu0 %399
  %v401 = vsel %vm125, %v389, 0.0
  %402 = vadd.xlane.f32.xlu0 %v401
  %v403 = vpop.xlane.xlu0 %402
  %v404 = vsel %vm125, %v390, 0.0
  %405 = vadd.xlane.f32.xlu0 %v404
  %v406 = vpop.xlane.xlu0 %405
  %v407 = vsel %vm125, %v391, 0.0
  %408 = vadd.xlane.f32.xlu0 %v407
  %v409 = vpop.xlane.xlu0 %408
  %v410 = vmul.f32 %v394, %v144
  %v411 = vmul.f32 %v397, %v144
  %v412 = vmul.f32 %v400, %v144
  %v413 = vmul.f32 %v403, %v144
  %v414 = vmul.f32 %v406, %v144
  %v415 = vmul.f32 %v409, %v144
  %v416 = vrot.slane %v410, 4
  %v417 = vadd.f32 %v410, %v416
  %v418 = vrot.slane %v417, 2
  %v419 = vadd.f32 %v417, %v418
  %v420 = vrot.slane %v419, 1
  %v421 = vadd.f32 %v419, %v420
  %v422 = vrot.slane %v411, 4
  %v423 = vadd.f32 %v411, %v422
  %v424 = vrot.slane %v423, 2
  %v425 = vadd.f32 %v423, %v424
  %v426 = vrot.slane %v425, 1
  %v427 = vadd.f32 %v425, %v426
  %v428 = vrot.slane %v412, 4
  %v429 = vadd.f32 %v412, %v428
  %v430 = vrot.slane %v429, 2
  %v431 = vadd.f32 %v429, %v430
  %v432 = vrot.slane %v431, 1
  %v433 = vadd.f32 %v431, %v432
  %v434 = vrot.slane %v413, 4
  %v435 = vadd.f32 %v413, %v434
  %v436 = vrot.slane %v435, 2
  %v437 = vadd.f32 %v435, %v436
  %v438 = vrot.slane %v437, 1
  %v439 = vadd.f32 %v437, %v438
  %v440 = vrot.slane %v414, 4
  %v441 = vadd.f32 %v414, %v440
  %v442 = vrot.slane %v441, 2
  %v443 = vadd.f32 %v441, %v442
  %v444 = vrot.slane %v443, 1
  %v445 = vadd.f32 %v443, %v444
  %v446 = vrot.slane %v415, 4
  %v447 = vadd.f32 %v415, %v446
  %v448 = vrot.slane %v447, 2
  %v449 = vadd.f32 %v447, %v448
  %v450 = vrot.slane %v449, 1
  %v451 = vadd.f32 %v449, %v450
  %v452 = vmul.f32 %v421, %v144
  %v453 = vmul.f32 %v427, %v144
  %v454 = vmul.f32 %v433, %v144
  %v455 = vmul.f32 %v439, %v144
  %v456 = vmul.f32 %v445, %v144
  %v457 = vmul.f32 %v451, %v144
  %464 = vrot.lane.b32.xlu0 %v327, 8
  %v465 = vpop.permute.xlu0 %464
  %466 = vrot.lane.b32.xlu0 %v332, 8
  %v467 = vpop.permute.xlu0 %466
  %468 = vrot.lane.b32.xlu0 %v337, 8
  %v469 = vpop.permute.xlu0 %468
  %470 = vrot.lane.b32.xlu0 %v342, 8
  %v471 = vpop.permute.xlu0 %470
  %472 = vrot.lane.b32.xlu0 %v347, 8
  %v473 = vpop.permute.xlu0 %472
  %474 = vrot.lane.b32.xlu0 %v352, 8
  %v475 = vpop.permute.xlu0 %474
  %v482 = vsel %vm125, %v386, %v465
  %v483 = vsel %vm125, %v387, %v467
  %v484 = vsel %vm125, %v388, %v469
  %v485 = vsel %vm125, %v389, %v471
  %v486 = vsel %vm125, %v390, %v473
  %v487 = vsel %vm125, %v391, %v475
  %v488 = vld [vmem:[%s2 + $0x18] sm:$0xff]
  %v489 = vld [vmem:[%s2 + $0x20] sm:$0xff]
  %v491 = vsel %vm31, %v482, 0
  %v494 = vsel %vm31, %v483, 0
  %v497 = vsel %vm31, %v484, 0
  %v500 = vsel %vm31, %v485, 0
  %v503 = vsel %vm31, %v486, 0
  %v506 = vsel %vm31, %v487, 0
  %508 = vmatprep.subr.mxu0 0.0
  %509 = vmatpush1.msra.mxu0 %v488
  %510 = vmatprep.subr.mxu0 0.0
  %511 = vmatpush1.msra.mxu0 %v489
  %512 = vmatprep.subr.mxu0 0.0
  %513 = vmatpush1.msra.mxu0 0.0
  %514 = vmatprep.subr.mxu0 0.0
  %515 = vmatpush1.msra.mxu0 0.0
  %516 = vmatprep.subr.mxu0 0.0
  %517 = vmatpush1.msra.mxu0 0.0
  %518 = vmatprep.subr.mxu0 0.0
  %519 = vmatpush1.msra.mxu0 0.0
  %520 = vmatprep.subr.mxu0 0.0
  %521 = vmatpush1.msra.mxu0 0.0
  %522 = vmatprep.subr.mxu0 0.0
  %523 = vmatpush1.msra.mxu0 0.0
  %524 = vmatprep.subr.mxu0 0.0
  %525 = vmatpush1.msra.mxu0 0.0
  %526 = vmatprep.subr.mxu0 0.0
  %527 = vmatpush1.msra.mxu0 0.0
  %528 = vmatprep.subr.mxu0 0.0
  %529 = vmatpush1.msra.mxu0 0.0
  %530 = vmatprep.subr.mxu0 0.0
  %531 = vmatpush1.msra.mxu0 0.0
  %532 = vmatprep.subr.mxu0 0.0
  %533 = vmatpush1.msra.mxu0 0.0
  %534 = vmatprep.subr.mxu0 0.0
  %535 = vmatpush1.msra.mxu0 0.0
  %536 = vmatprep.subr.mxu0 0.0
  %537 = vmatpush1.msra.mxu0 0.0
  %538 = vmatprep.subr.mxu0 0.0
  %539 = vmatpush1.msra.mxu0 0.0
  %540 = vmatprep.subr.mxu0 0.0
  %541 = vmatpush1.msra.mxu0 0.0
  %542 = vmatprep.subr.mxu0 0.0
  %543 = vmatpush1.msra.mxu0 0.0
  %544 = vmatprep.subr.mxu0 0.0
  %545 = vmatpush1.msra.mxu0 0.0
  %546 = vmatprep.subr.mxu0 0.0
  %547 = vmatpush1.msra.mxu0 0.0
  %548 = vmatprep.subr.mxu0 0.0
  %549 = vmatpush1.msra.mxu0 0.0
  %550 = vmatprep.subr.mxu0 0.0
  %551 = vmatpush1.msra.mxu0 0.0
  %552 = vmatprep.subr.mxu0 0.0
  %553 = vmatpush1.msra.mxu0 0.0
  %554 = vmatprep.subr.mxu0 0.0
  %555 = vmatpush1.msra.mxu0 0.0
  %556 = vmatprep.subr.mxu0 0.0
  %557 = vmatpush1.msra.mxu0 0.0
  %558 = vmatprep.subr.mxu0 0.0
  %559 = vmatpush1.msra.mxu0 0.0
  %560 = vmatprep.subr.mxu0 0.0
  %561 = vmatpush1.msra.mxu0 0.0
  %562 = vmatprep.subr.mxu0 0.0
  %563 = vmatpush1.msra.mxu0 0.0
  %564 = vmatprep.subr.mxu0 0.0
  %565 = vmatpush1.msra.mxu0 0.0
  %566 = vmatprep.subr.mxu0 0.0
  %567 = vmatpush1.msra.mxu0 0.0
  %568 = vmatprep.subr.mxu0 0.0
  %569 = vmatpush1.msra.mxu0 0.0
  %570 = vmatprep.subr.mxu0 0.0
  %571 = vmatpush1.msra.mxu0 0.0
  %572 = vmatprep.mubr.f32.mxu0 0.0
  %573 = vmatmul.mubr.f32.gmra.mrb[0].mxu0 %v491
  %v574 = vpop.f32.mrb[0].mxu0
  %v575 = vadd.f32 0.0, %v574
  %v576 = vpop.f32.mrb[0].mxu0
  %577 = vmatprep.mubr.f32.mxu0 0.0
  %578 = vmatmul.mubr.f32.gmra.mrb[0].mxu0 %v494
  %v579 = vpop.f32.mrb[0].mxu0
  %v580 = vadd.f32 0.0, %v579
  %v581 = vpop.f32.mrb[0].mxu0
  %582 = vmatprep.mubr.f32.mxu0 0.0
  %583 = vmatmul.mubr.f32.gmra.mrb[0].mxu0 %v497
  %v584 = vpop.f32.mrb[0].mxu0
  %v585 = vadd.f32 0.0, %v584
  %v586 = vpop.f32.mrb[0].mxu0
  %587 = vmatprep.mubr.f32.mxu0 0.0
  %588 = vmatmul.mubr.f32.gmra.mrb[0].mxu0 %v500
  %v589 = vpop.f32.mrb[0].mxu0
  %v590 = vadd.f32 0.0, %v589
  %v591 = vpop.f32.mrb[0].mxu0
  %592 = vmatprep.mubr.f32.mxu0 0.0
  %593 = vmatmul.mubr.f32.gmra.mrb[0].mxu0 %v503
  %v594 = vpop.f32.mrb[0].mxu0
  %v595 = vadd.f32 0.0, %v594
  %v596 = vpop.f32.mrb[0].mxu0
  %597 = vmatprep.mubr.f32.mxu0 0.0
  %598 = vmatmul.mubr.f32.gmra.mrb[0].mxu0 %v506
  %v599 = vpop.f32.mrb[0].mxu0
  %v600 = vadd.f32 0.0, %v599
  %v601 = vpop.f32.mrb[0].mxu0
  %602 = vdwg.mxu0
  %v603 = vld [vmem:[%s2 + $0x28] sm:$0x1]
  %v604 = vmul.f32 %v452, %v603
  %v605 = vmul.f32 %v453, %v603
  %v606 = vmul.f32 %v454, %v603
  %v607 = vmul.f32 %v455, %v603
  %v608 = vmul.f32 %v456, %v603
  %v609 = vmul.f32 %v457, %v603
  %v610 = vlaneseq
  %v611 = vshrl.u32 %v610, 7
  %v612 = vsub.s32 0, %v611
  %v613 = vrot.slane %v604, %v612
  %v614 = vlaneseq
  %v615 = vshrl.u32 %v614, 7
  %v616 = vsub.s32 0, %v615
  %v617 = vrot.slane %v605, %v616
  %v618 = vlaneseq
  %v619 = vshrl.u32 %v618, 7
  %v620 = vsub.s32 0, %v619
  %v621 = vrot.slane %v606, %v620
  %v622 = vlaneseq
  %v623 = vshrl.u32 %v622, 7
  %v624 = vsub.s32 0, %v623
  %v625 = vrot.slane %v607, %v624
  %v626 = vlaneseq
  %v627 = vshrl.u32 %v626, 7
  %v628 = vsub.s32 0, %v627
  %v629 = vrot.slane %v608, %v628
  %v630 = vlaneseq
  %v631 = vshrl.u32 %v630, 7
  %v632 = vsub.s32 0, %v631
  %v633 = vrot.slane %v609, %v632
  %v634 = vadd.f32 %v575, %v613
  %v635 = vadd.f32 %v580, %v617
  %v636 = vadd.f32 %v585, %v621
  %v637 = vadd.f32 %v590, %v625
  %v638 = vadd.f32 %v595, %v629
  %v639 = vadd.f32 %v600, %v633
  %v642 = vcombine.high %v634, %v634
  %v644 = vunpack.c.l.s4 1966171168
  %v645 = vunpack.c.0.s8 %v644
  %v646 = vlaneseq
  %v647 = vshrl.u32 %v646, 7
  %v648 = vsub.s32 %v645, %v647
  %v649 = vrot.slane %v634, %v648
  %v651 = vunpack.c.l.s4 1966171168
  %v652 = vunpack.c.0.s8 %v651
  %v653 = vlaneseq
  %v654 = vshrl.u32 %v653, 7
  %v655 = vsub.s32 %v652, %v654
  %v656 = vrot.slane %v642, %v655
  %v657 = vcombine.high %v649, %v649
  %v658 = vcombine.high %v656, %v656
  %v660 = vunpack.c.l.s4 1966171168
  %v661 = vunpack.c.0.s8 %v660
  %v662 = vlaneseq
  %v663 = vshrl.u32 %v662, 7
  %v664 = vsub.s32 %v661, %v663
  %v665 = vrot.slane %v649, %v664
  %v667 = vunpack.c.l.s4 1966171168
  %v668 = vunpack.c.0.s8 %v667
  %v669 = vlaneseq
  %v670 = vshrl.u32 %v669, 7
  %v671 = vsub.s32 %v668, %v670
  %v672 = vrot.slane %v656, %v671
  %v674 = vunpack.c.l.s4 1966171168
  %v675 = vunpack.c.0.s8 %v674
  %v676 = vlaneseq
  %v677 = vshrl.u32 %v676, 7
  %v678 = vsub.s32 %v675, %v677
  %v679 = vrot.slane %v657, %v678
  %v681 = vunpack.c.l.s4 1966171168
  %v682 = vunpack.c.0.s8 %v681
  %v683 = vlaneseq
  %v684 = vshrl.u32 %v683, 7
  %v685 = vsub.s32 %v682, %v684
  %v686 = vrot.slane %v658, %v685
  %v687 = vcombine.high %v665, %v665
  %v688 = vcombine.high %v672, %v672
  %v689 = vcombine.high %v679, %v679
  %v690 = vcombine.high %v686, %v686
  %v691 = vcombine.high %v635, %v635
  %v693 = vunpack.c.l.s4 1966171168
  %v694 = vunpack.c.0.s8 %v693
  %v695 = vlaneseq
  %v696 = vshrl.u32 %v695, 7
  %v697 = vsub.s32 %v694, %v696
  %v698 = vrot.slane %v635, %v697
  %v700 = vunpack.c.l.s4 1966171168
  %v701 = vunpack.c.0.s8 %v700
  %v702 = vlaneseq
  %v703 = vshrl.u32 %v702, 7
  %v704 = vsub.s32 %v701, %v703
  %v705 = vrot.slane %v691, %v704
  %v706 = vcombine.high %v698, %v698
  %v707 = vcombine.high %v705, %v705
  %v709 = vunpack.c.l.s4 1966171168
  %v710 = vunpack.c.0.s8 %v709
  %v711 = vlaneseq
  %v712 = vshrl.u32 %v711, 7
  %v713 = vsub.s32 %v710, %v712
  %v714 = vrot.slane %v698, %v713
  %v716 = vunpack.c.l.s4 1966171168
  %v717 = vunpack.c.0.s8 %v716
  %v718 = vlaneseq
  %v719 = vshrl.u32 %v718, 7
  %v720 = vsub.s32 %v717, %v719
  %v721 = vrot.slane %v705, %v720
  %v723 = vunpack.c.l.s4 1966171168
  %v724 = vunpack.c.0.s8 %v723
  %v725 = vlaneseq
  %v726 = vshrl.u32 %v725, 7
  %v727 = vsub.s32 %v724, %v726
  %v728 = vrot.slane %v706, %v727
  %v730 = vunpack.c.l.s4 1966171168
  %v731 = vunpack.c.0.s8 %v730
  %v732 = vlaneseq
  %v733 = vshrl.u32 %v732, 7
  %v734 = vsub.s32 %v731, %v733
  %v735 = vrot.slane %v707, %v734
  %v736 = vcombine.high %v714, %v714
  %v737 = vcombine.high %v721, %v721
  %v738 = vcombine.high %v728, %v728
  %v739 = vcombine.high %v735, %v735
  %v740 = vlaneseq
  %v741 = vshrl.u32 %v740, 7
  %v742 = vsub.s32 0, %v741
  %v743 = vrot.slane %v665, %v742
  %v744 = vlaneseq
  %v745 = vshrl.u32 %v744, 7
  %v746 = vsub.s32 0, %v745
  %v747 = vrot.slane %v679, %v746
  %v748 = vlaneseq
  %v749 = vshrl.u32 %v748, 7
  %v750 = vsub.s32 0, %v749
  %v751 = vrot.slane %v687, %v750
  %v752 = vlaneseq
  %v753 = vshrl.u32 %v752, 7
  %v754 = vsub.s32 0, %v753
  %v755 = vrot.slane %v689, %v754
  %v756 = vlaneseq
  %v757 = vshrl.u32 %v756, 7
  %v758 = vsub.s32 0, %v757
  %v759 = vrot.slane %v672, %v758
  %v760 = vlaneseq
  %v761 = vshrl.u32 %v760, 7
  %v762 = vsub.s32 0, %v761
  %v763 = vrot.slane %v686, %v762
  %v764 = vlaneseq
  %v765 = vshrl.u32 %v764, 7
  %v766 = vsub.s32 0, %v765
  %v767 = vrot.slane %v688, %v766
  %v768 = vlaneseq
  %v769 = vshrl.u32 %v768, 7
  %v770 = vsub.s32 0, %v769
  %v771 = vrot.slane %v690, %v770
  %v772 = vlaneseq
  %v773 = vshrl.u32 %v772, 7
  %v774 = vsub.s32 0, %v773
  %v775 = vrot.slane %v714, %v774
  %v776 = vlaneseq
  %v777 = vshrl.u32 %v776, 7
  %v778 = vsub.s32 0, %v777
  %v779 = vrot.slane %v728, %v778
  %v780 = vlaneseq
  %v781 = vshrl.u32 %v780, 7
  %v782 = vsub.s32 0, %v781
  %v783 = vrot.slane %v736, %v782
  %v784 = vlaneseq
  %v785 = vshrl.u32 %v784, 7
  %v786 = vsub.s32 0, %v785
  %v787 = vrot.slane %v738, %v786
  %v788 = vlaneseq
  %v789 = vshrl.u32 %v788, 7
  %v790 = vsub.s32 0, %v789
  %v791 = vrot.slane %v721, %v790
  %v792 = vlaneseq
  %v793 = vshrl.u32 %v792, 7
  %v794 = vsub.s32 0, %v793
  %v795 = vrot.slane %v735, %v794
  %v796 = vlaneseq
  %v797 = vshrl.u32 %v796, 7
  %v798 = vsub.s32 0, %v797
  %v799 = vrot.slane %v737, %v798
  %v800 = vlaneseq
  %v801 = vshrl.u32 %v800, 7
  %v802 = vsub.s32 0, %v801
  %v803 = vrot.slane %v739, %v802
  %v820 = vsub.f32 %v743, %v634
  %v821 = vsub.f32 %v747, %v634
  %v822 = vsub.f32 %v751, %v634
  %v823 = vsub.f32 %v755, %v634
  %v824 = vsub.f32 %v759, %v634
  %v825 = vsub.f32 %v763, %v634
  %v826 = vsub.f32 %v767, %v634
  %v827 = vsub.f32 %v771, %v634
  %v828 = vsub.f32 %v775, %v635
  %v829 = vsub.f32 %v779, %v635
  %v830 = vsub.f32 %v783, %v635
  %v831 = vsub.f32 %v787, %v635
  %v832 = vsub.f32 %v791, %v635
  %v833 = vsub.f32 %v795, %v635
  %v834 = vsub.f32 %v799, %v635
  %v835 = vsub.f32 %v803, %v635
  %v836 = vmul.f32 %v820, %v820
  %v837 = vmul.f32 %v821, %v821
  %v838 = vmul.f32 %v822, %v822
  %v839 = vmul.f32 %v823, %v823
  %v840 = vmul.f32 %v824, %v824
  %v841 = vmul.f32 %v825, %v825
  %v842 = vmul.f32 %v826, %v826
  %v843 = vmul.f32 %v827, %v827
  %v844 = vmul.f32 %v828, %v828
  %v845 = vmul.f32 %v829, %v829
  %v846 = vmul.f32 %v830, %v830
  %v847 = vmul.f32 %v831, %v831
  %v848 = vmul.f32 %v832, %v832
  %v849 = vmul.f32 %v833, %v833
  %v850 = vmul.f32 %v834, %v834
  %v851 = vmul.f32 %v835, %v835
  %v854 = vcombine.high %v636, %v636
  %v856 = vunpack.c.l.s4 1966171168
  %v857 = vunpack.c.0.s8 %v856
  %v858 = vlaneseq
  %v859 = vshrl.u32 %v858, 7
  %v860 = vsub.s32 %v857, %v859
  %v861 = vrot.slane %v636, %v860
  %v863 = vunpack.c.l.s4 1966171168
  %v864 = vunpack.c.0.s8 %v863
  %v865 = vlaneseq
  %v866 = vshrl.u32 %v865, 7
  %v867 = vsub.s32 %v864, %v866
  %v868 = vrot.slane %v854, %v867
  %v869 = vcombine.high %v861, %v861
  %v870 = vcombine.high %v868, %v868
  %v872 = vunpack.c.l.s4 1966171168
  %v873 = vunpack.c.0.s8 %v872
  %v874 = vlaneseq
  %v875 = vshrl.u32 %v874, 7
  %v876 = vsub.s32 %v873, %v875
  %v877 = vrot.slane %v861, %v876
  %v879 = vunpack.c.l.s4 1966171168
  %v880 = vunpack.c.0.s8 %v879
  %v881 = vlaneseq
  %v882 = vshrl.u32 %v881, 7
  %v883 = vsub.s32 %v880, %v882
  %v884 = vrot.slane %v868, %v883
  %v886 = vunpack.c.l.s4 1966171168
  %v887 = vunpack.c.0.s8 %v886
  %v888 = vlaneseq
  %v889 = vshrl.u32 %v888, 7
  %v890 = vsub.s32 %v887, %v889
  %v891 = vrot.slane %v869, %v890
  %v893 = vunpack.c.l.s4 1966171168
  %v894 = vunpack.c.0.s8 %v893
  %v895 = vlaneseq
  %v896 = vshrl.u32 %v895, 7
  %v897 = vsub.s32 %v894, %v896
  %v898 = vrot.slane %v870, %v897
  %v899 = vcombine.high %v877, %v877
  %v900 = vcombine.high %v884, %v884
  %v901 = vcombine.high %v891, %v891
  %v902 = vcombine.high %v898, %v898
  %v903 = vcombine.high %v637, %v637
  %v905 = vunpack.c.l.s4 1966171168
  %v906 = vunpack.c.0.s8 %v905
  %v907 = vlaneseq
  %v908 = vshrl.u32 %v907, 7
  %v909 = vsub.s32 %v906, %v908
  %v910 = vrot.slane %v637, %v909
  %v912 = vunpack.c.l.s4 1966171168
  %v913 = vunpack.c.0.s8 %v912
  %v914 = vlaneseq
  %v915 = vshrl.u32 %v914, 7
  %v916 = vsub.s32 %v913, %v915
  %v917 = vrot.slane %v903, %v916
  %v918 = vcombine.high %v910, %v910
  %v919 = vcombine.high %v917, %v917
  %v921 = vunpack.c.l.s4 1966171168
  %v922 = vunpack.c.0.s8 %v921
  %v923 = vlaneseq
  %v924 = vshrl.u32 %v923, 7
  %v925 = vsub.s32 %v922, %v924
  %v926 = vrot.slane %v910, %v925
  %v928 = vunpack.c.l.s4 1966171168
  %v929 = vunpack.c.0.s8 %v928
  %v930 = vlaneseq
  %v931 = vshrl.u32 %v930, 7
  %v932 = vsub.s32 %v929, %v931
  %v933 = vrot.slane %v917, %v932
  %v935 = vunpack.c.l.s4 1966171168
  %v936 = vunpack.c.0.s8 %v935
  %v937 = vlaneseq
  %v938 = vshrl.u32 %v937, 7
  %v939 = vsub.s32 %v936, %v938
  %v940 = vrot.slane %v918, %v939
  %v942 = vunpack.c.l.s4 1966171168
  %v943 = vunpack.c.0.s8 %v942
  %v944 = vlaneseq
  %v945 = vshrl.u32 %v944, 7
  %v946 = vsub.s32 %v943, %v945
  %v947 = vrot.slane %v919, %v946
  %v948 = vcombine.high %v926, %v926
  %v949 = vcombine.high %v933, %v933
  %v950 = vcombine.high %v940, %v940
  %v951 = vcombine.high %v947, %v947
  %v952 = vlaneseq
  %v953 = vshrl.u32 %v952, 7
  %v954 = vsub.s32 0, %v953
  %v955 = vrot.slane %v877, %v954
  %v956 = vlaneseq
  %v957 = vshrl.u32 %v956, 7
  %v958 = vsub.s32 0, %v957
  %v959 = vrot.slane %v891, %v958
  %v960 = vlaneseq
  %v961 = vshrl.u32 %v960, 7
  %v962 = vsub.s32 0, %v961
  %v963 = vrot.slane %v899, %v962
  %v964 = vlaneseq
  %v965 = vshrl.u32 %v964, 7
  %v966 = vsub.s32 0, %v965
  %v967 = vrot.slane %v901, %v966
  %v968 = vlaneseq
  %v969 = vshrl.u32 %v968, 7
  %v970 = vsub.s32 0, %v969
  %v971 = vrot.slane %v884, %v970
  %v972 = vlaneseq
  %v973 = vshrl.u32 %v972, 7
  %v974 = vsub.s32 0, %v973
  %v975 = vrot.slane %v898, %v974
  %v976 = vlaneseq
  %v977 = vshrl.u32 %v976, 7
  %v978 = vsub.s32 0, %v977
  %v979 = vrot.slane %v900, %v978
  %v980 = vlaneseq
  %v981 = vshrl.u32 %v980, 7
  %v982 = vsub.s32 0, %v981
  %v983 = vrot.slane %v902, %v982
  %v984 = vlaneseq
  %v985 = vshrl.u32 %v984, 7
  %v986 = vsub.s32 0, %v985
  %v987 = vrot.slane %v926, %v986
  %v988 = vlaneseq
  %v989 = vshrl.u32 %v988, 7
  %v990 = vsub.s32 0, %v989
  %v991 = vrot.slane %v940, %v990
  %v992 = vlaneseq
  %v993 = vshrl.u32 %v992, 7
  %v994 = vsub.s32 0, %v993
  %v995 = vrot.slane %v948, %v994
  %v996 = vlaneseq
  %v997 = vshrl.u32 %v996, 7
  %v998 = vsub.s32 0, %v997
  %v999 = vrot.slane %v950, %v998
  %v1000 = vlaneseq
  %v1001 = vshrl.u32 %v1000, 7
  %v1002 = vsub.s32 0, %v1001
  %v1003 = vrot.slane %v933, %v1002
  %v1004 = vlaneseq
  %v1005 = vshrl.u32 %v1004, 7
  %v1006 = vsub.s32 0, %v1005
  %v1007 = vrot.slane %v947, %v1006
  %v1008 = vlaneseq
  %v1009 = vshrl.u32 %v1008, 7
  %v1010 = vsub.s32 0, %v1009
  %v1011 = vrot.slane %v949, %v1010
  %v1012 = vlaneseq
  %v1013 = vshrl.u32 %v1012, 7
  %v1014 = vsub.s32 0, %v1013
  %v1015 = vrot.slane %v951, %v1014
  %v1032 = vsub.f32 %v955, %v636
  %v1033 = vsub.f32 %v959, %v636
  %v1034 = vsub.f32 %v963, %v636
  %v1035 = vsub.f32 %v967, %v636
  %v1036 = vsub.f32 %v971, %v636
  %v1037 = vsub.f32 %v975, %v636
  %v1038 = vsub.f32 %v979, %v636
  %v1039 = vsub.f32 %v983, %v636
  %v1040 = vsub.f32 %v987, %v637
  %v1041 = vsub.f32 %v991, %v637
  %v1042 = vsub.f32 %v995, %v637
  %v1043 = vsub.f32 %v999, %v637
  %v1044 = vsub.f32 %v1003, %v637
  %v1045 = vsub.f32 %v1007, %v637
  %v1046 = vsub.f32 %v1011, %v637
  %v1047 = vsub.f32 %v1015, %v637
  %v1048 = vmul.f32 %v1032, %v1032
  %v1049 = vmul.f32 %v1033, %v1033
  %v1050 = vmul.f32 %v1034, %v1034
  %v1051 = vmul.f32 %v1035, %v1035
  %v1052 = vmul.f32 %v1036, %v1036
  %v1053 = vmul.f32 %v1037, %v1037
  %v1054 = vmul.f32 %v1038, %v1038
  %v1055 = vmul.f32 %v1039, %v1039
  %v1056 = vmul.f32 %v1040, %v1040
  %v1057 = vmul.f32 %v1041, %v1041
  %v1058 = vmul.f32 %v1042, %v1042
  %v1059 = vmul.f32 %v1043, %v1043
  %v1060 = vmul.f32 %v1044, %v1044
  %v1061 = vmul.f32 %v1045, %v1045
  %v1062 = vmul.f32 %v1046, %v1046
  %v1063 = vmul.f32 %v1047, %v1047
  %v1064 = vadd.f32 %v836, %v1048
  %v1065 = vadd.f32 %v837, %v1049
  %v1066 = vadd.f32 %v838, %v1050
  %v1067 = vadd.f32 %v839, %v1051
  %v1068 = vadd.f32 %v840, %v1052
  %v1069 = vadd.f32 %v841, %v1053
  %v1070 = vadd.f32 %v842, %v1054
  %v1071 = vadd.f32 %v843, %v1055
  %v1072 = vadd.f32 %v844, %v1056
  %v1073 = vadd.f32 %v845, %v1057
  %v1074 = vadd.f32 %v846, %v1058
  %v1075 = vadd.f32 %v847, %v1059
  %v1076 = vadd.f32 %v848, %v1060
  %v1077 = vadd.f32 %v849, %v1061
  %v1078 = vadd.f32 %v850, %v1062
  %v1079 = vadd.f32 %v851, %v1063
  %v1082 = vcombine.high %v638, %v638
  %v1084 = vunpack.c.l.s4 1966171168
  %v1085 = vunpack.c.0.s8 %v1084
  %v1086 = vlaneseq
  %v1087 = vshrl.u32 %v1086, 7
  %v1088 = vsub.s32 %v1085, %v1087
  %v1089 = vrot.slane %v638, %v1088
  %v1091 = vunpack.c.l.s4 1966171168
  %v1092 = vunpack.c.0.s8 %v1091
  %v1093 = vlaneseq
  %v1094 = vshrl.u32 %v1093, 7
  %v1095 = vsub.s32 %v1092, %v1094
  %v1096 = vrot.slane %v1082, %v1095
  %v1097 = vcombine.high %v1089, %v1089
  %v1098 = vcombine.high %v1096, %v1096
  %v1100 = vunpack.c.l.s4 1966171168
  %v1101 = vunpack.c.0.s8 %v1100
  %v1102 = vlaneseq
  %v1103 = vshrl.u32 %v1102, 7
  %v1104 = vsub.s32 %v1101, %v1103
  %v1105 = vrot.slane %v1089, %v1104
  %v1107 = vunpack.c.l.s4 1966171168
  %v1108 = vunpack.c.0.s8 %v1107
  %v1109 = vlaneseq
  %v1110 = vshrl.u32 %v1109, 7
  %v1111 = vsub.s32 %v1108, %v1110
  %v1112 = vrot.slane %v1096, %v1111
  %v1114 = vunpack.c.l.s4 1966171168
  %v1115 = vunpack.c.0.s8 %v1114
  %v1116 = vlaneseq
  %v1117 = vshrl.u32 %v1116, 7
  %v1118 = vsub.s32 %v1115, %v1117
  %v1119 = vrot.slane %v1097, %v1118
  %v1121 = vunpack.c.l.s4 1966171168
  %v1122 = vunpack.c.0.s8 %v1121
  %v1123 = vlaneseq
  %v1124 = vshrl.u32 %v1123, 7
  %v1125 = vsub.s32 %v1122, %v1124
  %v1126 = vrot.slane %v1098, %v1125
  %v1127 = vcombine.high %v1105, %v1105
  %v1128 = vcombine.high %v1112, %v1112
  %v1129 = vcombine.high %v1119, %v1119
  %v1130 = vcombine.high %v1126, %v1126
  %v1131 = vcombine.high %v639, %v639
  %v1133 = vunpack.c.l.s4 1966171168
  %v1134 = vunpack.c.0.s8 %v1133
  %v1135 = vlaneseq
  %v1136 = vshrl.u32 %v1135, 7
  %v1137 = vsub.s32 %v1134, %v1136
  %v1138 = vrot.slane %v639, %v1137
  %v1140 = vunpack.c.l.s4 1966171168
  %v1141 = vunpack.c.0.s8 %v1140
  %v1142 = vlaneseq
  %v1143 = vshrl.u32 %v1142, 7
  %v1144 = vsub.s32 %v1141, %v1143
  %v1145 = vrot.slane %v1131, %v1144
  %v1146 = vcombine.high %v1138, %v1138
  %v1147 = vcombine.high %v1145, %v1145
  %v1149 = vunpack.c.l.s4 1966171168
  %v1150 = vunpack.c.0.s8 %v1149
  %v1151 = vlaneseq
  %v1152 = vshrl.u32 %v1151, 7
  %v1153 = vsub.s32 %v1150, %v1152
  %v1154 = vrot.slane %v1138, %v1153
  %v1156 = vunpack.c.l.s4 1966171168
  %v1157 = vunpack.c.0.s8 %v1156
  %v1158 = vlaneseq
  %v1159 = vshrl.u32 %v1158, 7
  %v1160 = vsub.s32 %v1157, %v1159
  %v1161 = vrot.slane %v1145, %v1160
  %v1163 = vunpack.c.l.s4 1966171168
  %v1164 = vunpack.c.0.s8 %v1163
  %v1165 = vlaneseq
  %v1166 = vshrl.u32 %v1165, 7
  %v1167 = vsub.s32 %v1164, %v1166
  %v1168 = vrot.slane %v1146, %v1167
  %v1170 = vunpack.c.l.s4 1966171168
  %v1171 = vunpack.c.0.s8 %v1170
  %v1172 = vlaneseq
  %v1173 = vshrl.u32 %v1172, 7
  %v1174 = vsub.s32 %v1171, %v1173
  %v1175 = vrot.slane %v1147, %v1174
  %v1176 = vcombine.high %v1154, %v1154
  %v1177 = vcombine.high %v1161, %v1161
  %v1178 = vcombine.high %v1168, %v1168
  %v1179 = vcombine.high %v1175, %v1175
  %v1180 = vlaneseq
  %v1181 = vshrl.u32 %v1180, 7
  %v1182 = vsub.s32 0, %v1181
  %v1183 = vrot.slane %v1105, %v1182
  %v1184 = vlaneseq
  %v1185 = vshrl.u32 %v1184, 7
  %v1186 = vsub.s32 0, %v1185
  %v1187 = vrot.slane %v1119, %v1186
  %v1188 = vlaneseq
  %v1189 = vshrl.u32 %v1188, 7
  %v1190 = vsub.s32 0, %v1189
  %v1191 = vrot.slane %v1127, %v1190
  %v1192 = vlaneseq
  %v1193 = vshrl.u32 %v1192, 7
  %v1194 = vsub.s32 0, %v1193
  %v1195 = vrot.slane %v1129, %v1194
  %v1196 = vlaneseq
  %v1197 = vshrl.u32 %v1196, 7
  %v1198 = vsub.s32 0, %v1197
  %v1199 = vrot.slane %v1112, %v1198
  %v1200 = vlaneseq
  %v1201 = vshrl.u32 %v1200, 7
  %v1202 = vsub.s32 0, %v1201
  %v1203 = vrot.slane %v1126, %v1202
  %v1204 = vlaneseq
  %v1205 = vshrl.u32 %v1204, 7
  %v1206 = vsub.s32 0, %v1205
  %v1207 = vrot.slane %v1128, %v1206
  %v1208 = vlaneseq
  %v1209 = vshrl.u32 %v1208, 7
  %v1210 = vsub.s32 0, %v1209
  %v1211 = vrot.slane %v1130, %v1210
  %v1212 = vlaneseq
  %v1213 = vshrl.u32 %v1212, 7
  %v1214 = vsub.s32 0, %v1213
  %v1215 = vrot.slane %v1154, %v1214
  %v1216 = vlaneseq
  %v1217 = vshrl.u32 %v1216, 7
  %v1218 = vsub.s32 0, %v1217
  %v1219 = vrot.slane %v1168, %v1218
  %v1220 = vlaneseq
  %v1221 = vshrl.u32 %v1220, 7
  %v1222 = vsub.s32 0, %v1221
  %v1223 = vrot.slane %v1176, %v1222
  %v1224 = vlaneseq
  %v1225 = vshrl.u32 %v1224, 7
  %v1226 = vsub.s32 0, %v1225
  %v1227 = vrot.slane %v1178, %v1226
  %v1228 = vlaneseq
  %v1229 = vshrl.u32 %v1228, 7
  %v1230 = vsub.s32 0, %v1229
  %v1231 = vrot.slane %v1161, %v1230
  %v1232 = vlaneseq
  %v1233 = vshrl.u32 %v1232, 7
  %v1234 = vsub.s32 0, %v1233
  %v1235 = vrot.slane %v1175, %v1234
  %v1236 = vlaneseq
  %v1237 = vshrl.u32 %v1236, 7
  %v1238 = vsub.s32 0, %v1237
  %v1239 = vrot.slane %v1177, %v1238
  %v1240 = vlaneseq
  %v1241 = vshrl.u32 %v1240, 7
  %v1242 = vsub.s32 0, %v1241
  %v1243 = vrot.slane %v1179, %v1242
  %v1260 = vsub.f32 %v1183, %v638
  %v1261 = vsub.f32 %v1187, %v638
  %v1262 = vsub.f32 %v1191, %v638
  %v1263 = vsub.f32 %v1195, %v638
  %v1264 = vsub.f32 %v1199, %v638
  %v1265 = vsub.f32 %v1203, %v638
  %v1266 = vsub.f32 %v1207, %v638
  %v1267 = vsub.f32 %v1211, %v638
  %v1268 = vsub.f32 %v1215, %v639
  %v1269 = vsub.f32 %v1219, %v639
  %v1270 = vsub.f32 %v1223, %v639
  %v1271 = vsub.f32 %v1227, %v639
  %v1272 = vsub.f32 %v1231, %v639
  %v1273 = vsub.f32 %v1235, %v639
  %v1274 = vsub.f32 %v1239, %v639
  %v1275 = vsub.f32 %v1243, %v639
  %v1276 = vmul.f32 %v1260, %v1260
  %v1277 = vmul.f32 %v1261, %v1261
  %v1278 = vmul.f32 %v1262, %v1262
  %v1279 = vmul.f32 %v1263, %v1263
  %v1280 = vmul.f32 %v1264, %v1264
  %v1281 = vmul.f32 %v1265, %v1265
  %v1282 = vmul.f32 %v1266, %v1266
  %v1283 = vmul.f32 %v1267, %v1267
  %v1284 = vmul.f32 %v1268, %v1268
  %v1285 = vmul.f32 %v1269, %v1269
  %v1286 = vmul.f32 %v1270, %v1270
  %v1287 = vmul.f32 %v1271, %v1271
  %v1288 = vmul.f32 %v1272, %v1272
  %v1289 = vmul.f32 %v1273, %v1273
  %v1290 = vmul.f32 %v1274, %v1274
  %v1291 = vmul.f32 %v1275, %v1275
  %v1292 = vadd.f32 %v1064, %v1276
  %v1293 = vadd.f32 %v1065, %v1277
  %v1294 = vadd.f32 %v1066, %v1278
  %v1295 = vadd.f32 %v1067, %v1279
  %v1296 = vadd.f32 %v1068, %v1280
  %v1297 = vadd.f32 %v1069, %v1281
  %v1298 = vadd.f32 %v1070, %v1282
  %v1299 = vadd.f32 %v1071, %v1283
  %v1300 = vadd.f32 %v1072, %v1284
  %v1301 = vadd.f32 %v1073, %v1285
  %v1302 = vadd.f32 %v1074, %v1286
  %v1303 = vadd.f32 %v1075, %v1287
  %v1304 = vadd.f32 %v1076, %v1288
  %v1305 = vadd.f32 %v1077, %v1289
  %v1306 = vadd.f32 %v1078, %v1290
  %v1307 = vadd.f32 %v1079, %v1291
  %v1308 = vrsqrt.pop %v1292
  %v1309 = vmul.f32 %v1292, %v1308
  %vm1310 = vcmp.eq.f32.partialorder %v1292, inf
  %v1311 = vsel %vm1310, %v1292, %v1309
  %vm1312 = vcmp.eq.f32.partialorder %v1292, 0.0
  %v1313 = vand.u32 %v1292, 2147483648
  %v1314 = vsel %vm1312, %v1313, %v1311
  %v1315 = vrsqrt.pop %v1293
  %v1316 = vmul.f32 %v1293, %v1315
  %vm1317 = vcmp.eq.f32.partialorder %v1293, inf
  %v1318 = vsel %vm1317, %v1293, %v1316
  %vm1319 = vcmp.eq.f32.partialorder %v1293, 0.0
  %v1320 = vand.u32 %v1293, 2147483648
  %v1321 = vsel %vm1319, %v1320, %v1318
  %v1322 = vrsqrt.pop %v1294
  %v1323 = vmul.f32 %v1294, %v1322
  %vm1324 = vcmp.eq.f32.partialorder %v1294, inf
  %v1325 = vsel %vm1324, %v1294, %v1323
  %vm1326 = vcmp.eq.f32.partialorder %v1294, 0.0
  %v1327 = vand.u32 %v1294, 2147483648
  %v1328 = vsel %vm1326, %v1327, %v1325
  %v1329 = vrsqrt.pop %v1295
  %v1330 = vmul.f32 %v1295, %v1329
  %vm1331 = vcmp.eq.f32.partialorder %v1295, inf
  %v1332 = vsel %vm1331, %v1295, %v1330
  %vm1333 = vcmp.eq.f32.partialorder %v1295, 0.0
  %v1334 = vand.u32 %v1295, 2147483648
  %v1335 = vsel %vm1333, %v1334, %v1332
  %v1336 = vrsqrt.pop %v1296
  %v1337 = vmul.f32 %v1296, %v1336
  %vm1338 = vcmp.eq.f32.partialorder %v1296, inf
  %v1339 = vsel %vm1338, %v1296, %v1337
  %vm1340 = vcmp.eq.f32.partialorder %v1296, 0.0
  %v1341 = vand.u32 %v1296, 2147483648
  %v1342 = vsel %vm1340, %v1341, %v1339
  %v1343 = vrsqrt.pop %v1297
  %v1344 = vmul.f32 %v1297, %v1343
  %vm1345 = vcmp.eq.f32.partialorder %v1297, inf
  %v1346 = vsel %vm1345, %v1297, %v1344
  %vm1347 = vcmp.eq.f32.partialorder %v1297, 0.0
  %v1348 = vand.u32 %v1297, 2147483648
  %v1349 = vsel %vm1347, %v1348, %v1346
  %v1350 = vrsqrt.pop %v1298
  %v1351 = vmul.f32 %v1298, %v1350
  %vm1352 = vcmp.eq.f32.partialorder %v1298, inf
  %v1353 = vsel %vm1352, %v1298, %v1351
  %vm1354 = vcmp.eq.f32.partialorder %v1298, 0.0
  %v1355 = vand.u32 %v1298, 2147483648
  %v1356 = vsel %vm1354, %v1355, %v1353
  %v1357 = vrsqrt.pop %v1299
  %v1358 = vmul.f32 %v1299, %v1357
  %vm1359 = vcmp.eq.f32.partialorder %v1299, inf
  %v1360 = vsel %vm1359, %v1299, %v1358
  %vm1361 = vcmp.eq.f32.partialorder %v1299, 0.0
  %v1362 = vand.u32 %v1299, 2147483648
  %v1363 = vsel %vm1361, %v1362, %v1360
  %v1364 = vrsqrt.pop %v1300
  %v1365 = vmul.f32 %v1300, %v1364
  %vm1366 = vcmp.eq.f32.partialorder %v1300, inf
  %v1367 = vsel %vm1366, %v1300, %v1365
  %vm1368 = vcmp.eq.f32.partialorder %v1300, 0.0
  %v1369 = vand.u32 %v1300, 2147483648
  %v1370 = vsel %vm1368, %v1369, %v1367
  %v1371 = vrsqrt.pop %v1301
  %v1372 = vmul.f32 %v1301, %v1371
  %vm1373 = vcmp.eq.f32.partialorder %v1301, inf
  %v1374 = vsel %vm1373, %v1301, %v1372
  %vm1375 = vcmp.eq.f32.partialorder %v1301, 0.0
  %v1376 = vand.u32 %v1301, 2147483648
  %v1377 = vsel %vm1375, %v1376, %v1374
  %v1378 = vrsqrt.pop %v1302
  %v1379 = vmul.f32 %v1302, %v1378
  %vm1380 = vcmp.eq.f32.partialorder %v1302, inf
  %v1381 = vsel %vm1380, %v1302, %v1379
  %vm1382 = vcmp.eq.f32.partialorder %v1302, 0.0
  %v1383 = vand.u32 %v1302, 2147483648
  %v1384 = vsel %vm1382, %v1383, %v1381
  %v1385 = vrsqrt.pop %v1303
  %v1386 = vmul.f32 %v1303, %v1385
  %vm1387 = vcmp.eq.f32.partialorder %v1303, inf
  %v1388 = vsel %vm1387, %v1303, %v1386
  %vm1389 = vcmp.eq.f32.partialorder %v1303, 0.0
  %v1390 = vand.u32 %v1303, 2147483648
  %v1391 = vsel %vm1389, %v1390, %v1388
  %v1392 = vrsqrt.pop %v1304
  %v1393 = vmul.f32 %v1304, %v1392
  %vm1394 = vcmp.eq.f32.partialorder %v1304, inf
  %v1395 = vsel %vm1394, %v1304, %v1393
  %vm1396 = vcmp.eq.f32.partialorder %v1304, 0.0
  %v1397 = vand.u32 %v1304, 2147483648
  %v1398 = vsel %vm1396, %v1397, %v1395
  %v1399 = vrsqrt.pop %v1305
  %v1400 = vmul.f32 %v1305, %v1399
  %vm1401 = vcmp.eq.f32.partialorder %v1305, inf
  %v1402 = vsel %vm1401, %v1305, %v1400
  %vm1403 = vcmp.eq.f32.partialorder %v1305, 0.0
  %v1404 = vand.u32 %v1305, 2147483648
  %v1405 = vsel %vm1403, %v1404, %v1402
  %v1406 = vrsqrt.pop %v1306
  %v1407 = vmul.f32 %v1306, %v1406
  %vm1408 = vcmp.eq.f32.partialorder %v1306, inf
  %v1409 = vsel %vm1408, %v1306, %v1407
  %vm1410 = vcmp.eq.f32.partialorder %v1306, 0.0
  %v1411 = vand.u32 %v1306, 2147483648
  %v1412 = vsel %vm1410, %v1411, %v1409
  %v1413 = vrsqrt.pop %v1307
  %v1414 = vmul.f32 %v1307, %v1413
  %vm1415 = vcmp.eq.f32.partialorder %v1307, inf
  %v1416 = vsel %vm1415, %v1307, %v1414
  %vm1417 = vcmp.eq.f32.partialorder %v1307, 0.0
  %v1418 = vand.u32 %v1307, 2147483648
  %v1419 = vsel %vm1417, %v1418, %v1416
  %v1420 = vld [vmem:[%s2 + $0x30] sm:$0xff]
  %v1421 = vld [vmem:[%s2 + $0x38] sm:$0xff]
  %v1422 = vld [vmem:[%s2 + $0x40] sm:$0xff]
  %v1423 = vld [vmem:[%s2 + $0x48] sm:$0xff]
  %v1424 = vld [vmem:[%s2 + $0x50] sm:$0x1]
  %v1425 = vlaneseq
  %v1426 = vshrl.u32 %v1425, 7
  %v1427 = vsub.s32 0, %v1426
  %v1428 = vrot.slane %v1424, %v1427
  %vm1429 = vcmask 261120
  %v1431 = vsel %vm1429, %v1314, 0
  %v1434 = vsel %vm1429, %v1321, 0
  %v1437 = vsel %vm1429, %v1328, 0
  %v1440 = vsel %vm1429, %v1335, 0
  %v1443 = vsel %vm1429, %v1342, 0
  %v1446 = vsel %vm1429, %v1349, 0
  %v1449 = vsel %vm1429, %v1356, 0
  %v1452 = vsel %vm1429, %v1363, 0
  %v1455 = vsel %vm1429, %v1370, 0
  %v1458 = vsel %vm1429, %v1377, 0
  %v1461 = vsel %vm1429, %v1384, 0
  %v1464 = vsel %vm1429, %v1391, 0
  %v1467 = vsel %vm1429, %v1398, 0
  %v1470 = vsel %vm1429, %v1405, 0
  %v1473 = vsel %vm1429, %v1412, 0
  %v1476 = vsel %vm1429, %v1419, 0
  %1478 = vmatprep.subr.mxu0 0.0
  %1479 = vmatpush1.msra.mxu0 %v1420
  %1480 = vmatprep.subr.mxu0 0.0
  %1481 = vmatpush1.msra.mxu0 %v1421
  %1482 = vmatprep.subr.mxu0 0.0
  %1483 = vmatpush1.msra.mxu0 %v1422
  %1484 = vmatprep.subr.mxu0 0.0
  %1485 = vmatpush1.msra.mxu0 %v1423
  %1486 = vmatprep.subr.mxu0 0.0
  %1487 = vmatpush1.msra.mxu0 0.0
  %1488 = vmatprep.subr.mxu0 0.0
  %1489 = vmatpush1.msra.mxu0 0.0
  %1490 = vmatprep.subr.mxu0 0.0
  %1491 = vmatpush1.msra.mxu0 0.0
  %1492 = vmatprep.subr.mxu0 0.0
  %1493 = vmatpush1.msra.mxu0 0.0
  %1494 = vmatprep.subr.mxu0 0.0
  %1495 = vmatpush1.msra.mxu0 0.0
  %1496 = vmatprep.subr.mxu0 0.0
  %1497 = vmatpush1.msra.mxu0 0.0
  %1498 = vmatprep.subr.mxu0 0.0
  %1499 = vmatpush1.msra.mxu0 0.0
  %1500 = vmatprep.subr.mxu0 0.0
  %1501 = vmatpush1.msra.mxu0 0.0
  %1502 = vmatprep.subr.mxu0 0.0
  %1503 = vmatpush1.msra.mxu0 0.0
  %1504 = vmatprep.subr.mxu0 0.0
  %1505 = vmatpush1.msra.mxu0 0.0
  %1506 = vmatprep.subr.mxu0 0.0
  %1507 = vmatpush1.msra.mxu0 0.0
  %1508 = vmatprep.subr.mxu0 0.0
  %1509 = vmatpush1.msra.mxu0 0.0
  %1510 = vmatprep.subr.mxu0 0.0
  %1511 = vmatpush1.msra.mxu0 0.0
  %1512 = vmatprep.subr.mxu0 0.0
  %1513 = vmatpush1.msra.mxu0 0.0
  %1514 = vmatprep.subr.mxu0 0.0
  %1515 = vmatpush1.msra.mxu0 0.0
  %1516 = vmatprep.subr.mxu0 0.0
  %1517 = vmatpush1.msra.mxu0 0.0
  %1518 = vmatprep.subr.mxu0 0.0
  %1519 = vmatpush1.msra.mxu0 0.0
  %1520 = vmatprep.subr.mxu0 0.0
  %1521 = vmatpush1.msra.mxu0 0.0
  %1522 = vmatprep.subr.mxu0 0.0
  %1523 = vmatpush1.msra.mxu0 0.0
  %1524 = vmatprep.subr.mxu0 0.0
  %1525 = vmatpush1.msra.mxu0 0.0
  %1526 = vmatprep.subr.mxu0 0.0
  %1527 = vmatpush1.msra.mxu0 0.0
  %1528 = vmatprep.subr.mxu0 0.0
  %1529 = vmatpush1.msra.mxu0 0.0
  %1530 = vmatprep.subr.mxu0 0.0
  %1531 = vmatpush1.msra.mxu0 0.0
  %1532 = vmatprep.subr.mxu0 0.0
  %1533 = vmatpush1.msra.mxu0 0.0
  %1534 = vmatprep.subr.mxu0 0.0
  %1535 = vmatpush1.msra.mxu0 0.0
  %1536 = vmatprep.subr.mxu0 0.0
  %1537 = vmatpush1.msra.mxu0 0.0
  %1538 = vmatprep.subr.mxu0 0.0
  %1539 = vmatpush1.msra.mxu0 0.0
  %1540 = vmatprep.subr.mxu0 0.0
  %1541 = vmatpush1.msra.mxu0 0.0
  %1542 = vmatprep.mubr.f32.mxu0 0.0
  %1543 = vmatmul.mubr.f32.gmra.mrb[0].mxu0 %v1431
  %v1544 = vpop.f32.mrb[0].mxu0
  %v1545 = vadd.f32 %v1428, %v1544
  %v1546 = vpop.f32.mrb[0].mxu0
  %1547 = vmatprep.mubr.f32.mxu0 0.0
  %1548 = vmatmul.mubr.f32.gmra.mrb[0].mxu0 %v1434
  %v1549 = vpop.f32.mrb[0].mxu0
  %v1550 = vadd.f32 %v1428, %v1549
  %v1551 = vpop.f32.mrb[0].mxu0
  %1552 = vmatprep.mubr.f32.mxu0 0.0
  %1553 = vmatmul.mubr.f32.gmra.mrb[0].mxu0 %v1437
  %v1554 = vpop.f32.mrb[0].mxu0
  %v1555 = vadd.f32 %v1428, %v1554
  %v1556 = vpop.f32.mrb[0].mxu0
  %1557 = vmatprep.mubr.f32.mxu0 0.0
  %1558 = vmatmul.mubr.f32.gmra.mrb[0].mxu0 %v1440
  %v1559 = vpop.f32.mrb[0].mxu0
  %v1560 = vadd.f32 %v1428, %v1559
  %v1561 = vpop.f32.mrb[0].mxu0
  %1562 = vmatprep.mubr.f32.mxu0 0.0
  %1563 = vmatmul.mubr.f32.gmra.mrb[0].mxu0 %v1443
  %v1564 = vpop.f32.mrb[0].mxu0
  %v1565 = vadd.f32 %v1428, %v1564
  %v1566 = vpop.f32.mrb[0].mxu0
  %1567 = vmatprep.mubr.f32.mxu0 0.0
  %1568 = vmatmul.mubr.f32.gmra.mrb[0].mxu0 %v1446
  %v1569 = vpop.f32.mrb[0].mxu0
  %v1570 = vadd.f32 %v1428, %v1569
  %v1571 = vpop.f32.mrb[0].mxu0
  %1572 = vmatprep.mubr.f32.mxu0 0.0
  %1573 = vmatmul.mubr.f32.gmra.mrb[0].mxu0 %v1449
  %v1574 = vpop.f32.mrb[0].mxu0
  %v1575 = vadd.f32 %v1428, %v1574
  %v1576 = vpop.f32.mrb[0].mxu0
  %1577 = vmatprep.mubr.f32.mxu0 0.0
  %1578 = vmatmul.mubr.f32.gmra.mrb[0].mxu0 %v1452
  %v1579 = vpop.f32.mrb[0].mxu0
  %v1580 = vadd.f32 %v1428, %v1579
  %v1581 = vpop.f32.mrb[0].mxu0
  %1582 = vmatprep.mubr.f32.mxu0 0.0
  %1583 = vmatmul.mubr.f32.gmra.mrb[0].mxu0 %v1455
  %v1584 = vpop.f32.mrb[0].mxu0
  %v1585 = vadd.f32 %v1428, %v1584
  %v1586 = vpop.f32.mrb[0].mxu0
  %1587 = vmatprep.mubr.f32.mxu0 0.0
  %1588 = vmatmul.mubr.f32.gmra.mrb[0].mxu0 %v1458
  %v1589 = vpop.f32.mrb[0].mxu0
  %v1590 = vadd.f32 %v1428, %v1589
  %v1591 = vpop.f32.mrb[0].mxu0
  %1592 = vmatprep.mubr.f32.mxu0 0.0
  %1593 = vmatmul.mubr.f32.gmra.mrb[0].mxu0 %v1461
  %v1594 = vpop.f32.mrb[0].mxu0
  %v1595 = vadd.f32 %v1428, %v1594
  %v1596 = vpop.f32.mrb[0].mxu0
  %1597 = vmatprep.mubr.f32.mxu0 0.0
  %1598 = vmatmul.mubr.f32.gmra.mrb[0].mxu0 %v1464
  %v1599 = vpop.f32.mrb[0].mxu0
  %v1600 = vadd.f32 %v1428, %v1599
  %v1601 = vpop.f32.mrb[0].mxu0
  %1602 = vmatprep.mubr.f32.mxu0 0.0
  %1603 = vmatmul.mubr.f32.gmra.mrb[0].mxu0 %v1467
  %v1604 = vpop.f32.mrb[0].mxu0
  %v1605 = vadd.f32 %v1428, %v1604
  %v1606 = vpop.f32.mrb[0].mxu0
  %1607 = vmatprep.mubr.f32.mxu0 0.0
  %1608 = vmatmul.mubr.f32.gmra.mrb[0].mxu0 %v1470
  %v1609 = vpop.f32.mrb[0].mxu0
  %v1610 = vadd.f32 %v1428, %v1609
  %v1611 = vpop.f32.mrb[0].mxu0
  %1612 = vmatprep.mubr.f32.mxu0 0.0
  %1613 = vmatmul.mubr.f32.gmra.mrb[0].mxu0 %v1473
  %v1614 = vpop.f32.mrb[0].mxu0
  %v1615 = vadd.f32 %v1428, %v1614
  %v1616 = vpop.f32.mrb[0].mxu0
  %1617 = vmatprep.mubr.f32.mxu0 0.0
  %1618 = vmatmul.mubr.f32.gmra.mrb[0].mxu0 %v1476
  %v1619 = vpop.f32.mrb[0].mxu0
  %v1620 = vadd.f32 %v1428, %v1619
  %v1621 = vpop.f32.mrb[0].mxu0
  %1622 = vdwg.mxu0
  %v1623 = vxor.u32 %v1545, 2147483648
  %v1624 = vxor.u32 %v1550, 2147483648
  %v1625 = vxor.u32 %v1555, 2147483648
  %v1626 = vxor.u32 %v1560, 2147483648
  %v1627 = vxor.u32 %v1565, 2147483648
  %v1628 = vxor.u32 %v1570, 2147483648
  %v1629 = vxor.u32 %v1575, 2147483648
  %v1630 = vxor.u32 %v1580, 2147483648
  %v1631 = vxor.u32 %v1585, 2147483648
  %v1632 = vxor.u32 %v1590, 2147483648
  %v1633 = vxor.u32 %v1595, 2147483648
  %v1634 = vxor.u32 %v1600, 2147483648
  %v1635 = vxor.u32 %v1605, 2147483648
  %v1636 = vxor.u32 %v1610, 2147483648
  %v1637 = vxor.u32 %v1615, 2147483648
  %v1638 = vxor.u32 %v1620, 2147483648
  %v1639 = vmul.f32 %v1623, 1.442695
  %v1640 = vpow.pop %v1639
  %v1641 = vmul.f32 %v1624, 1.442695
  %v1642 = vpow.pop %v1641
  %v1643 = vmul.f32 %v1625, 1.442695
  %v1644 = vpow.pop %v1643
  %v1645 = vmul.f32 %v1626, 1.442695
  %v1646 = vpow.pop %v1645
  %v1647 = vmul.f32 %v1627, 1.442695
  %v1648 = vpow.pop %v1647
  %v1649 = vmul.f32 %v1628, 1.442695
  %v1650 = vpow.pop %v1649
  %v1651 = vmul.f32 %v1629, 1.442695
  %v1652 = vpow.pop %v1651
  %v1653 = vmul.f32 %v1630, 1.442695
  %v1654 = vpow.pop %v1653
  %v1655 = vmul.f32 %v1631, 1.442695
  %v1656 = vpow.pop %v1655
  %v1657 = vmul.f32 %v1632, 1.442695
  %v1658 = vpow.pop %v1657
  %v1659 = vmul.f32 %v1633, 1.442695
  %v1660 = vpow.pop %v1659
  %v1661 = vmul.f32 %v1634, 1.442695
  %v1662 = vpow.pop %v1661
  %v1663 = vmul.f32 %v1635, 1.442695
  %v1664 = vpow.pop %v1663
  %v1665 = vmul.f32 %v1636, 1.442695
  %v1666 = vpow.pop %v1665
  %v1667 = vmul.f32 %v1637, 1.442695
  %v1668 = vpow.pop %v1667
  %v1669 = vmul.f32 %v1638, 1.442695
  %v1670 = vpow.pop %v1669
  %v1671 = vadd.f32 %v1640, 1.0
  %v1672 = vadd.f32 %v1642, 1.0
  %v1673 = vadd.f32 %v1644, 1.0
  %v1674 = vadd.f32 %v1646, 1.0
  %v1675 = vadd.f32 %v1648, 1.0
  %v1676 = vadd.f32 %v1650, 1.0
  %v1677 = vadd.f32 %v1652, 1.0
  %v1678 = vadd.f32 %v1654, 1.0
  %v1679 = vadd.f32 %v1656, 1.0
  %v1680 = vadd.f32 %v1658, 1.0
  %v1681 = vadd.f32 %v1660, 1.0
  %v1682 = vadd.f32 %v1662, 1.0
  %v1683 = vadd.f32 %v1664, 1.0
  %v1684 = vadd.f32 %v1666, 1.0
  %v1685 = vadd.f32 %v1668, 1.0
  %v1686 = vadd.f32 %v1670, 1.0
  %v1687 = vrcp.pop %v1671
  %v1688 = vmul.f32 1.0, %v1687
  %v1689 = vrcp.pop %v1672
  %v1690 = vmul.f32 1.0, %v1689
  %v1691 = vrcp.pop %v1673
  %v1692 = vmul.f32 1.0, %v1691
  %v1693 = vrcp.pop %v1674
  %v1694 = vmul.f32 1.0, %v1693
  %v1695 = vrcp.pop %v1675
  %v1696 = vmul.f32 1.0, %v1695
  %v1697 = vrcp.pop %v1676
  %v1698 = vmul.f32 1.0, %v1697
  %v1699 = vrcp.pop %v1677
  %v1700 = vmul.f32 1.0, %v1699
  %v1701 = vrcp.pop %v1678
  %v1702 = vmul.f32 1.0, %v1701
  %v1703 = vrcp.pop %v1679
  %v1704 = vmul.f32 1.0, %v1703
  %v1705 = vrcp.pop %v1680
  %v1706 = vmul.f32 1.0, %v1705
  %v1707 = vrcp.pop %v1681
  %v1708 = vmul.f32 1.0, %v1707
  %v1709 = vrcp.pop %v1682
  %v1710 = vmul.f32 1.0, %v1709
  %v1711 = vrcp.pop %v1683
  %v1712 = vmul.f32 1.0, %v1711
  %v1713 = vrcp.pop %v1684
  %v1714 = vmul.f32 1.0, %v1713
  %v1715 = vrcp.pop %v1685
  %v1716 = vmul.f32 1.0, %v1715
  %v1717 = vrcp.pop %v1686
  %v1718 = vmul.f32 1.0, %v1717
  %v1719 = vmul.f32 %v1545, %v1688
  %v1720 = vmul.f32 %v1550, %v1690
  %v1721 = vmul.f32 %v1555, %v1692
  %v1722 = vmul.f32 %v1560, %v1694
  %v1723 = vmul.f32 %v1565, %v1696
  %v1724 = vmul.f32 %v1570, %v1698
  %v1725 = vmul.f32 %v1575, %v1700
  %v1726 = vmul.f32 %v1580, %v1702
  %v1727 = vmul.f32 %v1585, %v1704
  %v1728 = vmul.f32 %v1590, %v1706
  %v1729 = vmul.f32 %v1595, %v1708
  %v1730 = vmul.f32 %v1600, %v1710
  %v1731 = vmul.f32 %v1605, %v1712
  %v1732 = vmul.f32 %v1610, %v1714
  %v1733 = vmul.f32 %v1615, %v1716
  %v1734 = vmul.f32 %v1620, %v1718
  %v1735 = vld [vmem:[%s2 + $0x58] sm:$0xff]
  %v1736 = vld [vmem:[%s2 + $0x60] sm:$0xff]
  %v1737 = vld [vmem:[%s2 + $0x68] sm:$0xff]
  %v1738 = vld [vmem:[%s2 + $0x70] sm:$0xff]
  %v1739 = vld [vmem:[%s2 + $0x78] sm:$0x1]
  %v1740 = vlaneseq
  %v1741 = vshrl.u32 %v1740, 7
  %v1742 = vsub.s32 0, %v1741
  %v1743 = vrot.slane %v1739, %v1742
  %v1745 = vsel %vm1429, %v1719, 0
  %v1748 = vsel %vm1429, %v1720, 0
  %v1751 = vsel %vm1429, %v1721, 0
  %v1754 = vsel %vm1429, %v1722, 0
  %v1757 = vsel %vm1429, %v1723, 0
  %v1760 = vsel %vm1429, %v1724, 0
  %v1763 = vsel %vm1429, %v1725, 0
  %v1766 = vsel %vm1429, %v1726, 0
  %v1769 = vsel %vm1429, %v1727, 0
  %v1772 = vsel %vm1429, %v1728, 0
  %v1775 = vsel %vm1429, %v1729, 0
  %v1778 = vsel %vm1429, %v1730, 0
  %v1781 = vsel %vm1429, %v1731, 0
  %v1784 = vsel %vm1429, %v1732, 0
  %v1787 = vsel %vm1429, %v1733, 0
  %v1790 = vsel %vm1429, %v1734, 0
  %1792 = vmatprep.subr.mxu0 0.0
  %1793 = vmatpush1.msra.mxu0 %v1735
  %1794 = vmatprep.subr.mxu0 0.0
  %1795 = vmatpush1.msra.mxu0 %v1736
  %1796 = vmatprep.subr.mxu0 0.0
  %1797 = vmatpush1.msra.mxu0 %v1737
  %1798 = vmatprep.subr.mxu0 0.0
  %1799 = vmatpush1.msra.mxu0 %v1738
  %1800 = vmatprep.subr.mxu0 0.0
  %1801 = vmatpush1.msra.mxu0 0.0
  %1802 = vmatprep.subr.mxu0 0.0
  %1803 = vmatpush1.msra.mxu0 0.0
  %1804 = vmatprep.subr.mxu0 0.0
  %1805 = vmatpush1.msra.mxu0 0.0
  %1806 = vmatprep.subr.mxu0 0.0
  %1807 = vmatpush1.msra.mxu0 0.0
  %1808 = vmatprep.subr.mxu0 0.0
  %1809 = vmatpush1.msra.mxu0 0.0
  %1810 = vmatprep.subr.mxu0 0.0
  %1811 = vmatpush1.msra.mxu0 0.0
  %1812 = vmatprep.subr.mxu0 0.0
  %1813 = vmatpush1.msra.mxu0 0.0
  %1814 = vmatprep.subr.mxu0 0.0
  %1815 = vmatpush1.msra.mxu0 0.0
  %1816 = vmatprep.subr.mxu0 0.0
  %1817 = vmatpush1.msra.mxu0 0.0
  %1818 = vmatprep.subr.mxu0 0.0
  %1819 = vmatpush1.msra.mxu0 0.0
  %1820 = vmatprep.subr.mxu0 0.0
  %1821 = vmatpush1.msra.mxu0 0.0
  %1822 = vmatprep.subr.mxu0 0.0
  %1823 = vmatpush1.msra.mxu0 0.0
  %1824 = vmatprep.subr.mxu0 0.0
  %1825 = vmatpush1.msra.mxu0 0.0
  %1826 = vmatprep.subr.mxu0 0.0
  %1827 = vmatpush1.msra.mxu0 0.0
  %1828 = vmatprep.subr.mxu0 0.0
  %1829 = vmatpush1.msra.mxu0 0.0
  %1830 = vmatprep.subr.mxu0 0.0
  %1831 = vmatpush1.msra.mxu0 0.0
  %1832 = vmatprep.subr.mxu0 0.0
  %1833 = vmatpush1.msra.mxu0 0.0
  %1834 = vmatprep.subr.mxu0 0.0
  %1835 = vmatpush1.msra.mxu0 0.0
  %1836 = vmatprep.subr.mxu0 0.0
  %1837 = vmatpush1.msra.mxu0 0.0
  %1838 = vmatprep.subr.mxu0 0.0
  %1839 = vmatpush1.msra.mxu0 0.0
  %1840 = vmatprep.subr.mxu0 0.0
  %1841 = vmatpush1.msra.mxu0 0.0
  %1842 = vmatprep.subr.mxu0 0.0
  %1843 = vmatpush1.msra.mxu0 0.0
  %1844 = vmatprep.subr.mxu0 0.0
  %1845 = vmatpush1.msra.mxu0 0.0
  %1846 = vmatprep.subr.mxu0 0.0
  %1847 = vmatpush1.msra.mxu0 0.0
  %1848 = vmatprep.subr.mxu0 0.0
  %1849 = vmatpush1.msra.mxu0 0.0
  %1850 = vmatprep.subr.mxu0 0.0
  %1851 = vmatpush1.msra.mxu0 0.0
  %1852 = vmatprep.subr.mxu0 0.0
  %1853 = vmatpush1.msra.mxu0 0.0
  %1854 = vmatprep.subr.mxu0 0.0
  %1855 = vmatpush1.msra.mxu0 0.0
  %1856 = vmatprep.mubr.f32.mxu0 0.0
  %1857 = vmatmul.mubr.f32.gmra.mrb[0].mxu0 %v1745
  %v1858 = vpop.f32.mrb[0].mxu0
  %v1859 = vadd.f32 %v1743, %v1858
  %v1860 = vpop.f32.mrb[0].mxu0
  %1861 = vmatprep.mubr.f32.mxu0 0.0
  %1862 = vmatmul.mubr.f32.gmra.mrb[0].mxu0 %v1748
  %v1863 = vpop.f32.mrb[0].mxu0
  %v1864 = vadd.f32 %v1743, %v1863
  %v1865 = vpop.f32.mrb[0].mxu0
  %1866 = vmatprep.mubr.f32.mxu0 0.0
  %1867 = vmatmul.mubr.f32.gmra.mrb[0].mxu0 %v1751
  %v1868 = vpop.f32.mrb[0].mxu0
  %v1869 = vadd.f32 %v1743, %v1868
  %v1870 = vpop.f32.mrb[0].mxu0
  %1871 = vmatprep.mubr.f32.mxu0 0.0
  %1872 = vmatmul.mubr.f32.gmra.mrb[0].mxu0 %v1754
  %v1873 = vpop.f32.mrb[0].mxu0
  %v1874 = vadd.f32 %v1743, %v1873
  %v1875 = vpop.f32.mrb[0].mxu0
  %1876 = vmatprep.mubr.f32.mxu0 0.0
  %1877 = vmatmul.mubr.f32.gmra.mrb[0].mxu0 %v1757
  %v1878 = vpop.f32.mrb[0].mxu0
  %v1879 = vadd.f32 %v1743, %v1878
  %v1880 = vpop.f32.mrb[0].mxu0
  %1881 = vmatprep.mubr.f32.mxu0 0.0
  %1882 = vmatmul.mubr.f32.gmra.mrb[0].mxu0 %v1760
  %v1883 = vpop.f32.mrb[0].mxu0
  %v1884 = vadd.f32 %v1743, %v1883
  %v1885 = vpop.f32.mrb[0].mxu0
  %1886 = vmatprep.mubr.f32.mxu0 0.0
  %1887 = vmatmul.mubr.f32.gmra.mrb[0].mxu0 %v1763
  %v1888 = vpop.f32.mrb[0].mxu0
  %v1889 = vadd.f32 %v1743, %v1888
  %v1890 = vpop.f32.mrb[0].mxu0
  %1891 = vmatprep.mubr.f32.mxu0 0.0
  %1892 = vmatmul.mubr.f32.gmra.mrb[0].mxu0 %v1766
  %v1893 = vpop.f32.mrb[0].mxu0
  %v1894 = vadd.f32 %v1743, %v1893
  %v1895 = vpop.f32.mrb[0].mxu0
  %1896 = vmatprep.mubr.f32.mxu0 0.0
  %1897 = vmatmul.mubr.f32.gmra.mrb[0].mxu0 %v1769
  %v1898 = vpop.f32.mrb[0].mxu0
  %v1899 = vadd.f32 %v1743, %v1898
  %v1900 = vpop.f32.mrb[0].mxu0
  %1901 = vmatprep.mubr.f32.mxu0 0.0
  %1902 = vmatmul.mubr.f32.gmra.mrb[0].mxu0 %v1772
  %v1903 = vpop.f32.mrb[0].mxu0
  %v1904 = vadd.f32 %v1743, %v1903
  %v1905 = vpop.f32.mrb[0].mxu0
  %1906 = vmatprep.mubr.f32.mxu0 0.0
  %1907 = vmatmul.mubr.f32.gmra.mrb[0].mxu0 %v1775
  %v1908 = vpop.f32.mrb[0].mxu0
  %v1909 = vadd.f32 %v1743, %v1908
  %v1910 = vpop.f32.mrb[0].mxu0
  %1911 = vmatprep.mubr.f32.mxu0 0.0
  %1912 = vmatmul.mubr.f32.gmra.mrb[0].mxu0 %v1778
  %v1913 = vpop.f32.mrb[0].mxu0
  %v1914 = vadd.f32 %v1743, %v1913
  %v1915 = vpop.f32.mrb[0].mxu0
  %1916 = vmatprep.mubr.f32.mxu0 0.0
  %1917 = vmatmul.mubr.f32.gmra.mrb[0].mxu0 %v1781
  %v1918 = vpop.f32.mrb[0].mxu0
  %v1919 = vadd.f32 %v1743, %v1918
  %v1920 = vpop.f32.mrb[0].mxu0
  %1921 = vmatprep.mubr.f32.mxu0 0.0
  %1922 = vmatmul.mubr.f32.gmra.mrb[0].mxu0 %v1784
  %v1923 = vpop.f32.mrb[0].mxu0
  %v1924 = vadd.f32 %v1743, %v1923
  %v1925 = vpop.f32.mrb[0].mxu0
  %1926 = vmatprep.mubr.f32.mxu0 0.0
  %1927 = vmatmul.mubr.f32.gmra.mrb[0].mxu0 %v1787
  %v1928 = vpop.f32.mrb[0].mxu0
  %v1929 = vadd.f32 %v1743, %v1928
  %v1930 = vpop.f32.mrb[0].mxu0
  %1931 = vmatprep.mubr.f32.mxu0 0.0
  %1932 = vmatmul.mubr.f32.gmra.mrb[0].mxu0 %v1790
  %v1933 = vpop.f32.mrb[0].mxu0
  %v1934 = vadd.f32 %v1743, %v1933
  %v1935 = vpop.f32.mrb[0].mxu0
  %1936 = vdwg.mxu0
  %v1937 = vxor.u32 %v1859, 2147483648
  %v1938 = vxor.u32 %v1864, 2147483648
  %v1939 = vxor.u32 %v1869, 2147483648
  %v1940 = vxor.u32 %v1874, 2147483648
  %v1941 = vxor.u32 %v1879, 2147483648
  %v1942 = vxor.u32 %v1884, 2147483648
  %v1943 = vxor.u32 %v1889, 2147483648
  %v1944 = vxor.u32 %v1894, 2147483648
  %v1945 = vxor.u32 %v1899, 2147483648
  %v1946 = vxor.u32 %v1904, 2147483648
  %v1947 = vxor.u32 %v1909, 2147483648
  %v1948 = vxor.u32 %v1914, 2147483648
  %v1949 = vxor.u32 %v1919, 2147483648
  %v1950 = vxor.u32 %v1924, 2147483648
  %v1951 = vxor.u32 %v1929, 2147483648
  %v1952 = vxor.u32 %v1934, 2147483648
  %v1953 = vmul.f32 %v1937, 1.442695
  %v1954 = vpow.pop %v1953
  %v1955 = vmul.f32 %v1938, 1.442695
  %v1956 = vpow.pop %v1955
  %v1957 = vmul.f32 %v1939, 1.442695
  %v1958 = vpow.pop %v1957
  %v1959 = vmul.f32 %v1940, 1.442695
  %v1960 = vpow.pop %v1959
  %v1961 = vmul.f32 %v1941, 1.442695
  %v1962 = vpow.pop %v1961
  %v1963 = vmul.f32 %v1942, 1.442695
  %v1964 = vpow.pop %v1963
  %v1965 = vmul.f32 %v1943, 1.442695
  %v1966 = vpow.pop %v1965
  %v1967 = vmul.f32 %v1944, 1.442695
  %v1968 = vpow.pop %v1967
  %v1969 = vmul.f32 %v1945, 1.442695
  %v1970 = vpow.pop %v1969
  %v1971 = vmul.f32 %v1946, 1.442695
  %v1972 = vpow.pop %v1971
  %v1973 = vmul.f32 %v1947, 1.442695
  %v1974 = vpow.pop %v1973
  %v1975 = vmul.f32 %v1948, 1.442695
  %v1976 = vpow.pop %v1975
  %v1977 = vmul.f32 %v1949, 1.442695
  %v1978 = vpow.pop %v1977
  %v1979 = vmul.f32 %v1950, 1.442695
  %v1980 = vpow.pop %v1979
  %v1981 = vmul.f32 %v1951, 1.442695
  %v1982 = vpow.pop %v1981
  %v1983 = vmul.f32 %v1952, 1.442695
  %v1984 = vpow.pop %v1983
  %v1985 = vadd.f32 %v1954, 1.0
  %v1986 = vadd.f32 %v1956, 1.0
  %v1987 = vadd.f32 %v1958, 1.0
  %v1988 = vadd.f32 %v1960, 1.0
  %v1989 = vadd.f32 %v1962, 1.0
  %v1990 = vadd.f32 %v1964, 1.0
  %v1991 = vadd.f32 %v1966, 1.0
  %v1992 = vadd.f32 %v1968, 1.0
  %v1993 = vadd.f32 %v1970, 1.0
  %v1994 = vadd.f32 %v1972, 1.0
  %v1995 = vadd.f32 %v1974, 1.0
  %v1996 = vadd.f32 %v1976, 1.0
  %v1997 = vadd.f32 %v1978, 1.0
  %v1998 = vadd.f32 %v1980, 1.0
  %v1999 = vadd.f32 %v1982, 1.0
  %v2000 = vadd.f32 %v1984, 1.0
  %v2001 = vrcp.pop %v1985
  %v2002 = vmul.f32 1.0, %v2001
  %v2003 = vrcp.pop %v1986
  %v2004 = vmul.f32 1.0, %v2003
  %v2005 = vrcp.pop %v1987
  %v2006 = vmul.f32 1.0, %v2005
  %v2007 = vrcp.pop %v1988
  %v2008 = vmul.f32 1.0, %v2007
  %v2009 = vrcp.pop %v1989
  %v2010 = vmul.f32 1.0, %v2009
  %v2011 = vrcp.pop %v1990
  %v2012 = vmul.f32 1.0, %v2011
  %v2013 = vrcp.pop %v1991
  %v2014 = vmul.f32 1.0, %v2013
  %v2015 = vrcp.pop %v1992
  %v2016 = vmul.f32 1.0, %v2015
  %v2017 = vrcp.pop %v1993
  %v2018 = vmul.f32 1.0, %v2017
  %v2019 = vrcp.pop %v1994
  %v2020 = vmul.f32 1.0, %v2019
  %v2021 = vrcp.pop %v1995
  %v2022 = vmul.f32 1.0, %v2021
  %v2023 = vrcp.pop %v1996
  %v2024 = vmul.f32 1.0, %v2023
  %v2025 = vrcp.pop %v1997
  %v2026 = vmul.f32 1.0, %v2025
  %v2027 = vrcp.pop %v1998
  %v2028 = vmul.f32 1.0, %v2027
  %v2029 = vrcp.pop %v1999
  %v2030 = vmul.f32 1.0, %v2029
  %v2031 = vrcp.pop %v2000
  %v2032 = vmul.f32 1.0, %v2031
  %v2033 = vmul.f32 %v1859, %v2002
  %v2034 = vmul.f32 %v1864, %v2004
  %v2035 = vmul.f32 %v1869, %v2006
  %v2036 = vmul.f32 %v1874, %v2008
  %v2037 = vmul.f32 %v1879, %v2010
  %v2038 = vmul.f32 %v1884, %v2012
  %v2039 = vmul.f32 %v1889, %v2014
  %v2040 = vmul.f32 %v1894, %v2016
  %v2041 = vmul.f32 %v1899, %v2018
  %v2042 = vmul.f32 %v1904, %v2020
  %v2043 = vmul.f32 %v1909, %v2022
  %v2044 = vmul.f32 %v1914, %v2024
  %v2045 = vmul.f32 %v1919, %v2026
  %v2046 = vmul.f32 %v1924, %v2028
  %v2047 = vmul.f32 %v1929, %v2030
  %v2048 = vmul.f32 %v1934, %v2032
  %v2049 = vld [vmem:[%s4] sm:$0xff]
  %v2050 = vld [vmem:[%s4 + $0x8] sm:$0xff]
  %v2051 = vld [vmem:[%s4 + $0x10] sm:$0xff]
  %v2052 = vld [vmem:[%s4 + $0x18] sm:$0xff]
  %v2053 = vld [vmem:[%s4 + $0x20] sm:$0x1]
  %v2054 = vlaneseq
  %v2055 = vshrl.u32 %v2054, 7
  %v2056 = vsub.s32 0, %v2055
  %v2057 = vrot.slane %v2053, %v2056
  %v2059 = vsel %vm1429, %v105, 0
  %v2062 = vsel %vm1429, %v110, 0
  %2064 = vmatprep.subr.mxu0 0.0
  %2065 = vmatpush1.msra.mxu0 %v2049
  %2066 = vmatprep.subr.mxu0 0.0
  %2067 = vmatpush1.msra.mxu0 %v2050
  %2068 = vmatprep.subr.mxu0 0.0
  %2069 = vmatpush1.msra.mxu0 %v2051
  %2070 = vmatprep.subr.mxu0 0.0
  %2071 = vmatpush1.msra.mxu0 %v2052
  %2072 = vmatprep.subr.mxu0 0.0
  %2073 = vmatpush1.msra.mxu0 0.0
  %2074 = vmatprep.subr.mxu0 0.0
  %2075 = vmatpush1.msra.mxu0 0.0
  %2076 = vmatprep.subr.mxu0 0.0
  %2077 = vmatpush1.msra.mxu0 0.0
  %2078 = vmatprep.subr.mxu0 0.0
  %2079 = vmatpush1.msra.mxu0 0.0
  %2080 = vmatprep.subr.mxu0 0.0
  %2081 = vmatpush1.msra.mxu0 0.0
  %2082 = vmatprep.subr.mxu0 0.0
  %2083 = vmatpush1.msra.mxu0 0.0
  %2084 = vmatprep.subr.mxu0 0.0
  %2085 = vmatpush1.msra.mxu0 0.0
  %2086 = vmatprep.subr.mxu0 0.0
  %2087 = vmatpush1.msra.mxu0 0.0
  %2088 = vmatprep.subr.mxu0 0.0
  %2089 = vmatpush1.msra.mxu0 0.0
  %2090 = vmatprep.subr.mxu0 0.0
  %2091 = vmatpush1.msra.mxu0 0.0
  %2092 = vmatprep.subr.mxu0 0.0
  %2093 = vmatpush1.msra.mxu0 0.0
  %2094 = vmatprep.subr.mxu0 0.0
  %2095 = vmatpush1.msra.mxu0 0.0
  %2096 = vmatprep.subr.mxu0 0.0
  %2097 = vmatpush1.msra.mxu0 0.0
  %2098 = vmatprep.subr.mxu0 0.0
  %2099 = vmatpush1.msra.mxu0 0.0
  %2100 = vmatprep.subr.mxu0 0.0
  %2101 = vmatpush1.msra.mxu0 0.0
  %2102 = vmatprep.subr.mxu0 0.0
  %2103 = vmatpush1.msra.mxu0 0.0
  %2104 = vmatprep.subr.mxu0 0.0
  %2105 = vmatpush1.msra.mxu0 0.0
  %2106 = vmatprep.subr.mxu0 0.0
  %2107 = vmatpush1.msra.mxu0 0.0
  %2108 = vmatprep.subr.mxu0 0.0
  %2109 = vmatpush1.msra.mxu0 0.0
  %2110 = vmatprep.subr.mxu0 0.0
  %2111 = vmatpush1.msra.mxu0 0.0
  %2112 = vmatprep.subr.mxu0 0.0
  %2113 = vmatpush1.msra.mxu0 0.0
  %2114 = vmatprep.subr.mxu0 0.0
  %2115 = vmatpush1.msra.mxu0 0.0
  %2116 = vmatprep.subr.mxu0 0.0
  %2117 = vmatpush1.msra.mxu0 0.0
  %2118 = vmatprep.subr.mxu0 0.0
  %2119 = vmatpush1.msra.mxu0 0.0
  %2120 = vmatprep.subr.mxu0 0.0
  %2121 = vmatpush1.msra.mxu0 0.0
  %2122 = vmatprep.subr.mxu0 0.0
  %2123 = vmatpush1.msra.mxu0 0.0
  %2124 = vmatprep.subr.mxu0 0.0
  %2125 = vmatpush1.msra.mxu0 0.0
  %2126 = vmatprep.subr.mxu0 0.0
  %2127 = vmatpush1.msra.mxu0 0.0
  %2128 = vmatprep.mubr.f32.mxu0 0.0
  %2129 = vmatmul.mubr.f32.gmra.mrb[0].mxu0 %v2059
  %v2130 = vpop.f32.mrb[0].mxu0
  %v2131 = vadd.f32 %v2057, %v2130
  %v2132 = vpop.f32.mrb[0].mxu0
  %2133 = vmatprep.mubr.f32.mxu0 0.0
  %2134 = vmatmul.mubr.f32.gmra.mrb[0].mxu0 %v2062
  %v2135 = vpop.f32.mrb[0].mxu0
  %v2136 = vadd.f32 %v2057, %v2135
  %v2137 = vpop.f32.mrb[0].mxu0
  %2138 = vdwg.mxu0
  %v2139 = vld [vmem:[%s3] sm:$0xff]
  %v2140 = vld [vmem:[%s3 + $0x8] sm:$0xff]
  %v2141 = vld [vmem:[%s3 + $0x10] sm:$0xff]
  %v2142 = vld [vmem:[%s3 + $0x18] sm:$0xff]
  %v2144 = vsel %vm1429, %v2033, 0
  %v2147 = vsel %vm1429, %v2034, 0
  %v2150 = vsel %vm1429, %v2035, 0
  %v2153 = vsel %vm1429, %v2036, 0
  %v2156 = vsel %vm1429, %v2037, 0
  %v2159 = vsel %vm1429, %v2038, 0
  %v2162 = vsel %vm1429, %v2039, 0
  %v2165 = vsel %vm1429, %v2040, 0
  %v2168 = vsel %vm1429, %v2041, 0
  %v2171 = vsel %vm1429, %v2042, 0
  %v2174 = vsel %vm1429, %v2043, 0
  %v2177 = vsel %vm1429, %v2044, 0
  %v2180 = vsel %vm1429, %v2045, 0
  %v2183 = vsel %vm1429, %v2046, 0
  %v2186 = vsel %vm1429, %v2047, 0
  %v2189 = vsel %vm1429, %v2048, 0
  %2191 = vmatprep.subr.mxu0 0.0
  %2192 = vmatpush1.msra.mxu0 %v2139
  %2193 = vmatprep.subr.mxu0 0.0
  %2194 = vmatpush1.msra.mxu0 %v2140
  %2195 = vmatprep.subr.mxu0 0.0
  %2196 = vmatpush1.msra.mxu0 %v2141
  %2197 = vmatprep.subr.mxu0 0.0
  %2198 = vmatpush1.msra.mxu0 %v2142
  %2199 = vmatprep.subr.mxu0 0.0
  %2200 = vmatpush1.msra.mxu0 0.0
  %2201 = vmatprep.subr.mxu0 0.0
  %2202 = vmatpush1.msra.mxu0 0.0
  %2203 = vmatprep.subr.mxu0 0.0
  %2204 = vmatpush1.msra.mxu0 0.0
  %2205 = vmatprep.subr.mxu0 0.0
  %2206 = vmatpush1.msra.mxu0 0.0
  %2207 = vmatprep.subr.mxu0 0.0
  %2208 = vmatpush1.msra.mxu0 0.0
  %2209 = vmatprep.subr.mxu0 0.0
  %2210 = vmatpush1.msra.mxu0 0.0
  %2211 = vmatprep.subr.mxu0 0.0
  %2212 = vmatpush1.msra.mxu0 0.0
  %2213 = vmatprep.subr.mxu0 0.0
  %2214 = vmatpush1.msra.mxu0 0.0
  %2215 = vmatprep.subr.mxu0 0.0
  %2216 = vmatpush1.msra.mxu0 0.0
  %2217 = vmatprep.subr.mxu0 0.0
  %2218 = vmatpush1.msra.mxu0 0.0
  %2219 = vmatprep.subr.mxu0 0.0
  %2220 = vmatpush1.msra.mxu0 0.0
  %2221 = vmatprep.subr.mxu0 0.0
  %2222 = vmatpush1.msra.mxu0 0.0
  %2223 = vmatprep.subr.mxu0 0.0
  %2224 = vmatpush1.msra.mxu0 0.0
  %2225 = vmatprep.subr.mxu0 0.0
  %2226 = vmatpush1.msra.mxu0 0.0
  %2227 = vmatprep.subr.mxu0 0.0
  %2228 = vmatpush1.msra.mxu0 0.0
  %2229 = vmatprep.subr.mxu0 0.0
  %2230 = vmatpush1.msra.mxu0 0.0
  %2231 = vmatprep.subr.mxu0 0.0
  %2232 = vmatpush1.msra.mxu0 0.0
  %2233 = vmatprep.subr.mxu0 0.0
  %2234 = vmatpush1.msra.mxu0 0.0
  %2235 = vmatprep.subr.mxu0 0.0
  %2236 = vmatpush1.msra.mxu0 0.0
  %2237 = vmatprep.subr.mxu0 0.0
  %2238 = vmatpush1.msra.mxu0 0.0
  %2239 = vmatprep.subr.mxu0 0.0
  %2240 = vmatpush1.msra.mxu0 0.0
  %2241 = vmatprep.subr.mxu0 0.0
  %2242 = vmatpush1.msra.mxu0 0.0
  %2243 = vmatprep.subr.mxu0 0.0
  %2244 = vmatpush1.msra.mxu0 0.0
  %2245 = vmatprep.subr.mxu0 0.0
  %2246 = vmatpush1.msra.mxu0 0.0
  %2247 = vmatprep.subr.mxu0 0.0
  %2248 = vmatpush1.msra.mxu0 0.0
  %2249 = vmatprep.subr.mxu0 0.0
  %2250 = vmatpush1.msra.mxu0 0.0
  %2251 = vmatprep.subr.mxu0 0.0
  %2252 = vmatpush1.msra.mxu0 0.0
  %2253 = vmatprep.subr.mxu0 0.0
  %2254 = vmatpush1.msra.mxu0 0.0
  %2255 = vmatprep.mubr.f32.mxu0 0.0
  %2256 = vmatmul.mubr.f32.gmra.mrb[0].mxu0 %v2144
  %v2257 = vpop.f32.mrb[0].mxu0
  %v2258 = vadd.f32 0.0, %v2257
  %v2259 = vpop.f32.mrb[0].mxu0
  %2260 = vmatprep.mubr.f32.mxu0 0.0
  %2261 = vmatmul.mubr.f32.gmra.mrb[0].mxu0 %v2147
  %v2262 = vpop.f32.mrb[0].mxu0
  %v2263 = vadd.f32 0.0, %v2262
  %v2264 = vpop.f32.mrb[0].mxu0
  %2265 = vmatprep.mubr.f32.mxu0 0.0
  %2266 = vmatmul.mubr.f32.gmra.mrb[0].mxu0 %v2150
  %v2267 = vpop.f32.mrb[0].mxu0
  %v2268 = vadd.f32 0.0, %v2267
  %v2269 = vpop.f32.mrb[0].mxu0
  %2270 = vmatprep.mubr.f32.mxu0 0.0
  %2271 = vmatmul.mubr.f32.gmra.mrb[0].mxu0 %v2153
  %v2272 = vpop.f32.mrb[0].mxu0
  %v2273 = vadd.f32 0.0, %v2272
  %v2274 = vpop.f32.mrb[0].mxu0
  %2275 = vmatprep.mubr.f32.mxu0 0.0
  %2276 = vmatmul.mubr.f32.gmra.mrb[0].mxu0 %v2156
  %v2277 = vpop.f32.mrb[0].mxu0
  %v2278 = vadd.f32 0.0, %v2277
  %v2279 = vpop.f32.mrb[0].mxu0
  %2280 = vmatprep.mubr.f32.mxu0 0.0
  %2281 = vmatmul.mubr.f32.gmra.mrb[0].mxu0 %v2159
  %v2282 = vpop.f32.mrb[0].mxu0
  %v2283 = vadd.f32 0.0, %v2282
  %v2284 = vpop.f32.mrb[0].mxu0
  %2285 = vmatprep.mubr.f32.mxu0 0.0
  %2286 = vmatmul.mubr.f32.gmra.mrb[0].mxu0 %v2162
  %v2287 = vpop.f32.mrb[0].mxu0
  %v2288 = vadd.f32 0.0, %v2287
  %v2289 = vpop.f32.mrb[0].mxu0
  %2290 = vmatprep.mubr.f32.mxu0 0.0
  %2291 = vmatmul.mubr.f32.gmra.mrb[0].mxu0 %v2165
  %v2292 = vpop.f32.mrb[0].mxu0
  %v2293 = vadd.f32 0.0, %v2292
  %v2294 = vpop.f32.mrb[0].mxu0
  %2295 = vmatprep.mubr.f32.mxu0 0.0
  %2296 = vmatmul.mubr.f32.gmra.mrb[0].mxu0 %v2168
  %v2297 = vpop.f32.mrb[0].mxu0
  %v2298 = vadd.f32 0.0, %v2297
  %v2299 = vpop.f32.mrb[0].mxu0
  %2300 = vmatprep.mubr.f32.mxu0 0.0
  %2301 = vmatmul.mubr.f32.gmra.mrb[0].mxu0 %v2171
  %v2302 = vpop.f32.mrb[0].mxu0
  %v2303 = vadd.f32 0.0, %v2302
  %v2304 = vpop.f32.mrb[0].mxu0
  %2305 = vmatprep.mubr.f32.mxu0 0.0
  %2306 = vmatmul.mubr.f32.gmra.mrb[0].mxu0 %v2174
  %v2307 = vpop.f32.mrb[0].mxu0
  %v2308 = vadd.f32 0.0, %v2307
  %v2309 = vpop.f32.mrb[0].mxu0
  %2310 = vmatprep.mubr.f32.mxu0 0.0
  %2311 = vmatmul.mubr.f32.gmra.mrb[0].mxu0 %v2177
  %v2312 = vpop.f32.mrb[0].mxu0
  %v2313 = vadd.f32 0.0, %v2312
  %v2314 = vpop.f32.mrb[0].mxu0
  %2315 = vmatprep.mubr.f32.mxu0 0.0
  %2316 = vmatmul.mubr.f32.gmra.mrb[0].mxu0 %v2180
  %v2317 = vpop.f32.mrb[0].mxu0
  %v2318 = vadd.f32 0.0, %v2317
  %v2319 = vpop.f32.mrb[0].mxu0
  %2320 = vmatprep.mubr.f32.mxu0 0.0
  %2321 = vmatmul.mubr.f32.gmra.mrb[0].mxu0 %v2183
  %v2322 = vpop.f32.mrb[0].mxu0
  %v2323 = vadd.f32 0.0, %v2322
  %v2324 = vpop.f32.mrb[0].mxu0
  %2325 = vmatprep.mubr.f32.mxu0 0.0
  %2326 = vmatmul.mubr.f32.gmra.mrb[0].mxu0 %v2186
  %v2327 = vpop.f32.mrb[0].mxu0
  %v2328 = vadd.f32 0.0, %v2327
  %v2329 = vpop.f32.mrb[0].mxu0
  %2330 = vmatprep.mubr.f32.mxu0 0.0
  %2331 = vmatmul.mubr.f32.gmra.mrb[0].mxu0 %v2189
  %v2332 = vpop.f32.mrb[0].mxu0
  %v2333 = vadd.f32 0.0, %v2332
  %v2334 = vpop.f32.mrb[0].mxu0
  %2335 = vdwg.mxu0
  %v2338 = vcombine.high %v2131, %v2131
  %v2340 = vunpack.c.l.s4 1966171168
  %v2341 = vunpack.c.0.s8 %v2340
  %v2342 = vlaneseq
  %v2343 = vshrl.u32 %v2342, 7
  %v2344 = vsub.s32 %v2341, %v2343
  %v2345 = vrot.slane %v2131, %v2344
  %v2347 = vunpack.c.l.s4 1966171168
  %v2348 = vunpack.c.0.s8 %v2347
  %v2349 = vlaneseq
  %v2350 = vshrl.u32 %v2349, 7
  %v2351 = vsub.s32 %v2348, %v2350
  %v2352 = vrot.slane %v2338, %v2351
  %v2353 = vcombine.high %v2345, %v2345
  %v2354 = vcombine.high %v2352, %v2352
  %v2356 = vunpack.c.l.s4 1966171168
  %v2357 = vunpack.c.0.s8 %v2356
  %v2358 = vlaneseq
  %v2359 = vshrl.u32 %v2358, 7
  %v2360 = vsub.s32 %v2357, %v2359
  %v2361 = vrot.slane %v2345, %v2360
  %v2363 = vunpack.c.l.s4 1966171168
  %v2364 = vunpack.c.0.s8 %v2363
  %v2365 = vlaneseq
  %v2366 = vshrl.u32 %v2365, 7
  %v2367 = vsub.s32 %v2364, %v2366
  %v2368 = vrot.slane %v2352, %v2367
  %v2370 = vunpack.c.l.s4 1966171168
  %v2371 = vunpack.c.0.s8 %v2370
  %v2372 = vlaneseq
  %v2373 = vshrl.u32 %v2372, 7
  %v2374 = vsub.s32 %v2371, %v2373
  %v2375 = vrot.slane %v2353, %v2374
  %v2377 = vunpack.c.l.s4 1966171168
  %v2378 = vunpack.c.0.s8 %v2377
  %v2379 = vlaneseq
  %v2380 = vshrl.u32 %v2379, 7
  %v2381 = vsub.s32 %v2378, %v2380
  %v2382 = vrot.slane %v2354, %v2381
  %v2383 = vcombine.high %v2361, %v2361
  %v2384 = vcombine.high %v2368, %v2368
  %v2385 = vcombine.high %v2375, %v2375
  %v2386 = vcombine.high %v2382, %v2382
  %v2387 = vcombine.high %v2136, %v2136
  %v2389 = vunpack.c.l.s4 1966171168
  %v2390 = vunpack.c.0.s8 %v2389
  %v2391 = vlaneseq
  %v2392 = vshrl.u32 %v2391, 7
  %v2393 = vsub.s32 %v2390, %v2392
  %v2394 = vrot.slane %v2136, %v2393
  %v2396 = vunpack.c.l.s4 1966171168
  %v2397 = vunpack.c.0.s8 %v2396
  %v2398 = vlaneseq
  %v2399 = vshrl.u32 %v2398, 7
  %v2400 = vsub.s32 %v2397, %v2399
  %v2401 = vrot.slane %v2387, %v2400
  %v2402 = vcombine.high %v2394, %v2394
  %v2403 = vcombine.high %v2401, %v2401
  %v2405 = vunpack.c.l.s4 1966171168
  %v2406 = vunpack.c.0.s8 %v2405
  %v2407 = vlaneseq
  %v2408 = vshrl.u32 %v2407, 7
  %v2409 = vsub.s32 %v2406, %v2408
  %v2410 = vrot.slane %v2394, %v2409
  %v2412 = vunpack.c.l.s4 1966171168
  %v2413 = vunpack.c.0.s8 %v2412
  %v2414 = vlaneseq
  %v2415 = vshrl.u32 %v2414, 7
  %v2416 = vsub.s32 %v2413, %v2415
  %v2417 = vrot.slane %v2401, %v2416
  %v2419 = vunpack.c.l.s4 1966171168
  %v2420 = vunpack.c.0.s8 %v2419
  %v2421 = vlaneseq
  %v2422 = vshrl.u32 %v2421, 7
  %v2423 = vsub.s32 %v2420, %v2422
  %v2424 = vrot.slane %v2402, %v2423
  %v2426 = vunpack.c.l.s4 1966171168
  %v2427 = vunpack.c.0.s8 %v2426
  %v2428 = vlaneseq
  %v2429 = vshrl.u32 %v2428, 7
  %v2430 = vsub.s32 %v2427, %v2429
  %v2431 = vrot.slane %v2403, %v2430
  %v2432 = vcombine.high %v2410, %v2410
  %v2433 = vcombine.high %v2417, %v2417
  %v2434 = vcombine.high %v2424, %v2424
  %v2435 = vcombine.high %v2431, %v2431
  %v2436 = vlaneseq
  %v2437 = vshrl.u32 %v2436, 7
  %v2438 = vsub.s32 0, %v2437
  %v2439 = vrot.slane %v2361, %v2438
  %v2440 = vlaneseq
  %v2441 = vshrl.u32 %v2440, 7
  %v2442 = vsub.s32 0, %v2441
  %v2443 = vrot.slane %v2375, %v2442
  %v2444 = vlaneseq
  %v2445 = vshrl.u32 %v2444, 7
  %v2446 = vsub.s32 0, %v2445
  %v2447 = vrot.slane %v2383, %v2446
  %v2448 = vlaneseq
  %v2449 = vshrl.u32 %v2448, 7
  %v2450 = vsub.s32 0, %v2449
  %v2451 = vrot.slane %v2385, %v2450
  %v2452 = vlaneseq
  %v2453 = vshrl.u32 %v2452, 7
  %v2454 = vsub.s32 0, %v2453
  %v2455 = vrot.slane %v2368, %v2454
  %v2456 = vlaneseq
  %v2457 = vshrl.u32 %v2456, 7
  %v2458 = vsub.s32 0, %v2457
  %v2459 = vrot.slane %v2382, %v2458
  %v2460 = vlaneseq
  %v2461 = vshrl.u32 %v2460, 7
  %v2462 = vsub.s32 0, %v2461
  %v2463 = vrot.slane %v2384, %v2462
  %v2464 = vlaneseq
  %v2465 = vshrl.u32 %v2464, 7
  %v2466 = vsub.s32 0, %v2465
  %v2467 = vrot.slane %v2386, %v2466
  %v2468 = vlaneseq
  %v2469 = vshrl.u32 %v2468, 7
  %v2470 = vsub.s32 0, %v2469
  %v2471 = vrot.slane %v2410, %v2470
  %v2472 = vlaneseq
  %v2473 = vshrl.u32 %v2472, 7
  %v2474 = vsub.s32 0, %v2473
  %v2475 = vrot.slane %v2424, %v2474
  %v2476 = vlaneseq
  %v2477 = vshrl.u32 %v2476, 7
  %v2478 = vsub.s32 0, %v2477
  %v2479 = vrot.slane %v2432, %v2478
  %v2480 = vlaneseq
  %v2481 = vshrl.u32 %v2480, 7
  %v2482 = vsub.s32 0, %v2481
  %v2483 = vrot.slane %v2434, %v2482
  %v2484 = vlaneseq
  %v2485 = vshrl.u32 %v2484, 7
  %v2486 = vsub.s32 0, %v2485
  %v2487 = vrot.slane %v2417, %v2486
  %v2488 = vlaneseq
  %v2489 = vshrl.u32 %v2488, 7
  %v2490 = vsub.s32 0, %v2489
  %v2491 = vrot.slane %v2431, %v2490
  %v2492 = vlaneseq
  %v2493 = vshrl.u32 %v2492, 7
  %v2494 = vsub.s32 0, %v2493
  %v2495 = vrot.slane %v2433, %v2494
  %v2496 = vlaneseq
  %v2497 = vshrl.u32 %v2496, 7
  %v2498 = vsub.s32 0, %v2497
  %v2499 = vrot.slane %v2435, %v2498
  %2516 = vrot.lane.b32.xlu0 %v2131, 96
  %v2517 = vpop.permute.xlu0 %2516
  %2518 = vrot.lane.b32.xlu0 %v2136, 96
  %v2519 = vpop.permute.xlu0 %2518
  %v2522 = vadd.f32 %v2439, %v2517
  %v2523 = vadd.f32 %v2443, %v2517
  %v2524 = vadd.f32 %v2447, %v2517
  %v2525 = vadd.f32 %v2451, %v2517
  %v2526 = vadd.f32 %v2455, %v2517
  %v2527 = vadd.f32 %v2459, %v2517
  %v2528 = vadd.f32 %v2463, %v2517
  %v2529 = vadd.f32 %v2467, %v2517
  %v2530 = vadd.f32 %v2471, %v2519
  %v2531 = vadd.f32 %v2475, %v2519
  %v2532 = vadd.f32 %v2479, %v2519
  %v2533 = vadd.f32 %v2483, %v2519
  %v2534 = vadd.f32 %v2487, %v2519
  %v2535 = vadd.f32 %v2491, %v2519
  %v2536 = vadd.f32 %v2495, %v2519
  %v2537 = vadd.f32 %v2499, %v2519
  %v2538 = vadd.f32 %v2522, %v2258
  %v2539 = vadd.f32 %v2523, %v2263
  %v2540 = vadd.f32 %v2524, %v2268
  %v2541 = vadd.f32 %v2525, %v2273
  %v2542 = vadd.f32 %v2526, %v2278
  %v2543 = vadd.f32 %v2527, %v2283
  %v2544 = vadd.f32 %v2528, %v2288
  %v2545 = vadd.f32 %v2529, %v2293
  %v2546 = vadd.f32 %v2530, %v2298
  %v2547 = vadd.f32 %v2531, %v2303
  %v2548 = vadd.f32 %v2532, %v2308
  %v2549 = vadd.f32 %v2533, %v2313
  %v2550 = vadd.f32 %v2534, %v2318
  %v2551 = vadd.f32 %v2535, %v2323
  %v2552 = vadd.f32 %v2536, %v2328
  %v2553 = vadd.f32 %v2537, %v2333
  %v2554 = vxor.u32 %v2538, 2147483648
  %v2555 = vxor.u32 %v2539, 2147483648
  %v2556 = vxor.u32 %v2540, 2147483648
  %v2557 = vxor.u32 %v2541, 2147483648
  %v2558 = vxor.u32 %v2542, 2147483648
  %v2559 = vxor.u32 %v2543, 2147483648
  %v2560 = vxor.u32 %v2544, 2147483648
  %v2561 = vxor.u32 %v2545, 2147483648
  %v2562 = vxor.u32 %v2546, 2147483648
  %v2563 = vxor.u32 %v2547, 2147483648
  %v2564 = vxor.u32 %v2548, 2147483648
  %v2565 = vxor.u32 %v2549, 2147483648
  %v2566 = vxor.u32 %v2550, 2147483648
  %v2567 = vxor.u32 %v2551, 2147483648
  %v2568 = vxor.u32 %v2552, 2147483648
  %v2569 = vxor.u32 %v2553, 2147483648
  %v2570 = vmul.f32 %v2554, 1.442695
  %v2571 = vpow.pop %v2570
  %v2572 = vmul.f32 %v2555, 1.442695
  %v2573 = vpow.pop %v2572
  %v2574 = vmul.f32 %v2556, 1.442695
  %v2575 = vpow.pop %v2574
  %v2576 = vmul.f32 %v2557, 1.442695
  %v2577 = vpow.pop %v2576
  %v2578 = vmul.f32 %v2558, 1.442695
  %v2579 = vpow.pop %v2578
  %v2580 = vmul.f32 %v2559, 1.442695
  %v2581 = vpow.pop %v2580
  %v2582 = vmul.f32 %v2560, 1.442695
  %v2583 = vpow.pop %v2582
  %v2584 = vmul.f32 %v2561, 1.442695
  %v2585 = vpow.pop %v2584
  %v2586 = vmul.f32 %v2562, 1.442695
  %v2587 = vpow.pop %v2586
  %v2588 = vmul.f32 %v2563, 1.442695
  %v2589 = vpow.pop %v2588
  %v2590 = vmul.f32 %v2564, 1.442695
  %v2591 = vpow.pop %v2590
  %v2592 = vmul.f32 %v2565, 1.442695
  %v2593 = vpow.pop %v2592
  %v2594 = vmul.f32 %v2566, 1.442695
  %v2595 = vpow.pop %v2594
  %v2596 = vmul.f32 %v2567, 1.442695
  %v2597 = vpow.pop %v2596
  %v2598 = vmul.f32 %v2568, 1.442695
  %v2599 = vpow.pop %v2598
  %v2600 = vmul.f32 %v2569, 1.442695
  %v2601 = vpow.pop %v2600
  %v2602 = vadd.f32 %v2571, 1.0
  %v2603 = vadd.f32 %v2573, 1.0
  %v2604 = vadd.f32 %v2575, 1.0
  %v2605 = vadd.f32 %v2577, 1.0
  %v2606 = vadd.f32 %v2579, 1.0
  %v2607 = vadd.f32 %v2581, 1.0
  %v2608 = vadd.f32 %v2583, 1.0
  %v2609 = vadd.f32 %v2585, 1.0
  %v2610 = vadd.f32 %v2587, 1.0
  %v2611 = vadd.f32 %v2589, 1.0
  %v2612 = vadd.f32 %v2591, 1.0
  %v2613 = vadd.f32 %v2593, 1.0
  %v2614 = vadd.f32 %v2595, 1.0
  %v2615 = vadd.f32 %v2597, 1.0
  %v2616 = vadd.f32 %v2599, 1.0
  %v2617 = vadd.f32 %v2601, 1.0
  %v2618 = vrcp.pop %v2602
  %v2619 = vmul.f32 1.0, %v2618
  %v2620 = vrcp.pop %v2603
  %v2621 = vmul.f32 1.0, %v2620
  %v2622 = vrcp.pop %v2604
  %v2623 = vmul.f32 1.0, %v2622
  %v2624 = vrcp.pop %v2605
  %v2625 = vmul.f32 1.0, %v2624
  %v2626 = vrcp.pop %v2606
  %v2627 = vmul.f32 1.0, %v2626
  %v2628 = vrcp.pop %v2607
  %v2629 = vmul.f32 1.0, %v2628
  %v2630 = vrcp.pop %v2608
  %v2631 = vmul.f32 1.0, %v2630
  %v2632 = vrcp.pop %v2609
  %v2633 = vmul.f32 1.0, %v2632
  %v2634 = vrcp.pop %v2610
  %v2635 = vmul.f32 1.0, %v2634
  %v2636 = vrcp.pop %v2611
  %v2637 = vmul.f32 1.0, %v2636
  %v2638 = vrcp.pop %v2612
  %v2639 = vmul.f32 1.0, %v2638
  %v2640 = vrcp.pop %v2613
  %v2641 = vmul.f32 1.0, %v2640
  %v2642 = vrcp.pop %v2614
  %v2643 = vmul.f32 1.0, %v2642
  %v2644 = vrcp.pop %v2615
  %v2645 = vmul.f32 1.0, %v2644
  %v2646 = vrcp.pop %v2616
  %v2647 = vmul.f32 1.0, %v2646
  %v2648 = vrcp.pop %v2617
  %v2649 = vmul.f32 1.0, %v2648
  %v2650 = vmul.f32 %v2538, %v2619
  %v2651 = vmul.f32 %v2539, %v2621
  %v2652 = vmul.f32 %v2540, %v2623
  %v2653 = vmul.f32 %v2541, %v2625
  %v2654 = vmul.f32 %v2542, %v2627
  %v2655 = vmul.f32 %v2543, %v2629
  %v2656 = vmul.f32 %v2544, %v2631
  %v2657 = vmul.f32 %v2545, %v2633
  %v2658 = vmul.f32 %v2546, %v2635
  %v2659 = vmul.f32 %v2547, %v2637
  %v2660 = vmul.f32 %v2548, %v2639
  %v2661 = vmul.f32 %v2549, %v2641
  %v2662 = vmul.f32 %v2550, %v2643
  %v2663 = vmul.f32 %v2551, %v2645
  %v2664 = vmul.f32 %v2552, %v2647
  %v2665 = vmul.f32 %v2553, %v2649
  %v2666 = vld [vmem:[%s2 + $0x80] sm:$0xff]
  %v2667 = vld [vmem:[%s2 + $0x88] sm:$0xff]
  %v2668 = vld [vmem:[%s2 + $0x90] sm:$0xff]
  %v2669 = vld [vmem:[%s2 + $0x98] sm:$0xff]
  %v2670 = vld [vmem:[%s2 + $0xa0] sm:$0x1]
  %v2671 = vlaneseq
  %v2672 = vshrl.u32 %v2671, 7
  %v2673 = vsub.s32 0, %v2672
  %v2674 = vrot.slane %v2670, %v2673
  %v2676 = vsel %vm1429, %v2650, 0
  %v2679 = vsel %vm1429, %v2651, 0
  %v2682 = vsel %vm1429, %v2652, 0
  %v2685 = vsel %vm1429, %v2653, 0
  %v2688 = vsel %vm1429, %v2654, 0
  %v2691 = vsel %vm1429, %v2655, 0
  %v2694 = vsel %vm1429, %v2656, 0
  %v2697 = vsel %vm1429, %v2657, 0
  %v2700 = vsel %vm1429, %v2658, 0
  %v2703 = vsel %vm1429, %v2659, 0
  %v2706 = vsel %vm1429, %v2660, 0
  %v2709 = vsel %vm1429, %v2661, 0
  %v2712 = vsel %vm1429, %v2662, 0
  %v2715 = vsel %vm1429, %v2663, 0
  %v2718 = vsel %vm1429, %v2664, 0
  %v2721 = vsel %vm1429, %v2665, 0
  %2723 = vmatprep.subr.mxu0 0.0
  %2724 = vmatpush1.msra.mxu0 %v2666
  %2725 = vmatprep.subr.mxu0 0.0
  %2726 = vmatpush1.msra.mxu0 %v2667
  %2727 = vmatprep.subr.mxu0 0.0
  %2728 = vmatpush1.msra.mxu0 %v2668
  %2729 = vmatprep.subr.mxu0 0.0
  %2730 = vmatpush1.msra.mxu0 %v2669
  %2731 = vmatprep.subr.mxu0 0.0
  %2732 = vmatpush1.msra.mxu0 0.0
  %2733 = vmatprep.subr.mxu0 0.0
  %2734 = vmatpush1.msra.mxu0 0.0
  %2735 = vmatprep.subr.mxu0 0.0
  %2736 = vmatpush1.msra.mxu0 0.0
  %2737 = vmatprep.subr.mxu0 0.0
  %2738 = vmatpush1.msra.mxu0 0.0
  %2739 = vmatprep.subr.mxu0 0.0
  %2740 = vmatpush1.msra.mxu0 0.0
  %2741 = vmatprep.subr.mxu0 0.0
  %2742 = vmatpush1.msra.mxu0 0.0
  %2743 = vmatprep.subr.mxu0 0.0
  %2744 = vmatpush1.msra.mxu0 0.0
  %2745 = vmatprep.subr.mxu0 0.0
  %2746 = vmatpush1.msra.mxu0 0.0
  %2747 = vmatprep.subr.mxu0 0.0
  %2748 = vmatpush1.msra.mxu0 0.0
  %2749 = vmatprep.subr.mxu0 0.0
  %2750 = vmatpush1.msra.mxu0 0.0
  %2751 = vmatprep.subr.mxu0 0.0
  %2752 = vmatpush1.msra.mxu0 0.0
  %2753 = vmatprep.subr.mxu0 0.0
  %2754 = vmatpush1.msra.mxu0 0.0
  %2755 = vmatprep.subr.mxu0 0.0
  %2756 = vmatpush1.msra.mxu0 0.0
  %2757 = vmatprep.subr.mxu0 0.0
  %2758 = vmatpush1.msra.mxu0 0.0
  %2759 = vmatprep.subr.mxu0 0.0
  %2760 = vmatpush1.msra.mxu0 0.0
  %2761 = vmatprep.subr.mxu0 0.0
  %2762 = vmatpush1.msra.mxu0 0.0
  %2763 = vmatprep.subr.mxu0 0.0
  %2764 = vmatpush1.msra.mxu0 0.0
  %2765 = vmatprep.subr.mxu0 0.0
  %2766 = vmatpush1.msra.mxu0 0.0
  %2767 = vmatprep.subr.mxu0 0.0
  %2768 = vmatpush1.msra.mxu0 0.0
  %2769 = vmatprep.subr.mxu0 0.0
  %2770 = vmatpush1.msra.mxu0 0.0
  %2771 = vmatprep.subr.mxu0 0.0
  %2772 = vmatpush1.msra.mxu0 0.0
  %2773 = vmatprep.subr.mxu0 0.0
  %2774 = vmatpush1.msra.mxu0 0.0
  %2775 = vmatprep.subr.mxu0 0.0
  %2776 = vmatpush1.msra.mxu0 0.0
  %2777 = vmatprep.subr.mxu0 0.0
  %2778 = vmatpush1.msra.mxu0 0.0
  %2779 = vmatprep.subr.mxu0 0.0
  %2780 = vmatpush1.msra.mxu0 0.0
  %2781 = vmatprep.subr.mxu0 0.0
  %2782 = vmatpush1.msra.mxu0 0.0
  %2783 = vmatprep.subr.mxu0 0.0
  %2784 = vmatpush1.msra.mxu0 0.0
  %2785 = vmatprep.subr.mxu0 0.0
  %2786 = vmatpush1.msra.mxu0 0.0
  %2787 = vmatprep.mubr.f32.mxu0 0.0
  %2788 = vmatmul.mubr.f32.gmra.mrb[0].mxu0 %v2676
  %v2789 = vpop.f32.mrb[0].mxu0
  %v2790 = vadd.f32 %v2674, %v2789
  %v2791 = vpop.f32.mrb[0].mxu0
  %2792 = vmatprep.mubr.f32.mxu0 0.0
  %2793 = vmatmul.mubr.f32.gmra.mrb[0].mxu0 %v2679
  %v2794 = vpop.f32.mrb[0].mxu0
  %v2795 = vadd.f32 %v2674, %v2794
  %v2796 = vpop.f32.mrb[0].mxu0
  %2797 = vmatprep.mubr.f32.mxu0 0.0
  %2798 = vmatmul.mubr.f32.gmra.mrb[0].mxu0 %v2682
  %v2799 = vpop.f32.mrb[0].mxu0
  %v2800 = vadd.f32 %v2674, %v2799
  %v2801 = vpop.f32.mrb[0].mxu0
  %2802 = vmatprep.mubr.f32.mxu0 0.0
  %2803 = vmatmul.mubr.f32.gmra.mrb[0].mxu0 %v2685
  %v2804 = vpop.f32.mrb[0].mxu0
  %v2805 = vadd.f32 %v2674, %v2804
  %v2806 = vpop.f32.mrb[0].mxu0
  %2807 = vmatprep.mubr.f32.mxu0 0.0
  %2808 = vmatmul.mubr.f32.gmra.mrb[0].mxu0 %v2688
  %v2809 = vpop.f32.mrb[0].mxu0
  %v2810 = vadd.f32 %v2674, %v2809
  %v2811 = vpop.f32.mrb[0].mxu0
  %2812 = vmatprep.mubr.f32.mxu0 0.0
  %2813 = vmatmul.mubr.f32.gmra.mrb[0].mxu0 %v2691
  %v2814 = vpop.f32.mrb[0].mxu0
  %v2815 = vadd.f32 %v2674, %v2814
  %v2816 = vpop.f32.mrb[0].mxu0
  %2817 = vmatprep.mubr.f32.mxu0 0.0
  %2818 = vmatmul.mubr.f32.gmra.mrb[0].mxu0 %v2694
  %v2819 = vpop.f32.mrb[0].mxu0
  %v2820 = vadd.f32 %v2674, %v2819
  %v2821 = vpop.f32.mrb[0].mxu0
  %2822 = vmatprep.mubr.f32.mxu0 0.0
  %2823 = vmatmul.mubr.f32.gmra.mrb[0].mxu0 %v2697
  %v2824 = vpop.f32.mrb[0].mxu0
  %v2825 = vadd.f32 %v2674, %v2824
  %v2826 = vpop.f32.mrb[0].mxu0
  %2827 = vmatprep.mubr.f32.mxu0 0.0
  %2828 = vmatmul.mubr.f32.gmra.mrb[0].mxu0 %v2700
  %v2829 = vpop.f32.mrb[0].mxu0
  %v2830 = vadd.f32 %v2674, %v2829
  %v2831 = vpop.f32.mrb[0].mxu0
  %2832 = vmatprep.mubr.f32.mxu0 0.0
  %2833 = vmatmul.mubr.f32.gmra.mrb[0].mxu0 %v2703
  %v2834 = vpop.f32.mrb[0].mxu0
  %v2835 = vadd.f32 %v2674, %v2834
  %v2836 = vpop.f32.mrb[0].mxu0
  %2837 = vmatprep.mubr.f32.mxu0 0.0
  %2838 = vmatmul.mubr.f32.gmra.mrb[0].mxu0 %v2706
  %v2839 = vpop.f32.mrb[0].mxu0
  %v2840 = vadd.f32 %v2674, %v2839
  %v2841 = vpop.f32.mrb[0].mxu0
  %2842 = vmatprep.mubr.f32.mxu0 0.0
  %2843 = vmatmul.mubr.f32.gmra.mrb[0].mxu0 %v2709
  %v2844 = vpop.f32.mrb[0].mxu0
  %v2845 = vadd.f32 %v2674, %v2844
  %v2846 = vpop.f32.mrb[0].mxu0
  %2847 = vmatprep.mubr.f32.mxu0 0.0
  %2848 = vmatmul.mubr.f32.gmra.mrb[0].mxu0 %v2712
  %v2849 = vpop.f32.mrb[0].mxu0
  %v2850 = vadd.f32 %v2674, %v2849
  %v2851 = vpop.f32.mrb[0].mxu0
  %2852 = vmatprep.mubr.f32.mxu0 0.0
  %2853 = vmatmul.mubr.f32.gmra.mrb[0].mxu0 %v2715
  %v2854 = vpop.f32.mrb[0].mxu0
  %v2855 = vadd.f32 %v2674, %v2854
  %v2856 = vpop.f32.mrb[0].mxu0
  %2857 = vmatprep.mubr.f32.mxu0 0.0
  %2858 = vmatmul.mubr.f32.gmra.mrb[0].mxu0 %v2718
  %v2859 = vpop.f32.mrb[0].mxu0
  %v2860 = vadd.f32 %v2674, %v2859
  %v2861 = vpop.f32.mrb[0].mxu0
  %2862 = vmatprep.mubr.f32.mxu0 0.0
  %2863 = vmatmul.mubr.f32.gmra.mrb[0].mxu0 %v2721
  %v2864 = vpop.f32.mrb[0].mxu0
  %v2865 = vadd.f32 %v2674, %v2864
  %v2866 = vpop.f32.mrb[0].mxu0
  %2867 = vdwg.mxu0
  %v2868 = vxor.u32 %v2790, 2147483648
  %v2869 = vxor.u32 %v2795, 2147483648
  %v2870 = vxor.u32 %v2800, 2147483648
  %v2871 = vxor.u32 %v2805, 2147483648
  %v2872 = vxor.u32 %v2810, 2147483648
  %v2873 = vxor.u32 %v2815, 2147483648
  %v2874 = vxor.u32 %v2820, 2147483648
  %v2875 = vxor.u32 %v2825, 2147483648
  %v2876 = vxor.u32 %v2830, 2147483648
  %v2877 = vxor.u32 %v2835, 2147483648
  %v2878 = vxor.u32 %v2840, 2147483648
  %v2879 = vxor.u32 %v2845, 2147483648
  %v2880 = vxor.u32 %v2850, 2147483648
  %v2881 = vxor.u32 %v2855, 2147483648
  %v2882 = vxor.u32 %v2860, 2147483648
  %v2883 = vxor.u32 %v2865, 2147483648
  %v2884 = vmul.f32 %v2868, 1.442695
  %v2885 = vpow.pop %v2884
  %v2886 = vmul.f32 %v2869, 1.442695
  %v2887 = vpow.pop %v2886
  %v2888 = vmul.f32 %v2870, 1.442695
  %v2889 = vpow.pop %v2888
  %v2890 = vmul.f32 %v2871, 1.442695
  %v2891 = vpow.pop %v2890
  %v2892 = vmul.f32 %v2872, 1.442695
  %v2893 = vpow.pop %v2892
  %v2894 = vmul.f32 %v2873, 1.442695
  %v2895 = vpow.pop %v2894
  %v2896 = vmul.f32 %v2874, 1.442695
  %v2897 = vpow.pop %v2896
  %v2898 = vmul.f32 %v2875, 1.442695
  %v2899 = vpow.pop %v2898
  %v2900 = vmul.f32 %v2876, 1.442695
  %v2901 = vpow.pop %v2900
  %v2902 = vmul.f32 %v2877, 1.442695
  %v2903 = vpow.pop %v2902
  %v2904 = vmul.f32 %v2878, 1.442695
  %v2905 = vpow.pop %v2904
  %v2906 = vmul.f32 %v2879, 1.442695
  %v2907 = vpow.pop %v2906
  %v2908 = vmul.f32 %v2880, 1.442695
  %v2909 = vpow.pop %v2908
  %v2910 = vmul.f32 %v2881, 1.442695
  %v2911 = vpow.pop %v2910
  %v2912 = vmul.f32 %v2882, 1.442695
  %v2913 = vpow.pop %v2912
  %v2914 = vmul.f32 %v2883, 1.442695
  %v2915 = vpow.pop %v2914
  %v2916 = vadd.f32 %v2885, 1.0
  %v2917 = vadd.f32 %v2887, 1.0
  %v2918 = vadd.f32 %v2889, 1.0
  %v2919 = vadd.f32 %v2891, 1.0
  %v2920 = vadd.f32 %v2893, 1.0
  %v2921 = vadd.f32 %v2895, 1.0
  %v2922 = vadd.f32 %v2897, 1.0
  %v2923 = vadd.f32 %v2899, 1.0
  %v2924 = vadd.f32 %v2901, 1.0
  %v2925 = vadd.f32 %v2903, 1.0
  %v2926 = vadd.f32 %v2905, 1.0
  %v2927 = vadd.f32 %v2907, 1.0
  %v2928 = vadd.f32 %v2909, 1.0
  %v2929 = vadd.f32 %v2911, 1.0
  %v2930 = vadd.f32 %v2913, 1.0
  %v2931 = vadd.f32 %v2915, 1.0
  %v2932 = vrcp.pop %v2916
  %v2933 = vmul.f32 1.0, %v2932
  %v2934 = vrcp.pop %v2917
  %v2935 = vmul.f32 1.0, %v2934
  %v2936 = vrcp.pop %v2918
  %v2937 = vmul.f32 1.0, %v2936
  %v2938 = vrcp.pop %v2919
  %v2939 = vmul.f32 1.0, %v2938
  %v2940 = vrcp.pop %v2920
  %v2941 = vmul.f32 1.0, %v2940
  %v2942 = vrcp.pop %v2921
  %v2943 = vmul.f32 1.0, %v2942
  %v2944 = vrcp.pop %v2922
  %v2945 = vmul.f32 1.0, %v2944
  %v2946 = vrcp.pop %v2923
  %v2947 = vmul.f32 1.0, %v2946
  %v2948 = vrcp.pop %v2924
  %v2949 = vmul.f32 1.0, %v2948
  %v2950 = vrcp.pop %v2925
  %v2951 = vmul.f32 1.0, %v2950
  %v2952 = vrcp.pop %v2926
  %v2953 = vmul.f32 1.0, %v2952
  %v2954 = vrcp.pop %v2927
  %v2955 = vmul.f32 1.0, %v2954
  %v2956 = vrcp.pop %v2928
  %v2957 = vmul.f32 1.0, %v2956
  %v2958 = vrcp.pop %v2929
  %v2959 = vmul.f32 1.0, %v2958
  %v2960 = vrcp.pop %v2930
  %v2961 = vmul.f32 1.0, %v2960
  %v2962 = vrcp.pop %v2931
  %v2963 = vmul.f32 1.0, %v2962
  %v2964 = vmul.f32 %v2790, %v2933
  %v2965 = vmul.f32 %v2795, %v2935
  %v2966 = vmul.f32 %v2800, %v2937
  %v2967 = vmul.f32 %v2805, %v2939
  %v2968 = vmul.f32 %v2810, %v2941
  %v2969 = vmul.f32 %v2815, %v2943
  %v2970 = vmul.f32 %v2820, %v2945
  %v2971 = vmul.f32 %v2825, %v2947
  %v2972 = vmul.f32 %v2830, %v2949
  %v2973 = vmul.f32 %v2835, %v2951
  %v2974 = vmul.f32 %v2840, %v2953
  %v2975 = vmul.f32 %v2845, %v2955
  %v2976 = vmul.f32 %v2850, %v2957
  %v2977 = vmul.f32 %v2855, %v2959
  %v2978 = vmul.f32 %v2860, %v2961
  %v2979 = vmul.f32 %v2865, %v2963
  %v2980 = vld [vmem:[%s4 + $0x28] sm:$0xff]
  %v2981 = vld [vmem:[%s4 + $0x30] sm:$0xff]
  %2982 = vmatprep.subr.mxu0 0.0
  %2983 = vmatpush1.msra.mxu0 %v2964
  %2984 = vmatprep.subr.mxu0 0.0
  %2985 = vmatpush1.msra.mxu0 %v2965
  %2986 = vmatprep.subr.mxu0 0.0
  %2987 = vmatpush1.msra.mxu0 %v2966
  %2988 = vmatprep.subr.mxu0 0.0
  %2989 = vmatpush1.msra.mxu0 %v2967
  %2990 = vmatprep.subr.mxu0 0.0
  %2991 = vmatpush1.msra.mxu0 %v2968
  %2992 = vmatprep.subr.mxu0 0.0
  %2993 = vmatpush1.msra.mxu0 %v2969
  %2994 = vmatprep.subr.mxu0 0.0
  %2995 = vmatpush1.msra.mxu0 %v2970
  %2996 = vmatprep.subr.mxu0 0.0
  %2997 = vmatpush1.msra.mxu0 %v2971
  %2998 = vmatprep.subr.mxu0 0.0
  %2999 = vmatpush1.msra.mxu0 %v2972
  %3000 = vmatprep.subr.mxu0 0.0
  %3001 = vmatpush1.msra.mxu0 %v2973
  %3002 = vmatprep.subr.mxu0 0.0
  %3003 = vmatpush1.msra.mxu0 %v2974
  %3004 = vmatprep.subr.mxu0 0.0
  %3005 = vmatpush1.msra.mxu0 %v2975
  %3006 = vmatprep.subr.mxu0 0.0
  %3007 = vmatpush1.msra.mxu0 %v2976
  %3008 = vmatprep.subr.mxu0 0.0
  %3009 = vmatpush1.msra.mxu0 %v2977
  %3010 = vmatprep.subr.mxu0 0.0
  %3011 = vmatpush1.msra.mxu0 %v2978
  %3012 = vmatprep.subr.mxu0 0.0
  %3013 = vmatpush1.msra.mxu0 %v2979
  %3014 = vmatprep.subr.mxu0 0.0
  %3015 = vmatpush1.msra.mxu0 0.0
  %3016 = vmatprep.subr.mxu0 0.0
  %3017 = vmatpush1.msra.mxu0 0.0
  %3018 = vmatprep.subr.mxu0 0.0
  %3019 = vmatpush1.msra.mxu0 0.0
  %3020 = vmatprep.subr.mxu0 0.0
  %3021 = vmatpush1.msra.mxu0 0.0
  %3022 = vmatprep.subr.mxu0 0.0
  %3023 = vmatpush1.msra.mxu0 0.0
  %3024 = vmatprep.subr.mxu0 0.0
  %3025 = vmatpush1.msra.mxu0 0.0
  %3026 = vmatprep.subr.mxu0 0.0
  %3027 = vmatpush1.msra.mxu0 0.0
  %3028 = vmatprep.subr.mxu0 0.0
  %3029 = vmatpush1.msra.mxu0 0.0
  %3030 = vmatprep.subr.mxu0 0.0
  %3031 = vmatpush1.msra.mxu0 0.0
  %3032 = vmatprep.subr.mxu0 0.0
  %3033 = vmatpush1.msra.mxu0 0.0
  %3034 = vmatprep.subr.mxu0 0.0
  %3035 = vmatpush1.msra.mxu0 0.0
  %3036 = vmatprep.subr.mxu0 0.0
  %3037 = vmatpush1.msra.mxu0 0.0
  %3038 = vmatprep.subr.mxu0 0.0
  %3039 = vmatpush1.msra.mxu0 0.0
  %3040 = vmatprep.subr.mxu0 0.0
  %3041 = vmatpush1.msra.mxu0 0.0
  %3042 = vmatprep.subr.mxu0 0.0
  %3043 = vmatpush1.msra.mxu0 0.0
  %3044 = vmatprep.subr.mxu0 0.0
  %3045 = vmatpush1.msra.mxu0 0.0
  %3046 = vmatprep.mubr.f32.mxu0 0.0
  %3047 = vmatmul.mubr.f32.gmra.mrb[0].mxu0 %v2980
  %v3048 = vpop.f32.mrb[0].mxu0
  %v3049 = vadd.f32 0.0, %v3048
  %v3050 = vpop.f32.mrb[0].mxu0
  %3051 = vmatprep.mubr.f32.mxu0 0.0
  %3052 = vmatmul.mubr.f32.gmra.mrb[0].mxu0 %v2981
  %v3053 = vpop.f32.mrb[0].mxu0
  %v3054 = vadd.f32 0.0, %v3053
  %v3055 = vpop.f32.mrb[0].mxu0
  %3056 = vdwg.mxu0
  %v3057 = vld [vmem:[%s2 + $0xa8] sm:$0xff]
  %v3058 = vld [vmem:[%s2 + $0xb0] sm:$0xff]
  %v3059 = vld [vmem:[%s2 + $0xb8] sm:$0xff]
  %v3060 = vld [vmem:[%s2 + $0xc0] sm:$0xff]
  %v3062 = vsel %vm1429, %v3049, 0
  %v3065 = vsel %vm1429, %v3054, 0
  %3067 = vmatprep.subr.mxu0 0.0
  %3068 = vmatpush1.msra.mxu0 %v3057
  %3069 = vmatprep.subr.mxu0 0.0
  %3070 = vmatpush1.msra.mxu0 %v3058
  %3071 = vmatprep.subr.mxu0 0.0
  %3072 = vmatpush1.msra.mxu0 %v3059
  %3073 = vmatprep.subr.mxu0 0.0
  %3074 = vmatpush1.msra.mxu0 %v3060
  %3075 = vmatprep.subr.mxu0 0.0
  %3076 = vmatpush1.msra.mxu0 0.0
  %3077 = vmatprep.subr.mxu0 0.0
  %3078 = vmatpush1.msra.mxu0 0.0
  %3079 = vmatprep.subr.mxu0 0.0
  %3080 = vmatpush1.msra.mxu0 0.0
  %3081 = vmatprep.subr.mxu0 0.0
  %3082 = vmatpush1.msra.mxu0 0.0
  %3083 = vmatprep.subr.mxu0 0.0
  %3084 = vmatpush1.msra.mxu0 0.0
  %3085 = vmatprep.subr.mxu0 0.0
  %3086 = vmatpush1.msra.mxu0 0.0
  %3087 = vmatprep.subr.mxu0 0.0
  %3088 = vmatpush1.msra.mxu0 0.0
  %3089 = vmatprep.subr.mxu0 0.0
  %3090 = vmatpush1.msra.mxu0 0.0
  %3091 = vmatprep.subr.mxu0 0.0
  %3092 = vmatpush1.msra.mxu0 0.0
  %3093 = vmatprep.subr.mxu0 0.0
  %3094 = vmatpush1.msra.mxu0 0.0
  %3095 = vmatprep.subr.mxu0 0.0
  %3096 = vmatpush1.msra.mxu0 0.0
  %3097 = vmatprep.subr.mxu0 0.0
  %3098 = vmatpush1.msra.mxu0 0.0
  %3099 = vmatprep.subr.mxu0 0.0
  %3100 = vmatpush1.msra.mxu0 0.0
  %3101 = vmatprep.subr.mxu0 0.0
  %3102 = vmatpush1.msra.mxu0 0.0
  %3103 = vmatprep.subr.mxu0 0.0
  %3104 = vmatpush1.msra.mxu0 0.0
  %3105 = vmatprep.subr.mxu0 0.0
  %3106 = vmatpush1.msra.mxu0 0.0
  %3107 = vmatprep.subr.mxu0 0.0
  %3108 = vmatpush1.msra.mxu0 0.0
  %3109 = vmatprep.subr.mxu0 0.0
  %3110 = vmatpush1.msra.mxu0 0.0
  %3111 = vmatprep.subr.mxu0 0.0
  %3112 = vmatpush1.msra.mxu0 0.0
  %3113 = vmatprep.subr.mxu0 0.0
  %3114 = vmatpush1.msra.mxu0 0.0
  %3115 = vmatprep.subr.mxu0 0.0
  %3116 = vmatpush1.msra.mxu0 0.0
  %3117 = vmatprep.subr.mxu0 0.0
  %3118 = vmatpush1.msra.mxu0 0.0
  %3119 = vmatprep.subr.mxu0 0.0
  %3120 = vmatpush1.msra.mxu0 0.0
  %3121 = vmatprep.subr.mxu0 0.0
  %3122 = vmatpush1.msra.mxu0 0.0
  %3123 = vmatprep.subr.mxu0 0.0
  %3124 = vmatpush1.msra.mxu0 0.0
  %3125 = vmatprep.subr.mxu0 0.0
  %3126 = vmatpush1.msra.mxu0 0.0
  %3127 = vmatprep.subr.mxu0 0.0
  %3128 = vmatpush1.msra.mxu0 0.0
  %3129 = vmatprep.subr.mxu0 0.0
  %3130 = vmatpush1.msra.mxu0 0.0
  %3131 = vmatprep.mubr.f32.mxu0 0.0
  %3132 = vmatmul.mubr.f32.gmra.mrb[0].mxu0 %v3062
  %v3133 = vpop.f32.mrb[0].mxu0
  %v3134 = vadd.f32 0.0, %v3133
  %v3135 = vpop.f32.mrb[0].mxu0
  %3136 = vmatprep.mubr.f32.mxu0 0.0
  %3137 = vmatmul.mubr.f32.gmra.mrb[0].mxu0 %v3065
  %v3138 = vpop.f32.mrb[0].mxu0
  %v3139 = vadd.f32 0.0, %v3138
  %v3140 = vpop.f32.mrb[0].mxu0
  %3141 = vdwg.mxu0
  %3144 = vrot.lane.b32.xlu0 %v3134, 64
  %v3145 = vpop.permute.xlu0 %3144
  %3146 = vrot.lane.b32.xlu0 %v3139, 64
  %v3147 = vpop.permute.xlu0 %3146
  %v3150 = vadd.f32 %v2131, %v3145
  %v3151 = vadd.f32 %v2136, %v3147
  %v3152 = vxor.u32 %v3150, 2147483648
  %v3153 = vxor.u32 %v3151, 2147483648
  %v3154 = vmul.f32 %v3152, 1.442695
  %v3155 = vpow.pop %v3154
  %v3156 = vmul.f32 %v3153, 1.442695
  %v3157 = vpow.pop %v3156
  %v3158 = vadd.f32 %v3155, 1.0
  %v3159 = vadd.f32 %v3157, 1.0
  %v3160 = vrcp.pop %v3158
  %v3161 = vmul.f32 1.0, %v3160
  %v3162 = vrcp.pop %v3159
  %v3163 = vmul.f32 1.0, %v3162
  %v3164 = vmul.f32 %v3150, %v3161
  %v3165 = vmul.f32 %v3151, %v3163
  %v3166 = vld [vmem:[%s2 + $0xc8] sm:$0xff]
  %v3167 = vld [vmem:[%s2 + $0xd0] sm:$0xff]
  %v3168 = vld [vmem:[%s2 + $0xd8] sm:$0xff]
  %v3169 = vld [vmem:[%s2 + $0xe0] sm:$0xff]
  %v3170 = vld [vmem:[%s2 + $0xe8] sm:$0x1]
  %v3171 = vlaneseq
  %v3172 = vshrl.u32 %v3171, 7
  %v3173 = vsub.s32 0, %v3172
  %v3174 = vrot.slane %v3170, %v3173
  %3177 = vrot.lane.b32.xlu0 %v3164, 64
  %v3178 = vpop.permute.xlu0 %3177
  %3179 = vrot.lane.b32.xlu0 %v3165, 64
  %v3180 = vpop.permute.xlu0 %3179
  %v3181 = vsel %vm1429, %v3178, 0
  %v3183 = vsel %vm1429, %v3180, 0
  %3185 = vmatprep.subr.mxu0 0.0
  %3186 = vmatpush1.msra.mxu0 %v3166
  %3187 = vmatprep.subr.mxu0 0.0
  %3188 = vmatpush1.msra.mxu0 %v3167
  %3189 = vmatprep.subr.mxu0 0.0
  %3190 = vmatpush1.msra.mxu0 %v3168
  %3191 = vmatprep.subr.mxu0 0.0
  %3192 = vmatpush1.msra.mxu0 %v3169
  %3193 = vmatprep.subr.mxu0 0.0
  %3194 = vmatpush1.msra.mxu0 0.0
  %3195 = vmatprep.subr.mxu0 0.0
  %3196 = vmatpush1.msra.mxu0 0.0
  %3197 = vmatprep.subr.mxu0 0.0
  %3198 = vmatpush1.msra.mxu0 0.0
  %3199 = vmatprep.subr.mxu0 0.0
  %3200 = vmatpush1.msra.mxu0 0.0
  %3201 = vmatprep.subr.mxu0 0.0
  %3202 = vmatpush1.msra.mxu0 0.0
  %3203 = vmatprep.subr.mxu0 0.0
  %3204 = vmatpush1.msra.mxu0 0.0
  %3205 = vmatprep.subr.mxu0 0.0
  %3206 = vmatpush1.msra.mxu0 0.0
  %3207 = vmatprep.subr.mxu0 0.0
  %3208 = vmatpush1.msra.mxu0 0.0
  %3209 = vmatprep.subr.mxu0 0.0
  %3210 = vmatpush1.msra.mxu0 0.0
  %3211 = vmatprep.subr.mxu0 0.0
  %3212 = vmatpush1.msra.mxu0 0.0
  %3213 = vmatprep.subr.mxu0 0.0
  %3214 = vmatpush1.msra.mxu0 0.0
  %3215 = vmatprep.subr.mxu0 0.0
  %3216 = vmatpush1.msra.mxu0 0.0
  %3217 = vmatprep.subr.mxu0 0.0
  %3218 = vmatpush1.msra.mxu0 0.0
  %3219 = vmatprep.subr.mxu0 0.0
  %3220 = vmatpush1.msra.mxu0 0.0
  %3221 = vmatprep.subr.mxu0 0.0
  %3222 = vmatpush1.msra.mxu0 0.0
  %3223 = vmatprep.subr.mxu0 0.0
  %3224 = vmatpush1.msra.mxu0 0.0
  %3225 = vmatprep.subr.mxu0 0.0
  %3226 = vmatpush1.msra.mxu0 0.0
  %3227 = vmatprep.subr.mxu0 0.0
  %3228 = vmatpush1.msra.mxu0 0.0
  %3229 = vmatprep.subr.mxu0 0.0
  %3230 = vmatpush1.msra.mxu0 0.0
  %3231 = vmatprep.subr.mxu0 0.0
  %3232 = vmatpush1.msra.mxu0 0.0
  %3233 = vmatprep.subr.mxu0 0.0
  %3234 = vmatpush1.msra.mxu0 0.0
  %3235 = vmatprep.subr.mxu0 0.0
  %3236 = vmatpush1.msra.mxu0 0.0
  %3237 = vmatprep.subr.mxu0 0.0
  %3238 = vmatpush1.msra.mxu0 0.0
  %3239 = vmatprep.subr.mxu0 0.0
  %3240 = vmatpush1.msra.mxu0 0.0
  %3241 = vmatprep.subr.mxu0 0.0
  %3242 = vmatpush1.msra.mxu0 0.0
  %3243 = vmatprep.subr.mxu0 0.0
  %3244 = vmatpush1.msra.mxu0 0.0
  %3245 = vmatprep.subr.mxu0 0.0
  %3246 = vmatpush1.msra.mxu0 0.0
  %3247 = vmatprep.subr.mxu0 0.0
  %3248 = vmatpush1.msra.mxu0 0.0
  %3249 = vmatprep.mubr.f32.mxu0 0.0
  %3250 = vmatmul.mubr.f32.gmra.mrb[0].mxu0 %v3181
  %v3251 = vpop.f32.mrb[0].mxu0
  %v3252 = vadd.f32 %v3174, %v3251
  %v3253 = vpop.f32.mrb[0].mxu0
  %3254 = vmatprep.mubr.f32.mxu0 0.0
  %3255 = vmatmul.mubr.f32.gmra.mrb[0].mxu0 %v3183
  %v3256 = vpop.f32.mrb[0].mxu0
  %v3257 = vadd.f32 %v3174, %v3256
  %v3258 = vpop.f32.mrb[0].mxu0
  %3259 = vdwg.mxu0
  %v3260 = vxor.u32 %v3252, 2147483648
  %v3261 = vxor.u32 %v3257, 2147483648
  %v3262 = vmul.f32 %v3260, 1.442695
  %v3263 = vpow.pop %v3262
  %v3264 = vmul.f32 %v3261, 1.442695
  %v3265 = vpow.pop %v3264
  %v3266 = vadd.f32 %v3263, 1.0
  %v3267 = vadd.f32 %v3265, 1.0
  %v3268 = vrcp.pop %v3266
  %v3269 = vmul.f32 1.0, %v3268
  %v3270 = vrcp.pop %v3267
  %v3271 = vmul.f32 1.0, %v3270
  %v3272 = vmul.f32 %v3252, %v3269
  %v3273 = vmul.f32 %v3257, %v3271
  %v3274 = vld [vmem:[%s3 + $0x20] sm:$0xff]
  %v3275 = vld [vmem:[%s3 + $0x28] sm:$0xff]
  %v3276 = vld [vmem:[%s3 + $0x30] sm:$0xff]
  %v3277 = vld [vmem:[%s3 + $0x38] sm:$0xff]
  %v3278 = vld [vmem:[%s3 + $0x40] sm:$0x1]
  %v3279 = vlaneseq
  %v3280 = vshrl.u32 %v3279, 7
  %v3281 = vsub.s32 0, %v3280
  %v3282 = vrot.slane %v3278, %v3281
  %v3284 = vsel %vm1429, %v3272, 0
  %v3287 = vsel %vm1429, %v3273, 0
  %3289 = vmatprep.subr.mxu0 0.0
  %3290 = vmatpush1.msra.mxu0 %v3274
  %3291 = vmatprep.subr.mxu0 0.0
  %3292 = vmatpush1.msra.mxu0 %v3275
  %3293 = vmatprep.subr.mxu0 0.0
  %3294 = vmatpush1.msra.mxu0 %v3276
  %3295 = vmatprep.subr.mxu0 0.0
  %3296 = vmatpush1.msra.mxu0 %v3277
  %3297 = vmatprep.subr.mxu0 0.0
  %3298 = vmatpush1.msra.mxu0 0.0
  %3299 = vmatprep.subr.mxu0 0.0
  %3300 = vmatpush1.msra.mxu0 0.0
  %3301 = vmatprep.subr.mxu0 0.0
  %3302 = vmatpush1.msra.mxu0 0.0
  %3303 = vmatprep.subr.mxu0 0.0
  %3304 = vmatpush1.msra.mxu0 0.0
  %3305 = vmatprep.subr.mxu0 0.0
  %3306 = vmatpush1.msra.mxu0 0.0
  %3307 = vmatprep.subr.mxu0 0.0
  %3308 = vmatpush1.msra.mxu0 0.0
  %3309 = vmatprep.subr.mxu0 0.0
  %3310 = vmatpush1.msra.mxu0 0.0
  %3311 = vmatprep.subr.mxu0 0.0
  %3312 = vmatpush1.msra.mxu0 0.0
  %3313 = vmatprep.subr.mxu0 0.0
  %3314 = vmatpush1.msra.mxu0 0.0
  %3315 = vmatprep.subr.mxu0 0.0
  %3316 = vmatpush1.msra.mxu0 0.0
  %3317 = vmatprep.subr.mxu0 0.0
  %3318 = vmatpush1.msra.mxu0 0.0
  %3319 = vmatprep.subr.mxu0 0.0
  %3320 = vmatpush1.msra.mxu0 0.0
  %3321 = vmatprep.subr.mxu0 0.0
  %3322 = vmatpush1.msra.mxu0 0.0
  %3323 = vmatprep.subr.mxu0 0.0
  %3324 = vmatpush1.msra.mxu0 0.0
  %3325 = vmatprep.subr.mxu0 0.0
  %3326 = vmatpush1.msra.mxu0 0.0
  %3327 = vmatprep.subr.mxu0 0.0
  %3328 = vmatpush1.msra.mxu0 0.0
  %3329 = vmatprep.subr.mxu0 0.0
  %3330 = vmatpush1.msra.mxu0 0.0
  %3331 = vmatprep.subr.mxu0 0.0
  %3332 = vmatpush1.msra.mxu0 0.0
  %3333 = vmatprep.subr.mxu0 0.0
  %3334 = vmatpush1.msra.mxu0 0.0
  %3335 = vmatprep.subr.mxu0 0.0
  %3336 = vmatpush1.msra.mxu0 0.0
  %3337 = vmatprep.subr.mxu0 0.0
  %3338 = vmatpush1.msra.mxu0 0.0
  %3339 = vmatprep.subr.mxu0 0.0
  %3340 = vmatpush1.msra.mxu0 0.0
  %3341 = vmatprep.subr.mxu0 0.0
  %3342 = vmatpush1.msra.mxu0 0.0
  %3343 = vmatprep.subr.mxu0 0.0
  %3344 = vmatpush1.msra.mxu0 0.0
  %3345 = vmatprep.subr.mxu0 0.0
  %3346 = vmatpush1.msra.mxu0 0.0
  %3347 = vmatprep.subr.mxu0 0.0
  %3348 = vmatpush1.msra.mxu0 0.0
  %3349 = vmatprep.subr.mxu0 0.0
  %3350 = vmatpush1.msra.mxu0 0.0
  %3351 = vmatprep.subr.mxu0 0.0
  %3352 = vmatpush1.msra.mxu0 0.0
  %3353 = vmatprep.mubr.f32.mxu0 0.0
  %3354 = vmatmul.mubr.f32.gmra.mrb[0].mxu0 %v3284
  %v3355 = vpop.f32.mrb[0].mxu0
  %v3356 = vadd.f32 %v3282, %v3355
  %v3357 = vpop.f32.mrb[0].mxu0
  %3358 = vmatprep.mubr.f32.mxu0 0.0
  %3359 = vmatmul.mubr.f32.gmra.mrb[0].mxu0 %v3287
  %v3360 = vpop.f32.mrb[0].mxu0
  %v3361 = vadd.f32 %v3282, %v3360
  %v3362 = vpop.f32.mrb[0].mxu0
  %3363 = vdwg.mxu0
  %v3366 = vcombine.high %v3356, %v3356
  %v3368 = vunpack.c.l.s4 1966171168
  %v3369 = vunpack.c.0.s8 %v3368
  %v3370 = vlaneseq
  %v3371 = vshrl.u32 %v3370, 7
  %v3372 = vsub.s32 %v3369, %v3371
  %v3373 = vrot.slane %v3356, %v3372
  %v3375 = vunpack.c.l.s4 1966171168
  %v3376 = vunpack.c.0.s8 %v3375
  %v3377 = vlaneseq
  %v3378 = vshrl.u32 %v3377, 7
  %v3379 = vsub.s32 %v3376, %v3378
  %v3380 = vrot.slane %v3366, %v3379
  %v3381 = vcombine.high %v3373, %v3373
  %v3382 = vcombine.high %v3380, %v3380
  %v3384 = vunpack.c.l.s4 1966171168
  %v3385 = vunpack.c.0.s8 %v3384
  %v3386 = vlaneseq
  %v3387 = vshrl.u32 %v3386, 7
  %v3388 = vsub.s32 %v3385, %v3387
  %v3389 = vrot.slane %v3373, %v3388
  %v3391 = vunpack.c.l.s4 1966171168
  %v3392 = vunpack.c.0.s8 %v3391
  %v3393 = vlaneseq
  %v3394 = vshrl.u32 %v3393, 7
  %v3395 = vsub.s32 %v3392, %v3394
  %v3396 = vrot.slane %v3380, %v3395
  %v3398 = vunpack.c.l.s4 1966171168
  %v3399 = vunpack.c.0.s8 %v3398
  %v3400 = vlaneseq
  %v3401 = vshrl.u32 %v3400, 7
  %v3402 = vsub.s32 %v3399, %v3401
  %v3403 = vrot.slane %v3381, %v3402
  %v3405 = vunpack.c.l.s4 1966171168
  %v3406 = vunpack.c.0.s8 %v3405
  %v3407 = vlaneseq
  %v3408 = vshrl.u32 %v3407, 7
  %v3409 = vsub.s32 %v3406, %v3408
  %v3410 = vrot.slane %v3382, %v3409
  %v3411 = vcombine.high %v3389, %v3389
  %v3412 = vcombine.high %v3396, %v3396
  %v3413 = vcombine.high %v3403, %v3403
  %v3414 = vcombine.high %v3410, %v3410
  %v3415 = vcombine.high %v3361, %v3361
  %v3417 = vunpack.c.l.s4 1966171168
  %v3418 = vunpack.c.0.s8 %v3417
  %v3419 = vlaneseq
  %v3420 = vshrl.u32 %v3419, 7
  %v3421 = vsub.s32 %v3418, %v3420
  %v3422 = vrot.slane %v3361, %v3421
  %v3424 = vunpack.c.l.s4 1966171168
  %v3425 = vunpack.c.0.s8 %v3424
  %v3426 = vlaneseq
  %v3427 = vshrl.u32 %v3426, 7
  %v3428 = vsub.s32 %v3425, %v3427
  %v3429 = vrot.slane %v3415, %v3428
  %v3430 = vcombine.high %v3422, %v3422
  %v3431 = vcombine.high %v3429, %v3429
  %v3433 = vunpack.c.l.s4 1966171168
  %v3434 = vunpack.c.0.s8 %v3433
  %v3435 = vlaneseq
  %v3436 = vshrl.u32 %v3435, 7
  %v3437 = vsub.s32 %v3434, %v3436
  %v3438 = vrot.slane %v3422, %v3437
  %v3440 = vunpack.c.l.s4 1966171168
  %v3441 = vunpack.c.0.s8 %v3440
  %v3442 = vlaneseq
  %v3443 = vshrl.u32 %v3442, 7
  %v3444 = vsub.s32 %v3441, %v3443
  %v3445 = vrot.slane %v3429, %v3444
  %v3447 = vunpack.c.l.s4 1966171168
  %v3448 = vunpack.c.0.s8 %v3447
  %v3449 = vlaneseq
  %v3450 = vshrl.u32 %v3449, 7
  %v3451 = vsub.s32 %v3448, %v3450
  %v3452 = vrot.slane %v3430, %v3451
  %v3454 = vunpack.c.l.s4 1966171168
  %v3455 = vunpack.c.0.s8 %v3454
  %v3456 = vlaneseq
  %v3457 = vshrl.u32 %v3456, 7
  %v3458 = vsub.s32 %v3455, %v3457
  %v3459 = vrot.slane %v3431, %v3458
  %v3460 = vcombine.high %v3438, %v3438
  %v3461 = vcombine.high %v3445, %v3445
  %v3462 = vcombine.high %v3452, %v3452
  %v3463 = vcombine.high %v3459, %v3459
  %v3464 = vlaneseq
  %v3465 = vshrl.u32 %v3464, 7
  %v3466 = vsub.s32 0, %v3465
  %v3467 = vrot.slane %v3389, %v3466
  %v3468 = vlaneseq
  %v3469 = vshrl.u32 %v3468, 7
  %v3470 = vsub.s32 0, %v3469
  %v3471 = vrot.slane %v3403, %v3470
  %v3472 = vlaneseq
  %v3473 = vshrl.u32 %v3472, 7
  %v3474 = vsub.s32 0, %v3473
  %v3475 = vrot.slane %v3411, %v3474
  %v3476 = vlaneseq
  %v3477 = vshrl.u32 %v3476, 7
  %v3478 = vsub.s32 0, %v3477
  %v3479 = vrot.slane %v3413, %v3478
  %v3480 = vlaneseq
  %v3481 = vshrl.u32 %v3480, 7
  %v3482 = vsub.s32 0, %v3481
  %v3483 = vrot.slane %v3396, %v3482
  %v3484 = vlaneseq
  %v3485 = vshrl.u32 %v3484, 7
  %v3486 = vsub.s32 0, %v3485
  %v3487 = vrot.slane %v3410, %v3486
  %v3488 = vlaneseq
  %v3489 = vshrl.u32 %v3488, 7
  %v3490 = vsub.s32 0, %v3489
  %v3491 = vrot.slane %v3412, %v3490
  %v3492 = vlaneseq
  %v3493 = vshrl.u32 %v3492, 7
  %v3494 = vsub.s32 0, %v3493
  %v3495 = vrot.slane %v3414, %v3494
  %v3496 = vlaneseq
  %v3497 = vshrl.u32 %v3496, 7
  %v3498 = vsub.s32 0, %v3497
  %v3499 = vrot.slane %v3438, %v3498
  %v3500 = vlaneseq
  %v3501 = vshrl.u32 %v3500, 7
  %v3502 = vsub.s32 0, %v3501
  %v3503 = vrot.slane %v3452, %v3502
  %v3504 = vlaneseq
  %v3505 = vshrl.u32 %v3504, 7
  %v3506 = vsub.s32 0, %v3505
  %v3507 = vrot.slane %v3460, %v3506
  %v3508 = vlaneseq
  %v3509 = vshrl.u32 %v3508, 7
  %v3510 = vsub.s32 0, %v3509
  %v3511 = vrot.slane %v3462, %v3510
  %v3512 = vlaneseq
  %v3513 = vshrl.u32 %v3512, 7
  %v3514 = vsub.s32 0, %v3513
  %v3515 = vrot.slane %v3445, %v3514
  %v3516 = vlaneseq
  %v3517 = vshrl.u32 %v3516, 7
  %v3518 = vsub.s32 0, %v3517
  %v3519 = vrot.slane %v3459, %v3518
  %v3520 = vlaneseq
  %v3521 = vshrl.u32 %v3520, 7
  %v3522 = vsub.s32 0, %v3521
  %v3523 = vrot.slane %v3461, %v3522
  %v3524 = vlaneseq
  %v3525 = vshrl.u32 %v3524, 7
  %v3526 = vsub.s32 0, %v3525
  %v3527 = vrot.slane %v3463, %v3526
  %3544 = vrot.lane.b32.xlu0 %v3356, 96
  %v3545 = vpop.permute.xlu0 %3544
  %3546 = vrot.lane.b32.xlu0 %v3361, 96
  %v3547 = vpop.permute.xlu0 %3546
  %v3550 = vadd.f32 %v3467, %v3545
  %v3551 = vadd.f32 %v3471, %v3545
  %v3552 = vadd.f32 %v3475, %v3545
  %v3553 = vadd.f32 %v3479, %v3545
  %v3554 = vadd.f32 %v3483, %v3545
  %v3555 = vadd.f32 %v3487, %v3545
  %v3556 = vadd.f32 %v3491, %v3545
  %v3557 = vadd.f32 %v3495, %v3545
  %v3558 = vadd.f32 %v3499, %v3547
  %v3559 = vadd.f32 %v3503, %v3547
  %v3560 = vadd.f32 %v3507, %v3547
  %v3561 = vadd.f32 %v3511, %v3547
  %v3562 = vadd.f32 %v3515, %v3547
  %v3563 = vadd.f32 %v3519, %v3547
  %v3564 = vadd.f32 %v3523, %v3547
  %v3565 = vadd.f32 %v3527, %v3547
  %3582 = vrot.lane.b32.xlu0 %v2258, 96
  %v3583 = vpop.permute.xlu0 %3582
  %3584 = vrot.lane.b32.xlu0 %v2263, 96
  %v3585 = vpop.permute.xlu0 %3584
  %3586 = vrot.lane.b32.xlu0 %v2268, 96
  %v3587 = vpop.permute.xlu0 %3586
  %3588 = vrot.lane.b32.xlu0 %v2273, 96
  %v3589 = vpop.permute.xlu0 %3588
  %3590 = vrot.lane.b32.xlu0 %v2278, 96
  %v3591 = vpop.permute.xlu0 %3590
  %3592 = vrot.lane.b32.xlu0 %v2283, 96
  %v3593 = vpop.permute.xlu0 %3592
  %3594 = vrot.lane.b32.xlu0 %v2288, 96
  %v3595 = vpop.permute.xlu0 %3594
  %3596 = vrot.lane.b32.xlu0 %v2293, 96
  %v3597 = vpop.permute.xlu0 %3596
  %3598 = vrot.lane.b32.xlu0 %v2298, 96
  %v3599 = vpop.permute.xlu0 %3598
  %3600 = vrot.lane.b32.xlu0 %v2303, 96
  %v3601 = vpop.permute.xlu0 %3600
  %3602 = vrot.lane.b32.xlu0 %v2308, 96
  %v3603 = vpop.permute.xlu0 %3602
  %3604 = vrot.lane.b32.xlu0 %v2313, 96
  %v3605 = vpop.permute.xlu0 %3604
  %3606 = vrot.lane.b32.xlu0 %v2318, 96
  %v3607 = vpop.permute.xlu0 %3606
  %3608 = vrot.lane.b32.xlu0 %v2323, 96
  %v3609 = vpop.permute.xlu0 %3608
  %3610 = vrot.lane.b32.xlu0 %v2328, 96
  %v3611 = vpop.permute.xlu0 %3610
  %3612 = vrot.lane.b32.xlu0 %v2333, 96
  %v3613 = vpop.permute.xlu0 %3612
  %v3630 = vadd.f32 %v3550, %v3583
  %v3631 = vadd.f32 %v3551, %v3585
  %v3632 = vadd.f32 %v3552, %v3587
  %v3633 = vadd.f32 %v3553, %v3589
  %v3634 = vadd.f32 %v3554, %v3591
  %v3635 = vadd.f32 %v3555, %v3593
  %v3636 = vadd.f32 %v3556, %v3595
  %v3637 = vadd.f32 %v3557, %v3597
  %v3638 = vadd.f32 %v3558, %v3599
  %v3639 = vadd.f32 %v3559, %v3601
  %v3640 = vadd.f32 %v3560, %v3603
  %v3641 = vadd.f32 %v3561, %v3605
  %v3642 = vadd.f32 %v3562, %v3607
  %v3643 = vadd.f32 %v3563, %v3609
  %v3644 = vadd.f32 %v3564, %v3611
  %v3645 = vadd.f32 %v3565, %v3613
  %v3646 = vxor.u32 %v3630, 2147483648
  %v3647 = vxor.u32 %v3631, 2147483648
  %v3648 = vxor.u32 %v3632, 2147483648
  %v3649 = vxor.u32 %v3633, 2147483648
  %v3650 = vxor.u32 %v3634, 2147483648
  %v3651 = vxor.u32 %v3635, 2147483648
  %v3652 = vxor.u32 %v3636, 2147483648
  %v3653 = vxor.u32 %v3637, 2147483648
  %v3654 = vxor.u32 %v3638, 2147483648
  %v3655 = vxor.u32 %v3639, 2147483648
  %v3656 = vxor.u32 %v3640, 2147483648
  %v3657 = vxor.u32 %v3641, 2147483648
  %v3658 = vxor.u32 %v3642, 2147483648
  %v3659 = vxor.u32 %v3643, 2147483648
  %v3660 = vxor.u32 %v3644, 2147483648
  %v3661 = vxor.u32 %v3645, 2147483648
  %v3662 = vmul.f32 %v3646, 1.442695
  %v3663 = vpow.pop %v3662
  %v3664 = vmul.f32 %v3647, 1.442695
  %v3665 = vpow.pop %v3664
  %v3666 = vmul.f32 %v3648, 1.442695
  %v3667 = vpow.pop %v3666
  %v3668 = vmul.f32 %v3649, 1.442695
  %v3669 = vpow.pop %v3668
  %v3670 = vmul.f32 %v3650, 1.442695
  %v3671 = vpow.pop %v3670
  %v3672 = vmul.f32 %v3651, 1.442695
  %v3673 = vpow.pop %v3672
  %v3674 = vmul.f32 %v3652, 1.442695
  %v3675 = vpow.pop %v3674
  %v3676 = vmul.f32 %v3653, 1.442695
  %v3677 = vpow.pop %v3676
  %v3678 = vmul.f32 %v3654, 1.442695
  %v3679 = vpow.pop %v3678
  %v3680 = vmul.f32 %v3655, 1.442695
  %v3681 = vpow.pop %v3680
  %v3682 = vmul.f32 %v3656, 1.442695
  %v3683 = vpow.pop %v3682
  %v3684 = vmul.f32 %v3657, 1.442695
  %v3685 = vpow.pop %v3684
  %v3686 = vmul.f32 %v3658, 1.442695
  %v3687 = vpow.pop %v3686
  %v3688 = vmul.f32 %v3659, 1.442695
  %v3689 = vpow.pop %v3688
  %v3690 = vmul.f32 %v3660, 1.442695
  %v3691 = vpow.pop %v3690
  %v3692 = vmul.f32 %v3661, 1.442695
  %v3693 = vpow.pop %v3692
  %v3694 = vadd.f32 %v3663, 1.0
  %v3695 = vadd.f32 %v3665, 1.0
  %v3696 = vadd.f32 %v3667, 1.0
  %v3697 = vadd.f32 %v3669, 1.0
  %v3698 = vadd.f32 %v3671, 1.0
  %v3699 = vadd.f32 %v3673, 1.0
  %v3700 = vadd.f32 %v3675, 1.0
  %v3701 = vadd.f32 %v3677, 1.0
  %v3702 = vadd.f32 %v3679, 1.0
  %v3703 = vadd.f32 %v3681, 1.0
  %v3704 = vadd.f32 %v3683, 1.0
  %v3705 = vadd.f32 %v3685, 1.0
  %v3706 = vadd.f32 %v3687, 1.0
  %v3707 = vadd.f32 %v3689, 1.0
  %v3708 = vadd.f32 %v3691, 1.0
  %v3709 = vadd.f32 %v3693, 1.0
  %v3710 = vrcp.pop %v3694
  %v3711 = vmul.f32 1.0, %v3710
  %v3712 = vrcp.pop %v3695
  %v3713 = vmul.f32 1.0, %v3712
  %v3714 = vrcp.pop %v3696
  %v3715 = vmul.f32 1.0, %v3714
  %v3716 = vrcp.pop %v3697
  %v3717 = vmul.f32 1.0, %v3716
  %v3718 = vrcp.pop %v3698
  %v3719 = vmul.f32 1.0, %v3718
  %v3720 = vrcp.pop %v3699
  %v3721 = vmul.f32 1.0, %v3720
  %v3722 = vrcp.pop %v3700
  %v3723 = vmul.f32 1.0, %v3722
  %v3724 = vrcp.pop %v3701
  %v3725 = vmul.f32 1.0, %v3724
  %v3726 = vrcp.pop %v3702
  %v3727 = vmul.f32 1.0, %v3726
  %v3728 = vrcp.pop %v3703
  %v3729 = vmul.f32 1.0, %v3728
  %v3730 = vrcp.pop %v3704
  %v3731 = vmul.f32 1.0, %v3730
  %v3732 = vrcp.pop %v3705
  %v3733 = vmul.f32 1.0, %v3732
  %v3734 = vrcp.pop %v3706
  %v3735 = vmul.f32 1.0, %v3734
  %v3736 = vrcp.pop %v3707
  %v3737 = vmul.f32 1.0, %v3736
  %v3738 = vrcp.pop %v3708
  %v3739 = vmul.f32 1.0, %v3738
  %v3740 = vrcp.pop %v3709
  %v3741 = vmul.f32 1.0, %v3740
  %v3742 = vmul.f32 %v3630, %v3711
  %v3743 = vmul.f32 %v3631, %v3713
  %v3744 = vmul.f32 %v3632, %v3715
  %v3745 = vmul.f32 %v3633, %v3717
  %v3746 = vmul.f32 %v3634, %v3719
  %v3747 = vmul.f32 %v3635, %v3721
  %v3748 = vmul.f32 %v3636, %v3723
  %v3749 = vmul.f32 %v3637, %v3725
  %v3750 = vmul.f32 %v3638, %v3727
  %v3751 = vmul.f32 %v3639, %v3729
  %v3752 = vmul.f32 %v3640, %v3731
  %v3753 = vmul.f32 %v3641, %v3733
  %v3754 = vmul.f32 %v3642, %v3735
  %v3755 = vmul.f32 %v3643, %v3737
  %v3756 = vmul.f32 %v3644, %v3739
  %v3757 = vmul.f32 %v3645, %v3741
  %v3758 = vld [vmem:[%s2 + $0xf0] sm:$0x3]
  %v3759 = vld [vmem:[%s2 + $0xf8] sm:$0x3]
  %3761 = vset.pattern.permute.xlu0 0
  %3762 = vperm.xlu0 %3761, %v3759
  %v3763 = vpop.permute.xlu0 %3762
  %v3766 = vsel %vm1429, %v3758, 0
  %v3769 = vsel %vm1429, %v3742, 0
  %v3772 = vsel %vm1429, %v3743, 0
  %v3775 = vsel %vm1429, %v3744, 0
  %v3778 = vsel %vm1429, %v3745, 0
  %v3781 = vsel %vm1429, %v3746, 0
  %v3784 = vsel %vm1429, %v3747, 0
  %v3787 = vsel %vm1429, %v3748, 0
  %v3790 = vsel %vm1429, %v3749, 0
  %v3793 = vsel %vm1429, %v3750, 0
  %v3796 = vsel %vm1429, %v3751, 0
  %v3799 = vsel %vm1429, %v3752, 0
  %v3802 = vsel %vm1429, %v3753, 0
  %v3805 = vsel %vm1429, %v3754, 0
  %v3808 = vsel %vm1429, %v3755, 0
  %v3811 = vsel %vm1429, %v3756, 0
  %v3814 = vsel %vm1429, %v3757, 0
  %3816 = vmatprep.subr.mxu0 0.0
  %3817 = vmatpush1.xpose.msra.mxu0 %v3769
  %3818 = vmatprep.subr.mxu0 0.0
  %3819 = vmatpush1.xpose.msra.mxu0 %v3772
  %3820 = vmatprep.subr.mxu0 0.0
  %3821 = vmatpush1.xpose.msra.mxu0 %v3775
  %3822 = vmatprep.subr.mxu0 0.0
  %3823 = vmatpush1.xpose.msra.mxu0 %v3778
  %3824 = vmatprep.subr.mxu0 0.0
  %3825 = vmatpush1.xpose.msra.mxu0 %v3781
  %3826 = vmatprep.subr.mxu0 0.0
  %3827 = vmatpush1.xpose.msra.mxu0 %v3784
  %3828 = vmatprep.subr.mxu0 0.0
  %3829 = vmatpush1.xpose.msra.mxu0 %v3787
  %3830 = vmatprep.subr.mxu0 0.0
  %3831 = vmatpush1.xpose.msra.mxu0 %v3790
  %3832 = vmatprep.subr.mxu0 0.0
  %3833 = vmatpush1.xpose.msra.mxu0 %v3793
  %3834 = vmatprep.subr.mxu0 0.0
  %3835 = vmatpush1.xpose.msra.mxu0 %v3796
  %3836 = vmatprep.subr.mxu0 0.0
  %3837 = vmatpush1.xpose.msra.mxu0 %v3799
  %3838 = vmatprep.subr.mxu0 0.0
  %3839 = vmatpush1.xpose.msra.mxu0 %v3802
  %3840 = vmatprep.subr.mxu0 0.0
  %3841 = vmatpush1.xpose.msra.mxu0 %v3805
  %3842 = vmatprep.subr.mxu0 0.0
  %3843 = vmatpush1.xpose.msra.mxu0 %v3808
  %3844 = vmatprep.subr.mxu0 0.0
  %3845 = vmatpush1.xpose.msra.mxu0 %v3811
  %3846 = vmatprep.subr.mxu0 0.0
  %3847 = vmatpush1.xpose.msra.mxu0 %v3814
  %3848 = vmatprep.subr.mxu0 0.0
  %3849 = vmatpush1.xpose.msra.mxu0 0.0
  %3850 = vmatprep.subr.mxu0 0.0
  %3851 = vmatpush1.xpose.msra.mxu0 0.0
  %3852 = vmatprep.subr.mxu0 0.0
  %3853 = vmatpush1.xpose.msra.mxu0 0.0
  %3854 = vmatprep.subr.mxu0 0.0
  %3855 = vmatpush1.xpose.msra.mxu0 0.0
  %3856 = vmatprep.subr.mxu0 0.0
  %3857 = vmatpush1.xpose.msra.mxu0 0.0
  %3858 = vmatprep.subr.mxu0 0.0
  %3859 = vmatpush1.xpose.msra.mxu0 0.0
  %3860 = vmatprep.subr.mxu0 0.0
  %3861 = vmatpush1.xpose.msra.mxu0 0.0
  %3862 = vmatprep.subr.mxu0 0.0
  %3863 = vmatpush1.xpose.msra.mxu0 0.0
  %3864 = vmatprep.subr.mxu0 0.0
  %3865 = vmatpush1.xpose.msra.mxu0 0.0
  %3866 = vmatprep.subr.mxu0 0.0
  %3867 = vmatpush1.xpose.msra.mxu0 0.0
  %3868 = vmatprep.subr.mxu0 0.0
  %3869 = vmatpush1.xpose.msra.mxu0 0.0
  %3870 = vmatprep.subr.mxu0 0.0
  %3871 = vmatpush1.xpose.msra.mxu0 0.0
  %3872 = vmatprep.subr.mxu0 0.0
  %3873 = vmatpush1.xpose.msra.mxu0 0.0
  %3874 = vmatprep.subr.mxu0 0.0
  %3875 = vmatpush1.xpose.msra.mxu0 0.0
  %3876 = vmatprep.subr.mxu0 0.0
  %3877 = vmatpush1.xpose.msra.mxu0 0.0
  %3878 = vmatprep.subr.mxu0 0.0
  %3879 = vmatpush1.xpose.msra.mxu0 0.0
  %3880 = vmatprep.mubr.f32.mxu0 0.0
  %3881 = vmatmul.mubr.f32.gmra.mrb[0].mxu0 %v3766
  %v3882 = vpop.f32.mrb[0].mxu0
  %v3883 = vadd.f32 %v3763, %v3882
  %v3884 = vpop.f32.mrb[0].mxu0
  %3885 = vdwg.mxu0
  %v3886 = vxor.u32 %v3883, 2147483648
  %v3887 = vmul.f32 %v3886, 1.442695
  %v3888 = vpow.pop %v3887
  %v3889 = vadd.f32 %v3888, 1.0
  %v3890 = vrcp.pop %v3889
  %v3891 = vmul.f32 1.0, %v3890
  %v3892 = vmul.f32 %v3883, %v3891
  %vm3893 = vcmask 1041408
  %v3894 = vsel %vm3893, %v3892, -inf
  %v3895 = vrot.slane %v3894, 4
  %v3896 = vmax.f32 %v3894, %v3895
  %v3897 = vrot.slane %v3896, 2
  %v3898 = vmax.f32 %v3896, %v3897
  %v3899 = vrot.slane %v3898, 1
  %v3900 = vmax.f32 %v3898, %v3899
  %v3901 = vsub.f32 %v3892, %v3900
  %v3902 = vmul.f32 %v3901, 1.442695
  %v3903 = vpow.pop %v3902
  %v3904 = vsel %vm3893, %v3903, 0.0
  %v3905 = vrot.slane %v3904, 4
  %v3906 = vadd.f32 %v3904, %v3905
  %v3907 = vrot.slane %v3906, 2
  %v3908 = vadd.f32 %v3906, %v3907
  %v3909 = vrot.slane %v3908, 1
  %v3910 = vadd.f32 %v3908, %v3909
  %v3911 = vrcp.pop %v3910
  %v3912 = vmul.f32 %v3903, %v3911
  %3913 = vst [vmem:[%s6] sm:$0x3] %v3912
  %v3914 = vsel %vm31, %v634, 0.0
  %3915 = vadd.xlane.f32.xlu0 %v3914
  %v3916 = vpop.xlane.xlu0 %3915
  %v3917 = vsel %vm31, %v635, 0.0
  %3918 = vadd.xlane.f32.xlu0 %v3917
  %v3919 = vpop.xlane.xlu0 %3918
  %v3920 = vsel %vm31, %v636, 0.0
  %3921 = vadd.xlane.f32.xlu0 %v3920
  %v3922 = vpop.xlane.xlu0 %3921
  %v3923 = vsel %vm31, %v637, 0.0
  %3924 = vadd.xlane.f32.xlu0 %v3923
  %v3925 = vpop.xlane.xlu0 %3924
  %v3926 = vsel %vm31, %v638, 0.0
  %3927 = vadd.xlane.f32.xlu0 %v3926
  %v3928 = vpop.xlane.xlu0 %3927
  %v3929 = vsel %vm31, %v639, 0.0
  %3930 = vadd.xlane.f32.xlu0 %v3929
  %v3931 = vpop.xlane.xlu0 %3930
  %v3932 = vrcp.pop 16.0
  %v3933 = vmul.f32 %v3916, %v3932
  %v3934 = vmul.f32 %v3919, %v3932
  %v3935 = vmul.f32 %v3922, %v3932
  %v3936 = vmul.f32 %v3925, %v3932
  %v3937 = vmul.f32 %v3928, %v3932
  %v3938 = vmul.f32 %v3931, %v3932
  %v3939 = vrot.slane %v3933, 4
  %v3940 = vadd.f32 %v3933, %v3939
  %v3941 = vrot.slane %v3940, 2
  %v3942 = vadd.f32 %v3940, %v3941
  %v3943 = vrot.slane %v3942, 1
  %v3944 = vadd.f32 %v3942, %v3943
  %v3945 = vrot.slane %v3934, 4
  %v3946 = vadd.f32 %v3934, %v3945
  %v3947 = vrot.slane %v3946, 2
  %v3948 = vadd.f32 %v3946, %v3947
  %v3949 = vrot.slane %v3948, 1
  %v3950 = vadd.f32 %v3948, %v3949
  %v3951 = vrot.slane %v3935, 4
  %v3952 = vadd.f32 %v3935, %v3951
  %v3953 = vrot.slane %v3952, 2
  %v3954 = vadd.f32 %v3952, %v3953
  %v3955 = vrot.slane %v3954, 1
  %v3956 = vadd.f32 %v3954, %v3955
  %v3957 = vrot.slane %v3936, 4
  %v3958 = vadd.f32 %v3936, %v3957
  %v3959 = vrot.slane %v3958, 2
  %v3960 = vadd.f32 %v3958, %v3959
  %v3961 = vrot.slane %v3960, 1
  %v3962 = vadd.f32 %v3960, %v3961
  %v3963 = vrot.slane %v3937, 4
  %v3964 = vadd.f32 %v3937, %v3963
  %v3965 = vrot.slane %v3964, 2
  %v3966 = vadd.f32 %v3964, %v3965
  %v3967 = vrot.slane %v3966, 1
  %v3968 = vadd.f32 %v3966, %v3967
  %v3969 = vrot.slane %v3938, 4
  %v3970 = vadd.f32 %v3938, %v3969
  %v3971 = vrot.slane %v3970, 2
  %v3972 = vadd.f32 %v3970, %v3971
  %v3973 = vrot.slane %v3972, 1
  %v3974 = vadd.f32 %v3972, %v3973
  %v3975 = vmul.f32 %v3944, %v144
  %v3976 = vmul.f32 %v3950, %v144
  %v3977 = vmul.f32 %v3956, %v144
  %v3978 = vmul.f32 %v3962, %v144
  %v3979 = vmul.f32 %v3968, %v144
  %v3980 = vmul.f32 %v3974, %v144
  %v3981 = vld [vmem:[%s3 + $0x50] sm:$0xff]
  %v3982 = vld [vmem:[%s3 + $0x58] sm:$0xff]
  %v3983 = vsel %vm31, %v634, 0
  %v3985 = vsel %vm31, %v635, 0
  %v3987 = vsel %vm31, %v636, 0
  %v3989 = vsel %vm31, %v637, 0
  %v3991 = vsel %vm31, %v638, 0
  %v3993 = vsel %vm31, %v639, 0
  %3995 = vmatprep.subr.mxu0 0.0
  %3996 = vmatpush1.msra.mxu0 %v3981
  %3997 = vmatprep.subr.mxu0 0.0
  %3998 = vmatpush1.msra.mxu0 %v3982
  %3999 = vmatprep.subr.mxu0 0.0
  %4000 = vmatpush1.msra.mxu0 0.0
  %4001 = vmatprep.subr.mxu0 0.0
  %4002 = vmatpush1.msra.mxu0 0.0
  %4003 = vmatprep.subr.mxu0 0.0
  %4004 = vmatpush1.msra.mxu0 0.0
  %4005 = vmatprep.subr.mxu0 0.0
  %4006 = vmatpush1.msra.mxu0 0.0
  %4007 = vmatprep.subr.mxu0 0.0
  %4008 = vmatpush1.msra.mxu0 0.0
  %4009 = vmatprep.subr.mxu0 0.0
  %4010 = vmatpush1.msra.mxu0 0.0
  %4011 = vmatprep.subr.mxu0 0.0
  %4012 = vmatpush1.msra.mxu0 0.0
  %4013 = vmatprep.subr.mxu0 0.0
  %4014 = vmatpush1.msra.mxu0 0.0
  %4015 = vmatprep.subr.mxu0 0.0
  %4016 = vmatpush1.msra.mxu0 0.0
  %4017 = vmatprep.subr.mxu0 0.0
  %4018 = vmatpush1.msra.mxu0 0.0
  %4019 = vmatprep.subr.mxu0 0.0
  %4020 = vmatpush1.msra.mxu0 0.0
  %4021 = vmatprep.subr.mxu0 0.0
  %4022 = vmatpush1.msra.mxu0 0.0
  %4023 = vmatprep.subr.mxu0 0.0
  %4024 = vmatpush1.msra.mxu0 0.0
  %4025 = vmatprep.subr.mxu0 0.0
  %4026 = vmatpush1.msra.mxu0 0.0
  %4027 = vmatprep.subr.mxu0 0.0
  %4028 = vmatpush1.msra.mxu0 0.0
  %4029 = vmatprep.subr.mxu0 0.0
  %4030 = vmatpush1.msra.mxu0 0.0
  %4031 = vmatprep.subr.mxu0 0.0
  %4032 = vmatpush1.msra.mxu0 0.0
  %4033 = vmatprep.subr.mxu0 0.0
  %4034 = vmatpush1.msra.mxu0 0.0
  %4035 = vmatprep.subr.mxu0 0.0
  %4036 = vmatpush1.msra.mxu0 0.0
  %4037 = vmatprep.subr.mxu0 0.0
  %4038 = vmatpush1.msra.mxu0 0.0
  %4039 = vmatprep.subr.mxu0 0.0
  %4040 = vmatpush1.msra.mxu0 0.0
  %4041 = vmatprep.subr.mxu0 0.0
  %4042 = vmatpush1.msra.mxu0 0.0
  %4043 = vmatprep.subr.mxu0 0.0
  %4044 = vmatpush1.msra.mxu0 0.0
  %4045 = vmatprep.subr.mxu0 0.0
  %4046 = vmatpush1.msra.mxu0 0.0
  %4047 = vmatprep.subr.mxu0 0.0
  %4048 = vmatpush1.msra.mxu0 0.0
  %4049 = vmatprep.subr.mxu0 0.0
  %4050 = vmatpush1.msra.mxu0 0.0
  %4051 = vmatprep.subr.mxu0 0.0
  %4052 = vmatpush1.msra.mxu0 0.0
  %4053 = vmatprep.subr.mxu0 0.0
  %4054 = vmatpush1.msra.mxu0 0.0
  %4055 = vmatprep.subr.mxu0 0.0
  %4056 = vmatpush1.msra.mxu0 0.0
  %4057 = vmatprep.subr.mxu0 0.0
  %4058 = vmatpush1.msra.mxu0 0.0
  %4059 = vmatprep.mubr.f32.mxu0 0.0
  %4060 = vmatmul.mubr.f32.gmra.mrb[0].mxu0 %v3983
  %v4061 = vpop.f32.mrb[0].mxu0
  %v4062 = vadd.f32 0.0, %v4061
  %v4063 = vpop.f32.mrb[0].mxu0
  %4064 = vmatprep.mubr.f32.mxu0 0.0
  %4065 = vmatmul.mubr.f32.gmra.mrb[0].mxu0 %v3985
  %v4066 = vpop.f32.mrb[0].mxu0
  %v4067 = vadd.f32 0.0, %v4066
  %v4068 = vpop.f32.mrb[0].mxu0
  %4069 = vmatprep.mubr.f32.mxu0 0.0
  %4070 = vmatmul.mubr.f32.gmra.mrb[0].mxu0 %v3987
  %v4071 = vpop.f32.mrb[0].mxu0
  %v4072 = vadd.f32 0.0, %v4071
  %v4073 = vpop.f32.mrb[0].mxu0
  %4074 = vmatprep.mubr.f32.mxu0 0.0
  %4075 = vmatmul.mubr.f32.gmra.mrb[0].mxu0 %v3989
  %v4076 = vpop.f32.mrb[0].mxu0
  %v4077 = vadd.f32 0.0, %v4076
  %v4078 = vpop.f32.mrb[0].mxu0
  %4079 = vmatprep.mubr.f32.mxu0 0.0
  %4080 = vmatmul.mubr.f32.gmra.mrb[0].mxu0 %v3991
  %v4081 = vpop.f32.mrb[0].mxu0
  %v4082 = vadd.f32 0.0, %v4081
  %v4083 = vpop.f32.mrb[0].mxu0
  %4084 = vmatprep.mubr.f32.mxu0 0.0
  %4085 = vmatmul.mubr.f32.gmra.mrb[0].mxu0 %v3993
  %v4086 = vpop.f32.mrb[0].mxu0
  %v4087 = vadd.f32 0.0, %v4086
  %v4088 = vpop.f32.mrb[0].mxu0
  %4089 = vdwg.mxu0
  %v4090 = vld [vmem:[%s3 + $0x60] sm:$0x1]
  %v4091 = vmul.f32 %v3975, %v4090
  %v4092 = vmul.f32 %v3976, %v4090
  %v4093 = vmul.f32 %v3977, %v4090
  %v4094 = vmul.f32 %v3978, %v4090
  %v4095 = vmul.f32 %v3979, %v4090
  %v4096 = vmul.f32 %v3980, %v4090
  %v4097 = vlaneseq
  %v4098 = vshrl.u32 %v4097, 7
  %v4099 = vsub.s32 0, %v4098
  %v4100 = vrot.slane %v4091, %v4099
  %v4101 = vlaneseq
  %v4102 = vshrl.u32 %v4101, 7
  %v4103 = vsub.s32 0, %v4102
  %v4104 = vrot.slane %v4092, %v4103
  %v4105 = vlaneseq
  %v4106 = vshrl.u32 %v4105, 7
  %v4107 = vsub.s32 0, %v4106
  %v4108 = vrot.slane %v4093, %v4107
  %v4109 = vlaneseq
  %v4110 = vshrl.u32 %v4109, 7
  %v4111 = vsub.s32 0, %v4110
  %v4112 = vrot.slane %v4094, %v4111
  %v4113 = vlaneseq
  %v4114 = vshrl.u32 %v4113, 7
  %v4115 = vsub.s32 0, %v4114
  %v4116 = vrot.slane %v4095, %v4115
  %v4117 = vlaneseq
  %v4118 = vshrl.u32 %v4117, 7
  %v4119 = vsub.s32 0, %v4118
  %v4120 = vrot.slane %v4096, %v4119
  %v4121 = vadd.f32 %v4062, %v4100
  %v4122 = vadd.f32 %v4067, %v4104
  %v4123 = vadd.f32 %v4072, %v4108
  %v4124 = vadd.f32 %v4077, %v4112
  %v4125 = vadd.f32 %v4082, %v4116
  %v4126 = vadd.f32 %v4087, %v4120
  %v4127 = vadd.f32 %v4121, %v187
  %v4128 = vadd.f32 %v4122, %v188
  %v4129 = vadd.f32 %v4123, %v189
  %v4130 = vadd.f32 %v4124, %v190
  %v4131 = vadd.f32 %v4125, %v191
  %v4132 = vadd.f32 %v4126, %v192
  %4133 = vst.msk [vmem:[%s5] sm:$0xff] %vm125, %v4127
  %4134 = vst.msk [vmem:[%s5 + $0x8] sm:$0xff] %vm125, %v4128
  %4135 = vst.msk [vmem:[%s5 + $0x10] sm:$0xff] %vm125, %v4129
  %4136 = vst.msk [vmem:[%s5 + $0x18] sm:$0xff] %vm125, %v4130
  %4137 = vst.msk [vmem:[%s5 + $0x20] sm:$0xff] %vm125, %v4131
  %4138 = vst.msk [vmem:[%s5 + $0x28] sm:$0xff] %vm125, %v4132
  // Predicated region
  $region22: #{eqmotion_forward.1} parent=0 // pred_check
    _
  $region23: #{eqmotion_forward.1} parent=0 // pred_check_branch
    %4140 = sbr.rel (0) target = $region25
  $region24: #{eqmotion_forward.1} parent=0 // pred_region
    _
  $region25: #{eqmotion_forward.1} parent=0 // pred_fallthru
    _
  // Predicated region
  $region26: #{eqmotion_forward.1} parent=0 // pred_check
    _
  $region27: #{eqmotion_forward.1} parent=0 // pred_check_branch
    %4142 = sbr.rel (0) target = $region29
  $region28: #{eqmotion_forward.1} parent=0 // pred_region
    _
  $region29: #{eqmotion_forward.1} parent=0 // pred_fallthru
    _
  // Predicated region
  $region30: #{eqmotion_forward.1} parent=0 // pred_check
    _
  $region31: #{eqmotion_forward.1} parent=0 // pred_check_branch
    %4144 = sbr.rel (0) target = $region33
  $region32: #{eqmotion_forward.1} parent=0 // pred_region
    _
  $region33: #{eqmotion_forward.1} parent=0 // pred_fallthru
    _
  // Predicated region
  $region34: #{eqmotion_forward.1} parent=0 // pred_check
    _
  $region35: #{eqmotion_forward.1} parent=0 // pred_check_branch
    %4146 = sbr.rel (0) target = $region37
  $region36: #{eqmotion_forward.1} parent=0 // pred_region
    _
  $region37: #{eqmotion_forward.1} parent=0 // pred_fallthru
    _

</llo_original>
